<compile_context>
chip_gen: v7x
topology: tpu7x:2x2x1
jax: 0.10.0
libtpu: 0.0.40
codegen_flags: <defaults>
</compile_context>

<pallas_src>
import math

import numpy as np
import jax
import jax.numpy as jnp
from jax.experimental import pallas as pl
from jax.experimental.pallas import tpu as pltpu

# ---- Model hyperparameters (mirror TransformerModel.__init__) ----
INPUT_SIZE = 16
OUTPUT_SIZE = 4
OUTPUT_LENGTH = 8
D_MODEL = 64
NHEAD = 8
HEAD_DIM = D_MODEL // NHEAD
NUM_LAYERS = 3
D_FF = 256
EPS = 1e-5

# ---- Example input shape ----
SEQ = 8      # axis 0 of src
BATCH = 2    # axis 1 of src
TOKENS = SEQ * BATCH             # seq-major token layout: row t = s * BATCH + n
ROWS = NHEAD * TOKENS            # 128 rows for the fused block-diagonal attention
OUT_DIM = OUTPUT_SIZE * OUTPUT_LENGTH

ATTN_SCALE = 1.0 / math.sqrt(HEAD_DIM)
NEG_INF = -1e30


def _transformer_kernel(x_ref, pe_b_ref, w_in_ref,
                        wqkv_ref, bqkv_ref, wo_ref, vecs_ref,
                        f1w_ref, f1b_ref, f2w_ref,
                        attn_bias_ref, head_mask_ref,
                        wout_ref, bout_ref, o_ref):
    inv_d = 1.0 / D_MODEL

    def layer_norm(h, w, b):
        # single-pass layer norm: var = E[x^2] - mu^2 (fine at these magnitudes)
        mu = jnp.sum(h, axis=-1, keepdims=True) * inv_d
        ex2 = jnp.sum(h * h, axis=-1, keepdims=True) * inv_d
        var = ex2 - mu * mu
        return (h - mu) * jax.lax.rsqrt(var + EPS) * w + b

    # ---- input projection; pe_b already holds (positional encoding + input bias) ----
    # TODO(synk): nn.Dropout(p=0.1) layers are identity (inference mode).
    h = jnp.dot(x_ref[...], w_in_ref[...],
                preferred_element_type=jnp.float32) + pe_b_ref[...]

    for l in range(NUM_LAYERS):      # static unroll; weights sliced at the point of use
        vs = vecs_ref[l]             # (8, 64): rows [ob, ln1w, ln1b, ln2w, ln2b, f2b, 0, 0]

        # ---- fused QKV projection: one (16,64) @ (64,192) matmul ----
        qkv = jnp.dot(h, wqkv_ref[l],
                      preferred_element_type=jnp.float32) + bqkv_ref[l]
        q = qkv[:, 0:D_MODEL] * ATTN_SCALE
        k = qkv[:, D_MODEL:2 * D_MODEL]
        v = qkv[:, 2 * D_MODEL:3 * D_MODEL]

        # head-masked, sublane-tiled K/V: (128, 64); row hh*TOKENS+t keeps head-hh cols
        hm = head_mask_ref[...]
        kt = jnp.tile(k, (NHEAD, 1)) * hm
        vt = jnp.tile(v, (NHEAD, 1)) * hm

        # ---- scores with a 16-row LHS, sublane-tile the result to (128,128) ----
        s16 = jax.lax.dot_general(q, kt, (((1,), (1,)), ((), ())),
                                  preferred_element_type=jnp.float32)      # (16, 128)
        s = jnp.tile(s16, (NHEAD, 1)) + attn_bias_ref[...]                 # (128, 128)
        s = s - jnp.max(s, axis=-1, keepdims=True)
        p = jnp.exp(s)
        p = p * pl.reciprocal(jnp.sum(p, axis=-1, keepdims=True), approx=True)

        # merge P's head blocks BEFORE the V matmul (off-head entries are exact zeros,
        # so the sublane block-sum picks exactly one nonzero per column)
        pm = p[0:TOKENS, :]
        for hh in range(1, NHEAD):
            pm = pm + p[hh * TOKENS:(hh + 1) * TOKENS, :]                  # (16, 128)

        attn = jnp.dot(pm, vt, preferred_element_type=jnp.float32)         # (16, 64)
        attn = jnp.dot(attn, wo_ref[l],
                       preferred_element_type=jnp.float32) + vs[0:1, :]
        h = layer_norm(h + attn, vs[1:2, :], vs[2:3, :])

        # ---- feed forward (relu) ----
        ff = jnp.dot(h, f1w_ref[l], preferred_element_type=jnp.float32) + f1b_ref[l]
        ff = jnp.maximum(ff, 0.0)
        ff = jnp.dot(ff, f2w_ref[l], preferred_element_type=jnp.float32) + vs[5:6, :]
        h = layer_norm(h + ff, vs[3:4, :], vs[4:5, :])

    # output[:, -1, :] == last *batch* element: seq-major rows t = s*BATCH + (BATCH-1).
    # Compact them with a tiny 0/1 selection matmul (no strided / XLU slicing needed).
    r = jax.lax.broadcasted_iota(jnp.int32, (SEQ, TOKENS), 0)
    c = jax.lax.broadcasted_iota(jnp.int32, (SEQ, TOKENS), 1)
    sel = (c == r * BATCH + (BATCH - 1)).astype(jnp.float32)               # (SEQ, 16)
    last = jnp.dot(sel, h, preferred_element_type=jnp.float32)             # (SEQ, 64)
    o_ref[...] = jnp.dot(last, wout_ref[...],
                         preferred_element_type=jnp.float32) + bout_ref[...]


def prepare_kernel_params(params, pe):
    """One-time (outside jit) packing: pre-transpose weights, build slabs and masks."""
    L = NUM_LAYERS

    # positional encoding broadcast to seq-major token rows + input-projection bias
    pe_b = (jnp.broadcast_to(pe[:SEQ, None, :], (SEQ, BATCH, D_MODEL))
            .reshape(TOKENS, D_MODEL) + params['b_in']).astype(jnp.float32)

    # per-layer small vectors packed into one lane-dense slab (L, 8, 64)
    vec_slab = jnp.stack(
        [params['out_b'], params['ln1_w'], params['ln1_b'],
         params['ln2_w'], params['ln2_b'], params['f2_b']], axis=1)        # (L, 6, 64)
    vec_slab = jnp.pad(vec_slab, ((0, 0), (0, 2), (0, 0)))                  # (L, 8, 64)

    # attention masks for the fused block-diagonal attention
    row = jnp.arange(ROWS)
    same_head = (row[:, None] // TOKENS) == (row[None, :] // TOKENS)
    same_batch = (row[:, None] % BATCH) == (row[None, :] % BATCH)
    attn_bias = jnp.where(same_head & same_batch, 0.0, NEG_INF).astype(jnp.float32)
    dcol = jnp.arange(D_MODEL)
    head_mask = ((row[:, None] // TOKENS) ==
                 (dcol[None, :] // HEAD_DIM)).astype(jnp.float32)          # (128, 64)

    return (
        pe_b,                                                  # (16, 64)
        params['w_in'].T,                                      # (16, 64)
        jnp.transpose(params['in_w'], (0, 2, 1)),              # (L, 64, 192)
        params['in_b'].reshape(L, 1, 3 * D_MODEL),             # (L, 1, 192)
        jnp.transpose(params['out_w'], (0, 2, 1)),             # (L, 64, 64)
        vec_slab,                                              # (L, 8, 64)
        jnp.transpose(params['f1_w'], (0, 2, 1)),              # (L, 64, 256)
        params['f1_b'].reshape(L, 1, D_FF),                    # (L, 1, 256)
        jnp.transpose(params['f2_w'], (0, 2, 1)),              # (L, 256, 64)
        attn_bias,                                             # (128, 128)
        head_mask,                                             # (128, 64)
        params['w_out'].T,                                     # (64, 32)
        params['b_out'].reshape(1, OUT_DIM),                   # (1, 32)
    )


@jax.jit
def transformer_forward(src, kparams):
    """src: (SEQ, BATCH, INPUT_SIZE) f32 -> (SEQ, OUTPUT_LENGTH, OUTPUT_SIZE)."""
    x_flat = src.reshape(TOKENS, INPUT_SIZE)        # free reshape (seq-major rows)
    args = (x_flat,) + tuple(kparams)

    out = pl.pallas_call(
        _transformer_kernel,
        out_shape=jax.ShapeDtypeStruct((SEQ, OUT_DIM), jnp.float32),
        in_specs=[pl.BlockSpec(memory_space=pltpu.MemorySpace.VMEM) for _ in args],
        out_specs=pl.BlockSpec(memory_space=pltpu.MemorySpace.VMEM),
    )(*args)
    return out.reshape(-1, OUTPUT_LENGTH, OUTPUT_SIZE)


def make_pe(max_len, d_model):
    position = jnp.arange(max_len, dtype=jnp.float32)[:, None]
    div_term = jnp.exp(jnp.arange(0, d_model, 2, dtype=jnp.float32) *
                       (-math.log(10000.0) / d_model))
    sin = jnp.sin(position * div_term)
    cos = jnp.cos(position * div_term)
    return jnp.stack([sin, cos], axis=-1).reshape(max_len, d_model)


def init_params(key):
    ks = jax.random.split(key, 12)

    def w(k, shape, scale=0.1):
        return scale * jax.random.normal(k, shape, dtype=jnp.float32)

    return dict(
        w_in=w(ks[0], (D_MODEL, INPUT_SIZE)),
        b_in=w(ks[1], (D_MODEL,), 0.02),
        in_w=w(ks[2], (NUM_LAYERS, 3 * D_MODEL, D_MODEL)),
        in_b=w(ks[3], (NUM_LAYERS, 3 * D_MODEL), 0.02),
        out_w=w(ks[4], (NUM_LAYERS, D_MODEL, D_MODEL)),
        out_b=w(ks[5], (NUM_LAYERS, D_MODEL), 0.02),
        ln1_w=jnp.ones((NUM_LAYERS, D_MODEL), jnp.float32),
        ln1_b=jnp.zeros((NUM_LAYERS, D_MODEL), jnp.float32),
        ln2_w=jnp.ones((NUM_LAYERS, D_MODEL), jnp.float32),
        ln2_b=jnp.zeros((NUM_LAYERS, D_MODEL), jnp.float32),
        f1_w=w(ks[6], (NUM_LAYERS, D_FF, D_MODEL)),
        f1_b=w(ks[7], (NUM_LAYERS, D_FF), 0.02),
        f2_w=w(ks[8], (NUM_LAYERS, D_MODEL, D_FF)),
        f2_b=w(ks[9], (NUM_LAYERS, D_MODEL), 0.02),
        w_out=w(ks[10], (OUT_DIM, D_MODEL)),
        b_out=w(ks[11], (OUT_DIM,), 0.02),
    )


def reference_forward(src, params, pe):
    """Pure-JAX reference matching the PyTorch forward semantics exactly."""
    P = jax.lax.Precision.HIGHEST

    def ln(h, w, b):
        mu = jnp.mean(h, axis=-1, keepdims=True)
        var = jnp.mean((h - mu) ** 2, axis=-1, keepdims=True)
        return (h - mu) / jnp.sqrt(var + EPS) * w + b

    h = jnp.einsum('snd,md->snm', src, params['w_in'], precision=P) + params['b_in']
    h = h + pe[:src.shape[0], None, :]
    scale = 1.0 / math.sqrt(HEAD_DIM)
    Ssz, Nsz = src.shape[0], src.shape[1]
    for l in range(NUM_LAYERS):
        qkv = jnp.einsum('snd,md->snm', h, params['in_w'][l], precision=P) + params['in_b'][l]
        q = qkv[..., :D_MODEL].reshape(Ssz, Nsz, NHEAD, HEAD_DIM) * scale
        k = qkv[..., D_MODEL:2 * D_MODEL].reshape(Ssz, Nsz, NHEAD, HEAD_DIM)
        v = qkv[..., 2 * D_MODEL:].reshape(Ssz, Nsz, NHEAD, HEAD_DIM)
        sc = jnp.einsum('snhd,tnhd->nhst', q, k, precision=P)
        p = jax.nn.softmax(sc, axis=-1)
        ao = jnp.einsum('nhst,tnhd->snhd', p, v, precision=P).reshape(Ssz, Nsz, D_MODEL)
        ao = jnp.einsum('snd,md->snm', ao, params['out_w'][l], precision=P) + params['out_b'][l]
        h = ln(h + ao, params['ln1_w'][l], params['ln1_b'][l])
        ff = jnp.einsum('snd,md->snm', h, params['f1_w'][l], precision=P) + params['f1_b'][l]
        ff = jnp.maximum(ff, 0.0)
        ff = jnp.einsum('snd,md->snm', ff, params['f2_w'][l], precision=P) + params['f2_b'][l]
        h = ln(h + ff, params['ln2_w'][l], params['ln2_b'][l])
    last = h[:, -1, :]
    out = jnp.einsum('sd,md->sm', last, params['w_out'], precision=P) + params['b_out']
    return out.reshape(-1, OUTPUT_LENGTH, OUTPUT_SIZE)


if __name__ == "__main__":
    key = jax.random.PRNGKey(0)
    k_x, k_p = jax.random.split(key)
    src = jax.random.normal(k_x, (SEQ, BATCH, INPUT_SIZE), dtype=jnp.float32)
    params = init_params(k_p)
    pe = make_pe(SEQ, D_MODEL)

    # one-time parameter packing / pre-transposition (outside the timed path)
    kparams = prepare_kernel_params(params, pe)

    out = jax.block_until_ready(transformer_forward(src, kparams))
    assert out.shape == (SEQ, OUTPUT_LENGTH, OUTPUT_SIZE), out.shape

    ref = jax.block_until_ready(reference_forward(src, params, pe))
    np.testing.assert_allclose(np.asarray(out), np.asarray(ref), rtol=5e-3, atol=5e-3)

    print("KERNEL_OK")
</pallas_src>

<mosaic_0001>
module attributes {stable_mosaic.version = 11 : i64} {
  func.func @_transformer_kernel(%arg0: memref<16x16xf32, #tpu.memory_space<vmem>>, %arg1: memref<16x64xf32, #tpu.memory_space<vmem>>, %arg2: memref<16x64xf32, #tpu.memory_space<vmem>>, %arg3: memref<3x64x192xf32, #tpu.memory_space<vmem>>, %arg4: memref<3x1x192xf32, #tpu.memory_space<vmem>>, %arg5: memref<3x64x64xf32, #tpu.memory_space<vmem>>, %arg6: memref<3x8x64xf32, #tpu.memory_space<vmem>>, %arg7: memref<3x64x256xf32, #tpu.memory_space<vmem>>, %arg8: memref<3x1x256xf32, #tpu.memory_space<vmem>>, %arg9: memref<3x256x64xf32, #tpu.memory_space<vmem>>, %arg10: memref<128x128xf32, #tpu.memory_space<vmem>>, %arg11: memref<128x64xf32, #tpu.memory_space<vmem>>, %arg12: memref<64x32xf32, #tpu.memory_space<vmem>>, %arg13: memref<1x32xf32, #tpu.memory_space<vmem>>, %arg14: memref<8x32xf32, #tpu.memory_space<vmem>>) attributes {dimension_semantics = [], scalar_prefetch = 0 : i64, scratch_operands = 0 : i64, tpu.core_type = #tpu.core_type<tc>} {
    %c0 = arith.constant 0 : index
    %c0_0 = arith.constant 0 : index
    %0 = vector.load %arg0[%c0, %c0_0] : memref<16x16xf32, #tpu.memory_space<vmem>>, vector<16x16xf32>
    %c0_1 = arith.constant 0 : index
    %c0_2 = arith.constant 0 : index
    %1 = vector.load %arg2[%c0_1, %c0_2] : memref<16x64xf32, #tpu.memory_space<vmem>>, vector<16x64xf32>
    %cst = arith.constant dense<0.000000e+00> : vector<16x64xf32>
    %2 = tpu.matmul %0, %1, %cst {dimension_numbers = #tpu.dot_dimension_numbers<[1], [0], [0], [1], [0, 0, 1, 1], [], []>} : vector<16x16xf32>, vector<16x64xf32>, vector<16x64xf32> -> vector<16x64xf32>
    %c0_3 = arith.constant 0 : index
    %c0_4 = arith.constant 0 : index
    %3 = vector.load %arg1[%c0_3, %c0_4] : memref<16x64xf32, #tpu.memory_space<vmem>>, vector<16x64xf32>
    %4 = arith.addf %2, %3 : vector<16x64xf32>
    %c0_5 = arith.constant 0 : index
    %c0_6 = arith.constant 0 : index
    %c0_7 = arith.constant 0 : index
    %5 = vector.load %arg6[%c0_5, %c0_6, %c0_7] : memref<3x8x64xf32, #tpu.memory_space<vmem>>, vector<1x8x64xf32>
    %6 = vector.shape_cast %5 : vector<1x8x64xf32> to vector<8x64xf32>
    %c0_8 = arith.constant 0 : index
    %c0_9 = arith.constant 0 : index
    %c0_10 = arith.constant 0 : index
    %7 = vector.load %arg3[%c0_8, %c0_9, %c0_10] : memref<3x64x192xf32, #tpu.memory_space<vmem>>, vector<1x64x192xf32>
    %8 = vector.shape_cast %7 : vector<1x64x192xf32> to vector<64x192xf32>
    %cst_11 = arith.constant dense<0.000000e+00> : vector<16x192xf32>
    %9 = tpu.matmul %4, %8, %cst_11 {dimension_numbers = #tpu.dot_dimension_numbers<[1], [0], [0], [1], [0, 0, 1, 1], [], []>} : vector<16x64xf32>, vector<64x192xf32>, vector<16x192xf32> -> vector<16x192xf32>
    %c0_12 = arith.constant 0 : index
    %c0_13 = arith.constant 0 : index
    %c0_14 = arith.constant 0 : index
    %10 = vector.load %arg4[%c0_12, %c0_13, %c0_14] : memref<3x1x192xf32, #tpu.memory_space<vmem>>, vector<1x1x192xf32>
    %11 = vector.shape_cast %10 : vector<1x1x192xf32> to vector<1x192xf32>
    %12 = vector.broadcast %11 : vector<1x192xf32> to vector<16x192xf32>
    %13 = arith.addf %9, %12 : vector<16x192xf32>
    %14 = vector.extract_strided_slice %13 {offsets = [0, 0], sizes = [16, 64], strides = [1, 1]} : vector<16x192xf32> to vector<16x64xf32>
    %cst_15 = arith.constant 0.353553385 : f32
    %15 = vector.broadcast %cst_15 : f32 to vector<16x64xf32>
    %16 = arith.mulf %14, %15 : vector<16x64xf32>
    %17 = vector.extract_strided_slice %13 {offsets = [0, 64], sizes = [16, 64], strides = [1, 1]} : vector<16x192xf32> to vector<16x64xf32>
    %18 = vector.extract_strided_slice %13 {offsets = [0, 128], sizes = [16, 64], strides = [1, 1]} : vector<16x192xf32> to vector<16x64xf32>
    %c0_16 = arith.constant 0 : index
    %c0_17 = arith.constant 0 : index
    %19 = vector.load %arg11[%c0_16, %c0_17] : memref<128x64xf32, #tpu.memory_space<vmem>>, vector<128x64xf32>
    %20 = tpu.concatenate %17, %17, %17, %17, %17, %17, %17, %17 in 0 : vector<16x64xf32>, vector<16x64xf32>, vector<16x64xf32>, vector<16x64xf32>, vector<16x64xf32>, vector<16x64xf32>, vector<16x64xf32>, vector<16x64xf32> -> vector<128x64xf32>
    %21 = arith.mulf %20, %19 : vector<128x64xf32>
    %22 = tpu.concatenate %18, %18, %18, %18, %18, %18, %18, %18 in 0 : vector<16x64xf32>, vector<16x64xf32>, vector<16x64xf32>, vector<16x64xf32>, vector<16x64xf32>, vector<16x64xf32>, vector<16x64xf32>, vector<16x64xf32> -> vector<128x64xf32>
    %23 = arith.mulf %22, %19 : vector<128x64xf32>
    %cst_18 = arith.constant dense<0.000000e+00> : vector<16x128xf32>
    %24 = tpu.matmul %16, %21, %cst_18 {dimension_numbers = #tpu.dot_dimension_numbers<[1], [1], [0], [0], [0, 0, 1, 0], [], []>} : vector<16x64xf32>, vector<128x64xf32>, vector<16x128xf32> -> vector<16x128xf32>
    %25 = tpu.concatenate %24, %24, %24, %24, %24, %24, %24, %24 in 0 : vector<16x128xf32>, vector<16x128xf32>, vector<16x128xf32>, vector<16x128xf32>, vector<16x128xf32>, vector<16x128xf32>, vector<16x128xf32>, vector<16x128xf32> -> vector<128x128xf32>
    %c0_19 = arith.constant 0 : index
    %c0_20 = arith.constant 0 : index
    %26 = vector.load %arg10[%c0_19, %c0_20] : memref<128x128xf32, #tpu.memory_space<vmem>>, vector<128x128xf32>
    %27 = arith.addf %25, %26 : vector<128x128xf32>
    %cst_21 = arith.constant dense<0xFF800000> : vector<128xf32>
    %28 = vector.multi_reduction <maximumf>, %27, %cst_21 [1] : vector<128x128xf32> to vector<128xf32>
    %29 = vector.shape_cast %28 : vector<128xf32> to vector<128x1xf32>
    %30 = vector.broadcast %29 : vector<128x1xf32> to vector<128x128xf32>
    %31 = arith.subf %27, %30 : vector<128x128xf32>
    %32 = math.exp %31 : vector<128x128xf32>
    %cst_22 = arith.constant dense<0.000000e+00> : vector<128xf32>
    %33 = vector.multi_reduction <add>, %32, %cst_22 [1] : vector<128x128xf32> to vector<128xf32>
    %34 = vector.shape_cast %33 : vector<128xf32> to vector<128x1xf32>
    %35 = tpu.reciprocal %34 {approx = true} : vector<128x1xf32> -> vector<128x1xf32>
    %36 = vector.broadcast %35 : vector<128x1xf32> to vector<128x128xf32>
    %37 = arith.mulf %32, %36 : vector<128x128xf32>
    %38 = vector.extract_strided_slice %37 {offsets = [0, 0], sizes = [16, 128], strides = [1, 1]} : vector<128x128xf32> to vector<16x128xf32>
    %39 = vector.extract_strided_slice %37 {offsets = [16, 0], sizes = [16, 128], strides = [1, 1]} : vector<128x128xf32> to vector<16x128xf32>
    %40 = arith.addf %38, %39 : vector<16x128xf32>
    %41 = vector.extract_strided_slice %37 {offsets = [32, 0], sizes = [16, 128], strides = [1, 1]} : vector<128x128xf32> to vector<16x128xf32>
    %42 = arith.addf %40, %41 : vector<16x128xf32>
    %43 = vector.extract_strided_slice %37 {offsets = [48, 0], sizes = [16, 128], strides = [1, 1]} : vector<128x128xf32> to vector<16x128xf32>
    %44 = arith.addf %42, %43 : vector<16x128xf32>
    %45 = vector.extract_strided_slice %37 {offsets = [64, 0], sizes = [16, 128], strides = [1, 1]} : vector<128x128xf32> to vector<16x128xf32>
    %46 = arith.addf %44, %45 : vector<16x128xf32>
    %47 = vector.extract_strided_slice %37 {offsets = [80, 0], sizes = [16, 128], strides = [1, 1]} : vector<128x128xf32> to vector<16x128xf32>
    %48 = arith.addf %46, %47 : vector<16x128xf32>
    %49 = vector.extract_strided_slice %37 {offsets = [96, 0], sizes = [16, 128], strides = [1, 1]} : vector<128x128xf32> to vector<16x128xf32>
    %50 = arith.addf %48, %49 : vector<16x128xf32>
    %51 = vector.extract_strided_slice %37 {offsets = [112, 0], sizes = [16, 128], strides = [1, 1]} : vector<128x128xf32> to vector<16x128xf32>
    %52 = arith.addf %50, %51 : vector<16x128xf32>
    %cst_23 = arith.constant dense<0.000000e+00> : vector<16x64xf32>
    %53 = tpu.matmul %52, %23, %cst_23 {dimension_numbers = #tpu.dot_dimension_numbers<[1], [0], [0], [1], [0, 0, 1, 1], [], []>} : vector<16x128xf32>, vector<128x64xf32>, vector<16x64xf32> -> vector<16x64xf32>
    %c0_24 = arith.constant 0 : index
    %c0_25 = arith.constant 0 : index
    %c0_26 = arith.constant 0 : index
    %54 = vector.load %arg5[%c0_24, %c0_25, %c0_26] : memref<3x64x64xf32, #tpu.memory_space<vmem>>, vector<1x64x64xf32>
    %55 = vector.shape_cast %54 : vector<1x64x64xf32> to vector<64x64xf32>
    %cst_27 = arith.constant dense<0.000000e+00> : vector<16x64xf32>
    %56 = tpu.matmul %53, %55, %cst_27 {dimension_numbers = #tpu.dot_dimension_numbers<[1], [0], [0], [1], [0, 0, 1, 1], [], []>} : vector<16x64xf32>, vector<64x64xf32>, vector<16x64xf32> -> vector<16x64xf32>
    %57 = vector.extract_strided_slice %6 {offsets = [0, 0], sizes = [1, 64], strides = [1, 1]} : vector<8x64xf32> to vector<1x64xf32>
    %58 = vector.broadcast %57 : vector<1x64xf32> to vector<16x64xf32>
    %59 = arith.addf %56, %58 : vector<16x64xf32>
    %60 = arith.addf %4, %59 : vector<16x64xf32>
    %61 = vector.extract_strided_slice %6 {offsets = [1, 0], sizes = [1, 64], strides = [1, 1]} : vector<8x64xf32> to vector<1x64xf32>
    %62 = vector.extract_strided_slice %6 {offsets = [2, 0], sizes = [1, 64], strides = [1, 1]} : vector<8x64xf32> to vector<1x64xf32>
    %cst_28 = arith.constant dense<0.000000e+00> : vector<16xf32>
    %63 = vector.multi_reduction <add>, %60, %cst_28 [1] : vector<16x64xf32> to vector<16xf32>
    %64 = vector.shape_cast %63 : vector<16xf32> to vector<16x1xf32>
    %cst_29 = arith.constant 1.562500e-02 : f32
    %65 = vector.broadcast %cst_29 : f32 to vector<16x1xf32>
    %66 = arith.mulf %64, %65 : vector<16x1xf32>
    %67 = arith.mulf %60, %60 : vector<16x64xf32>
    %cst_30 = arith.constant dense<0.000000e+00> : vector<16xf32>
    %68 = vector.multi_reduction <add>, %67, %cst_30 [1] : vector<16x64xf32> to vector<16xf32>
    %69 = vector.shape_cast %68 : vector<16xf32> to vector<16x1xf32>
    %cst_31 = arith.constant 1.562500e-02 : f32
    %70 = vector.broadcast %cst_31 : f32 to vector<16x1xf32>
    %71 = arith.mulf %69, %70 : vector<16x1xf32>
    %72 = arith.mulf %66, %66 : vector<16x1xf32>
    %73 = arith.subf %71, %72 : vector<16x1xf32>
    %74 = vector.broadcast %66 : vector<16x1xf32> to vector<16x64xf32>
    %75 = arith.subf %60, %74 : vector<16x64xf32>
    %cst_32 = arith.constant 9.99999974E-6 : f32
    %76 = vector.broadcast %cst_32 : f32 to vector<16x1xf32>
    %77 = arith.addf %73, %76 : vector<16x1xf32>
    %78 = math.rsqrt %77 : vector<16x1xf32>
    %79 = vector.broadcast %78 : vector<16x1xf32> to vector<16x64xf32>
    %80 = arith.mulf %75, %79 : vector<16x64xf32>
    %81 = vector.broadcast %61 : vector<1x64xf32> to vector<16x64xf32>
    %82 = arith.mulf %80, %81 : vector<16x64xf32>
    %83 = vector.broadcast %62 : vector<1x64xf32> to vector<16x64xf32>
    %84 = arith.addf %82, %83 : vector<16x64xf32>
    %c0_33 = arith.constant 0 : index
    %c0_34 = arith.constant 0 : index
    %c0_35 = arith.constant 0 : index
    %85 = vector.load %arg7[%c0_33, %c0_34, %c0_35] : memref<3x64x256xf32, #tpu.memory_space<vmem>>, vector<1x64x256xf32>
    %86 = vector.shape_cast %85 : vector<1x64x256xf32> to vector<64x256xf32>
    %cst_36 = arith.constant dense<0.000000e+00> : vector<16x256xf32>
    %87 = tpu.matmul %84, %86, %cst_36 {dimension_numbers = #tpu.dot_dimension_numbers<[1], [0], [0], [1], [0, 0, 1, 1], [], []>} : vector<16x64xf32>, vector<64x256xf32>, vector<16x256xf32> -> vector<16x256xf32>
    %c0_37 = arith.constant 0 : index
    %c0_38 = arith.constant 0 : index
    %c0_39 = arith.constant 0 : index
    %88 = vector.load %arg8[%c0_37, %c0_38, %c0_39] : memref<3x1x256xf32, #tpu.memory_space<vmem>>, vector<1x1x256xf32>
    %89 = vector.shape_cast %88 : vector<1x1x256xf32> to vector<1x256xf32>
    %90 = vector.broadcast %89 : vector<1x256xf32> to vector<16x256xf32>
    %91 = arith.addf %87, %90 : vector<16x256xf32>
    %cst_40 = arith.constant 0.000000e+00 : f32
    %92 = vector.broadcast %cst_40 : f32 to vector<16x256xf32>
    %93 = arith.maximumf %91, %92 : vector<16x256xf32>
    %c0_41 = arith.constant 0 : index
    %c0_42 = arith.constant 0 : index
    %c0_43 = arith.constant 0 : index
    %94 = vector.load %arg9[%c0_41, %c0_42, %c0_43] : memref<3x256x64xf32, #tpu.memory_space<vmem>>, vector<1x256x64xf32>
    %95 = vector.shape_cast %94 : vector<1x256x64xf32> to vector<256x64xf32>
    %cst_44 = arith.constant dense<0.000000e+00> : vector<16x64xf32>
    %96 = tpu.matmul %93, %95, %cst_44 {dimension_numbers = #tpu.dot_dimension_numbers<[1], [0], [0], [1], [0, 0, 1, 1], [], []>} : vector<16x256xf32>, vector<256x64xf32>, vector<16x64xf32> -> vector<16x64xf32>
    %97 = vector.extract_strided_slice %6 {offsets = [5, 0], sizes = [1, 64], strides = [1, 1]} : vector<8x64xf32> to vector<1x64xf32>
    %98 = vector.broadcast %97 : vector<1x64xf32> to vector<16x64xf32>
    %99 = arith.addf %96, %98 : vector<16x64xf32>
    %100 = arith.addf %84, %99 : vector<16x64xf32>
    %101 = vector.extract_strided_slice %6 {offsets = [3, 0], sizes = [1, 64], strides = [1, 1]} : vector<8x64xf32> to vector<1x64xf32>
    %102 = vector.extract_strided_slice %6 {offsets = [4, 0], sizes = [1, 64], strides = [1, 1]} : vector<8x64xf32> to vector<1x64xf32>
    %cst_45 = arith.constant dense<0.000000e+00> : vector<16xf32>
    %103 = vector.multi_reduction <add>, %100, %cst_45 [1] : vector<16x64xf32> to vector<16xf32>
    %104 = vector.shape_cast %103 : vector<16xf32> to vector<16x1xf32>
    %cst_46 = arith.constant 1.562500e-02 : f32
    %105 = vector.broadcast %cst_46 : f32 to vector<16x1xf32>
    %106 = arith.mulf %104, %105 : vector<16x1xf32>
    %107 = arith.mulf %100, %100 : vector<16x64xf32>
    %cst_47 = arith.constant dense<0.000000e+00> : vector<16xf32>
    %108 = vector.multi_reduction <add>, %107, %cst_47 [1] : vector<16x64xf32> to vector<16xf32>
    %109 = vector.shape_cast %108 : vector<16xf32> to vector<16x1xf32>
    %cst_48 = arith.constant 1.562500e-02 : f32
    %110 = vector.broadcast %cst_48 : f32 to vector<16x1xf32>
    %111 = arith.mulf %109, %110 : vector<16x1xf32>
    %112 = arith.mulf %106, %106 : vector<16x1xf32>
    %113 = arith.subf %111, %112 : vector<16x1xf32>
    %114 = vector.broadcast %106 : vector<16x1xf32> to vector<16x64xf32>
    %115 = arith.subf %100, %114 : vector<16x64xf32>
    %cst_49 = arith.constant 9.99999974E-6 : f32
    %116 = vector.broadcast %cst_49 : f32 to vector<16x1xf32>
    %117 = arith.addf %113, %116 : vector<16x1xf32>
    %118 = math.rsqrt %117 : vector<16x1xf32>
    %119 = vector.broadcast %118 : vector<16x1xf32> to vector<16x64xf32>
    %120 = arith.mulf %115, %119 : vector<16x64xf32>
    %121 = vector.broadcast %101 : vector<1x64xf32> to vector<16x64xf32>
    %122 = arith.mulf %120, %121 : vector<16x64xf32>
    %123 = vector.broadcast %102 : vector<1x64xf32> to vector<16x64xf32>
    %124 = arith.addf %122, %123 : vector<16x64xf32>
    %c1 = arith.constant 1 : index
    %c0_50 = arith.constant 0 : index
    %c0_51 = arith.constant 0 : index
    %125 = vector.load %arg6[%c1, %c0_50, %c0_51] : memref<3x8x64xf32, #tpu.memory_space<vmem>>, vector<1x8x64xf32>
    %126 = vector.shape_cast %125 : vector<1x8x64xf32> to vector<8x64xf32>
    %c1_52 = arith.constant 1 : index
    %c0_53 = arith.constant 0 : index
    %c0_54 = arith.constant 0 : index
    %127 = vector.load %arg3[%c1_52, %c0_53, %c0_54] : memref<3x64x192xf32, #tpu.memory_space<vmem>>, vector<1x64x192xf32>
    %128 = vector.shape_cast %127 : vector<1x64x192xf32> to vector<64x192xf32>
    %cst_55 = arith.constant dense<0.000000e+00> : vector<16x192xf32>
    %129 = tpu.matmul %124, %128, %cst_55 {dimension_numbers = #tpu.dot_dimension_numbers<[1], [0], [0], [1], [0, 0, 1, 1], [], []>} : vector<16x64xf32>, vector<64x192xf32>, vector<16x192xf32> -> vector<16x192xf32>
    %c1_56 = arith.constant 1 : index
    %c0_57 = arith.constant 0 : index
    %c0_58 = arith.constant 0 : index
    %130 = vector.load %arg4[%c1_56, %c0_57, %c0_58] : memref<3x1x192xf32, #tpu.memory_space<vmem>>, vector<1x1x192xf32>
    %131 = vector.shape_cast %130 : vector<1x1x192xf32> to vector<1x192xf32>
    %132 = vector.broadcast %131 : vector<1x192xf32> to vector<16x192xf32>
    %133 = arith.addf %129, %132 : vector<16x192xf32>
    %134 = vector.extract_strided_slice %133 {offsets = [0, 0], sizes = [16, 64], strides = [1, 1]} : vector<16x192xf32> to vector<16x64xf32>
    %cst_59 = arith.constant 0.353553385 : f32
    %135 = vector.broadcast %cst_59 : f32 to vector<16x64xf32>
    %136 = arith.mulf %134, %135 : vector<16x64xf32>
    %137 = vector.extract_strided_slice %133 {offsets = [0, 64], sizes = [16, 64], strides = [1, 1]} : vector<16x192xf32> to vector<16x64xf32>
    %138 = vector.extract_strided_slice %133 {offsets = [0, 128], sizes = [16, 64], strides = [1, 1]} : vector<16x192xf32> to vector<16x64xf32>
    %c0_60 = arith.constant 0 : index
    %c0_61 = arith.constant 0 : index
    %139 = vector.load %arg11[%c0_60, %c0_61] : memref<128x64xf32, #tpu.memory_space<vmem>>, vector<128x64xf32>
    %140 = tpu.concatenate %137, %137, %137, %137, %137, %137, %137, %137 in 0 : vector<16x64xf32>, vector<16x64xf32>, vector<16x64xf32>, vector<16x64xf32>, vector<16x64xf32>, vector<16x64xf32>, vector<16x64xf32>, vector<16x64xf32> -> vector<128x64xf32>
    %141 = arith.mulf %140, %139 : vector<128x64xf32>
    %142 = tpu.concatenate %138, %138, %138, %138, %138, %138, %138, %138 in 0 : vector<16x64xf32>, vector<16x64xf32>, vector<16x64xf32>, vector<16x64xf32>, vector<16x64xf32>, vector<16x64xf32>, vector<16x64xf32>, vector<16x64xf32> -> vector<128x64xf32>
    %143 = arith.mulf %142, %139 : vector<128x64xf32>
    %cst_62 = arith.constant dense<0.000000e+00> : vector<16x128xf32>
    %144 = tpu.matmul %136, %141, %cst_62 {dimension_numbers = #tpu.dot_dimension_numbers<[1], [1], [0], [0], [0, 0, 1, 0], [], []>} : vector<16x64xf32>, vector<128x64xf32>, vector<16x128xf32> -> vector<16x128xf32>
    %145 = tpu.concatenate %144, %144, %144, %144, %144, %144, %144, %144 in 0 : vector<16x128xf32>, vector<16x128xf32>, vector<16x128xf32>, vector<16x128xf32>, vector<16x128xf32>, vector<16x128xf32>, vector<16x128xf32>, vector<16x128xf32> -> vector<128x128xf32>
    %c0_63 = arith.constant 0 : index
    %c0_64 = arith.constant 0 : index
    %146 = vector.load %arg10[%c0_63, %c0_64] : memref<128x128xf32, #tpu.memory_space<vmem>>, vector<128x128xf32>
    %147 = arith.addf %145, %146 : vector<128x128xf32>
    %cst_65 = arith.constant dense<0xFF800000> : vector<128xf32>
    %148 = vector.multi_reduction <maximumf>, %147, %cst_65 [1] : vector<128x128xf32> to vector<128xf32>
    %149 = vector.shape_cast %148 : vector<128xf32> to vector<128x1xf32>
    %150 = vector.broadcast %149 : vector<128x1xf32> to vector<128x128xf32>
    %151 = arith.subf %147, %150 : vector<128x128xf32>
    %152 = math.exp %151 : vector<128x128xf32>
    %cst_66 = arith.constant dense<0.000000e+00> : vector<128xf32>
    %153 = vector.multi_reduction <add>, %152, %cst_66 [1] : vector<128x128xf32> to vector<128xf32>
    %154 = vector.shape_cast %153 : vector<128xf32> to vector<128x1xf32>
    %155 = tpu.reciprocal %154 {approx = true} : vector<128x1xf32> -> vector<128x1xf32>
    %156 = vector.broadcast %155 : vector<128x1xf32> to vector<128x128xf32>
    %157 = arith.mulf %152, %156 : vector<128x128xf32>
    %158 = vector.extract_strided_slice %157 {offsets = [0, 0], sizes = [16, 128], strides = [1, 1]} : vector<128x128xf32> to vector<16x128xf32>
    %159 = vector.extract_strided_slice %157 {offsets = [16, 0], sizes = [16, 128], strides = [1, 1]} : vector<128x128xf32> to vector<16x128xf32>
    %160 = arith.addf %158, %159 : vector<16x128xf32>
    %161 = vector.extract_strided_slice %157 {offsets = [32, 0], sizes = [16, 128], strides = [1, 1]} : vector<128x128xf32> to vector<16x128xf32>
    %162 = arith.addf %160, %161 : vector<16x128xf32>
    %163 = vector.extract_strided_slice %157 {offsets = [48, 0], sizes = [16, 128], strides = [1, 1]} : vector<128x128xf32> to vector<16x128xf32>
    %164 = arith.addf %162, %163 : vector<16x128xf32>
    %165 = vector.extract_strided_slice %157 {offsets = [64, 0], sizes = [16, 128], strides = [1, 1]} : vector<128x128xf32> to vector<16x128xf32>
    %166 = arith.addf %164, %165 : vector<16x128xf32>
    %167 = vector.extract_strided_slice %157 {offsets = [80, 0], sizes = [16, 128], strides = [1, 1]} : vector<128x128xf32> to vector<16x128xf32>
    %168 = arith.addf %166, %167 : vector<16x128xf32>
    %169 = vector.extract_strided_slice %157 {offsets = [96, 0], sizes = [16, 128], strides = [1, 1]} : vector<128x128xf32> to vector<16x128xf32>
    %170 = arith.addf %168, %169 : vector<16x128xf32>
    %171 = vector.extract_strided_slice %157 {offsets = [112, 0], sizes = [16, 128], strides = [1, 1]} : vector<128x128xf32> to vector<16x128xf32>
    %172 = arith.addf %170, %171 : vector<16x128xf32>
    %cst_67 = arith.constant dense<0.000000e+00> : vector<16x64xf32>
    %173 = tpu.matmul %172, %143, %cst_67 {dimension_numbers = #tpu.dot_dimension_numbers<[1], [0], [0], [1], [0, 0, 1, 1], [], []>} : vector<16x128xf32>, vector<128x64xf32>, vector<16x64xf32> -> vector<16x64xf32>
    %c1_68 = arith.constant 1 : index
    %c0_69 = arith.constant 0 : index
    %c0_70 = arith.constant 0 : index
    %174 = vector.load %arg5[%c1_68, %c0_69, %c0_70] : memref<3x64x64xf32, #tpu.memory_space<vmem>>, vector<1x64x64xf32>
    %175 = vector.shape_cast %174 : vector<1x64x64xf32> to vector<64x64xf32>
    %cst_71 = arith.constant dense<0.000000e+00> : vector<16x64xf32>
    %176 = tpu.matmul %173, %175, %cst_71 {dimension_numbers = #tpu.dot_dimension_numbers<[1], [0], [0], [1], [0, 0, 1, 1], [], []>} : vector<16x64xf32>, vector<64x64xf32>, vector<16x64xf32> -> vector<16x64xf32>
    %177 = vector.extract_strided_slice %126 {offsets = [0, 0], sizes = [1, 64], strides = [1, 1]} : vector<8x64xf32> to vector<1x64xf32>
    %178 = vector.broadcast %177 : vector<1x64xf32> to vector<16x64xf32>
    %179 = arith.addf %176, %178 : vector<16x64xf32>
    %180 = arith.addf %124, %179 : vector<16x64xf32>
    %181 = vector.extract_strided_slice %126 {offsets = [1, 0], sizes = [1, 64], strides = [1, 1]} : vector<8x64xf32> to vector<1x64xf32>
    %182 = vector.extract_strided_slice %126 {offsets = [2, 0], sizes = [1, 64], strides = [1, 1]} : vector<8x64xf32> to vector<1x64xf32>
    %cst_72 = arith.constant dense<0.000000e+00> : vector<16xf32>
    %183 = vector.multi_reduction <add>, %180, %cst_72 [1] : vector<16x64xf32> to vector<16xf32>
    %184 = vector.shape_cast %183 : vector<16xf32> to vector<16x1xf32>
    %cst_73 = arith.constant 1.562500e-02 : f32
    %185 = vector.broadcast %cst_73 : f32 to vector<16x1xf32>
    %186 = arith.mulf %184, %185 : vector<16x1xf32>
    %187 = arith.mulf %180, %180 : vector<16x64xf32>
    %cst_74 = arith.constant dense<0.000000e+00> : vector<16xf32>
    %188 = vector.multi_reduction <add>, %187, %cst_74 [1] : vector<16x64xf32> to vector<16xf32>
    %189 = vector.shape_cast %188 : vector<16xf32> to vector<16x1xf32>
    %cst_75 = arith.constant 1.562500e-02 : f32
    %190 = vector.broadcast %cst_75 : f32 to vector<16x1xf32>
    %191 = arith.mulf %189, %190 : vector<16x1xf32>
    %192 = arith.mulf %186, %186 : vector<16x1xf32>
    %193 = arith.subf %191, %192 : vector<16x1xf32>
    %194 = vector.broadcast %186 : vector<16x1xf32> to vector<16x64xf32>
    %195 = arith.subf %180, %194 : vector<16x64xf32>
    %cst_76 = arith.constant 9.99999974E-6 : f32
    %196 = vector.broadcast %cst_76 : f32 to vector<16x1xf32>
    %197 = arith.addf %193, %196 : vector<16x1xf32>
    %198 = math.rsqrt %197 : vector<16x1xf32>
    %199 = vector.broadcast %198 : vector<16x1xf32> to vector<16x64xf32>
    %200 = arith.mulf %195, %199 : vector<16x64xf32>
    %201 = vector.broadcast %181 : vector<1x64xf32> to vector<16x64xf32>
    %202 = arith.mulf %200, %201 : vector<16x64xf32>
    %203 = vector.broadcast %182 : vector<1x64xf32> to vector<16x64xf32>
    %204 = arith.addf %202, %203 : vector<16x64xf32>
    %c1_77 = arith.constant 1 : index
    %c0_78 = arith.constant 0 : index
    %c0_79 = arith.constant 0 : index
    %205 = vector.load %arg7[%c1_77, %c0_78, %c0_79] : memref<3x64x256xf32, #tpu.memory_space<vmem>>, vector<1x64x256xf32>
    %206 = vector.shape_cast %205 : vector<1x64x256xf32> to vector<64x256xf32>
    %cst_80 = arith.constant dense<0.000000e+00> : vector<16x256xf32>
    %207 = tpu.matmul %204, %206, %cst_80 {dimension_numbers = #tpu.dot_dimension_numbers<[1], [0], [0], [1], [0, 0, 1, 1], [], []>} : vector<16x64xf32>, vector<64x256xf32>, vector<16x256xf32> -> vector<16x256xf32>
    %c1_81 = arith.constant 1 : index
    %c0_82 = arith.constant 0 : index
    %c0_83 = arith.constant 0 : index
    %208 = vector.load %arg8[%c1_81, %c0_82, %c0_83] : memref<3x1x256xf32, #tpu.memory_space<vmem>>, vector<1x1x256xf32>
    %209 = vector.shape_cast %208 : vector<1x1x256xf32> to vector<1x256xf32>
    %210 = vector.broadcast %209 : vector<1x256xf32> to vector<16x256xf32>
    %211 = arith.addf %207, %210 : vector<16x256xf32>
    %cst_84 = arith.constant 0.000000e+00 : f32
    %212 = vector.broadcast %cst_84 : f32 to vector<16x256xf32>
    %213 = arith.maximumf %211, %212 : vector<16x256xf32>
    %c1_85 = arith.constant 1 : index
    %c0_86 = arith.constant 0 : index
    %c0_87 = arith.constant 0 : index
    %214 = vector.load %arg9[%c1_85, %c0_86, %c0_87] : memref<3x256x64xf32, #tpu.memory_space<vmem>>, vector<1x256x64xf32>
    %215 = vector.shape_cast %214 : vector<1x256x64xf32> to vector<256x64xf32>
    %cst_88 = arith.constant dense<0.000000e+00> : vector<16x64xf32>
    %216 = tpu.matmul %213, %215, %cst_88 {dimension_numbers = #tpu.dot_dimension_numbers<[1], [0], [0], [1], [0, 0, 1, 1], [], []>} : vector<16x256xf32>, vector<256x64xf32>, vector<16x64xf32> -> vector<16x64xf32>
    %217 = vector.extract_strided_slice %126 {offsets = [5, 0], sizes = [1, 64], strides = [1, 1]} : vector<8x64xf32> to vector<1x64xf32>
    %218 = vector.broadcast %217 : vector<1x64xf32> to vector<16x64xf32>
    %219 = arith.addf %216, %218 : vector<16x64xf32>
    %220 = arith.addf %204, %219 : vector<16x64xf32>
    %221 = vector.extract_strided_slice %126 {offsets = [3, 0], sizes = [1, 64], strides = [1, 1]} : vector<8x64xf32> to vector<1x64xf32>
    %222 = vector.extract_strided_slice %126 {offsets = [4, 0], sizes = [1, 64], strides = [1, 1]} : vector<8x64xf32> to vector<1x64xf32>
    %cst_89 = arith.constant dense<0.000000e+00> : vector<16xf32>
    %223 = vector.multi_reduction <add>, %220, %cst_89 [1] : vector<16x64xf32> to vector<16xf32>
    %224 = vector.shape_cast %223 : vector<16xf32> to vector<16x1xf32>
    %cst_90 = arith.constant 1.562500e-02 : f32
    %225 = vector.broadcast %cst_90 : f32 to vector<16x1xf32>
    %226 = arith.mulf %224, %225 : vector<16x1xf32>
    %227 = arith.mulf %220, %220 : vector<16x64xf32>
    %cst_91 = arith.constant dense<0.000000e+00> : vector<16xf32>
    %228 = vector.multi_reduction <add>, %227, %cst_91 [1] : vector<16x64xf32> to vector<16xf32>
    %229 = vector.shape_cast %228 : vector<16xf32> to vector<16x1xf32>
    %cst_92 = arith.constant 1.562500e-02 : f32
    %230 = vector.broadcast %cst_92 : f32 to vector<16x1xf32>
    %231 = arith.mulf %229, %230 : vector<16x1xf32>
    %232 = arith.mulf %226, %226 : vector<16x1xf32>
    %233 = arith.subf %231, %232 : vector<16x1xf32>
    %234 = vector.broadcast %226 : vector<16x1xf32> to vector<16x64xf32>
    %235 = arith.subf %220, %234 : vector<16x64xf32>
    %cst_93 = arith.constant 9.99999974E-6 : f32
    %236 = vector.broadcast %cst_93 : f32 to vector<16x1xf32>
    %237 = arith.addf %233, %236 : vector<16x1xf32>
    %238 = math.rsqrt %237 : vector<16x1xf32>
    %239 = vector.broadcast %238 : vector<16x1xf32> to vector<16x64xf32>
    %240 = arith.mulf %235, %239 : vector<16x64xf32>
    %241 = vector.broadcast %221 : vector<1x64xf32> to vector<16x64xf32>
    %242 = arith.mulf %240, %241 : vector<16x64xf32>
    %243 = vector.broadcast %222 : vector<1x64xf32> to vector<16x64xf32>
    %244 = arith.addf %242, %243 : vector<16x64xf32>
    %c2 = arith.constant 2 : index
    %c0_94 = arith.constant 0 : index
    %c0_95 = arith.constant 0 : index
    %245 = vector.load %arg6[%c2, %c0_94, %c0_95] : memref<3x8x64xf32, #tpu.memory_space<vmem>>, vector<1x8x64xf32>
    %246 = vector.shape_cast %245 : vector<1x8x64xf32> to vector<8x64xf32>
    %c2_96 = arith.constant 2 : index
    %c0_97 = arith.constant 0 : index
    %c0_98 = arith.constant 0 : index
    %247 = vector.load %arg3[%c2_96, %c0_97, %c0_98] : memref<3x64x192xf32, #tpu.memory_space<vmem>>, vector<1x64x192xf32>
    %248 = vector.shape_cast %247 : vector<1x64x192xf32> to vector<64x192xf32>
    %cst_99 = arith.constant dense<0.000000e+00> : vector<16x192xf32>
    %249 = tpu.matmul %244, %248, %cst_99 {dimension_numbers = #tpu.dot_dimension_numbers<[1], [0], [0], [1], [0, 0, 1, 1], [], []>} : vector<16x64xf32>, vector<64x192xf32>, vector<16x192xf32> -> vector<16x192xf32>
    %c2_100 = arith.constant 2 : index
    %c0_101 = arith.constant 0 : index
    %c0_102 = arith.constant 0 : index
    %250 = vector.load %arg4[%c2_100, %c0_101, %c0_102] : memref<3x1x192xf32, #tpu.memory_space<vmem>>, vector<1x1x192xf32>
    %251 = vector.shape_cast %250 : vector<1x1x192xf32> to vector<1x192xf32>
    %252 = vector.broadcast %251 : vector<1x192xf32> to vector<16x192xf32>
    %253 = arith.addf %249, %252 : vector<16x192xf32>
    %254 = vector.extract_strided_slice %253 {offsets = [0, 0], sizes = [16, 64], strides = [1, 1]} : vector<16x192xf32> to vector<16x64xf32>
    %cst_103 = arith.constant 0.353553385 : f32
    %255 = vector.broadcast %cst_103 : f32 to vector<16x64xf32>
    %256 = arith.mulf %254, %255 : vector<16x64xf32>
    %257 = vector.extract_strided_slice %253 {offsets = [0, 64], sizes = [16, 64], strides = [1, 1]} : vector<16x192xf32> to vector<16x64xf32>
    %258 = vector.extract_strided_slice %253 {offsets = [0, 128], sizes = [16, 64], strides = [1, 1]} : vector<16x192xf32> to vector<16x64xf32>
    %c0_104 = arith.constant 0 : index
    %c0_105 = arith.constant 0 : index
    %259 = vector.load %arg11[%c0_104, %c0_105] : memref<128x64xf32, #tpu.memory_space<vmem>>, vector<128x64xf32>
    %260 = tpu.concatenate %257, %257, %257, %257, %257, %257, %257, %257 in 0 : vector<16x64xf32>, vector<16x64xf32>, vector<16x64xf32>, vector<16x64xf32>, vector<16x64xf32>, vector<16x64xf32>, vector<16x64xf32>, vector<16x64xf32> -> vector<128x64xf32>
    %261 = arith.mulf %260, %259 : vector<128x64xf32>
    %262 = tpu.concatenate %258, %258, %258, %258, %258, %258, %258, %258 in 0 : vector<16x64xf32>, vector<16x64xf32>, vector<16x64xf32>, vector<16x64xf32>, vector<16x64xf32>, vector<16x64xf32>, vector<16x64xf32>, vector<16x64xf32> -> vector<128x64xf32>
    %263 = arith.mulf %262, %259 : vector<128x64xf32>
    %cst_106 = arith.constant dense<0.000000e+00> : vector<16x128xf32>
    %264 = tpu.matmul %256, %261, %cst_106 {dimension_numbers = #tpu.dot_dimension_numbers<[1], [1], [0], [0], [0, 0, 1, 0], [], []>} : vector<16x64xf32>, vector<128x64xf32>, vector<16x128xf32> -> vector<16x128xf32>
    %265 = tpu.concatenate %264, %264, %264, %264, %264, %264, %264, %264 in 0 : vector<16x128xf32>, vector<16x128xf32>, vector<16x128xf32>, vector<16x128xf32>, vector<16x128xf32>, vector<16x128xf32>, vector<16x128xf32>, vector<16x128xf32> -> vector<128x128xf32>
    %c0_107 = arith.constant 0 : index
    %c0_108 = arith.constant 0 : index
    %266 = vector.load %arg10[%c0_107, %c0_108] : memref<128x128xf32, #tpu.memory_space<vmem>>, vector<128x128xf32>
    %267 = arith.addf %265, %266 : vector<128x128xf32>
    %cst_109 = arith.constant dense<0xFF800000> : vector<128xf32>
    %268 = vector.multi_reduction <maximumf>, %267, %cst_109 [1] : vector<128x128xf32> to vector<128xf32>
    %269 = vector.shape_cast %268 : vector<128xf32> to vector<128x1xf32>
    %270 = vector.broadcast %269 : vector<128x1xf32> to vector<128x128xf32>
    %271 = arith.subf %267, %270 : vector<128x128xf32>
    %272 = math.exp %271 : vector<128x128xf32>
    %cst_110 = arith.constant dense<0.000000e+00> : vector<128xf32>
    %273 = vector.multi_reduction <add>, %272, %cst_110 [1] : vector<128x128xf32> to vector<128xf32>
    %274 = vector.shape_cast %273 : vector<128xf32> to vector<128x1xf32>
    %275 = tpu.reciprocal %274 {approx = true} : vector<128x1xf32> -> vector<128x1xf32>
    %276 = vector.broadcast %275 : vector<128x1xf32> to vector<128x128xf32>
    %277 = arith.mulf %272, %276 : vector<128x128xf32>
    %278 = vector.extract_strided_slice %277 {offsets = [0, 0], sizes = [16, 128], strides = [1, 1]} : vector<128x128xf32> to vector<16x128xf32>
    %279 = vector.extract_strided_slice %277 {offsets = [16, 0], sizes = [16, 128], strides = [1, 1]} : vector<128x128xf32> to vector<16x128xf32>
    %280 = arith.addf %278, %279 : vector<16x128xf32>
    %281 = vector.extract_strided_slice %277 {offsets = [32, 0], sizes = [16, 128], strides = [1, 1]} : vector<128x128xf32> to vector<16x128xf32>
    %282 = arith.addf %280, %281 : vector<16x128xf32>
    %283 = vector.extract_strided_slice %277 {offsets = [48, 0], sizes = [16, 128], strides = [1, 1]} : vector<128x128xf32> to vector<16x128xf32>
    %284 = arith.addf %282, %283 : vector<16x128xf32>
    %285 = vector.extract_strided_slice %277 {offsets = [64, 0], sizes = [16, 128], strides = [1, 1]} : vector<128x128xf32> to vector<16x128xf32>
    %286 = arith.addf %284, %285 : vector<16x128xf32>
    %287 = vector.extract_strided_slice %277 {offsets = [80, 0], sizes = [16, 128], strides = [1, 1]} : vector<128x128xf32> to vector<16x128xf32>
    %288 = arith.addf %286, %287 : vector<16x128xf32>
    %289 = vector.extract_strided_slice %277 {offsets = [96, 0], sizes = [16, 128], strides = [1, 1]} : vector<128x128xf32> to vector<16x128xf32>
    %290 = arith.addf %288, %289 : vector<16x128xf32>
    %291 = vector.extract_strided_slice %277 {offsets = [112, 0], sizes = [16, 128], strides = [1, 1]} : vector<128x128xf32> to vector<16x128xf32>
    %292 = arith.addf %290, %291 : vector<16x128xf32>
    %cst_111 = arith.constant dense<0.000000e+00> : vector<16x64xf32>
    %293 = tpu.matmul %292, %263, %cst_111 {dimension_numbers = #tpu.dot_dimension_numbers<[1], [0], [0], [1], [0, 0, 1, 1], [], []>} : vector<16x128xf32>, vector<128x64xf32>, vector<16x64xf32> -> vector<16x64xf32>
    %c2_112 = arith.constant 2 : index
    %c0_113 = arith.constant 0 : index
    %c0_114 = arith.constant 0 : index
    %294 = vector.load %arg5[%c2_112, %c0_113, %c0_114] : memref<3x64x64xf32, #tpu.memory_space<vmem>>, vector<1x64x64xf32>
    %295 = vector.shape_cast %294 : vector<1x64x64xf32> to vector<64x64xf32>
    %cst_115 = arith.constant dense<0.000000e+00> : vector<16x64xf32>
    %296 = tpu.matmul %293, %295, %cst_115 {dimension_numbers = #tpu.dot_dimension_numbers<[1], [0], [0], [1], [0, 0, 1, 1], [], []>} : vector<16x64xf32>, vector<64x64xf32>, vector<16x64xf32> -> vector<16x64xf32>
    %297 = vector.extract_strided_slice %246 {offsets = [0, 0], sizes = [1, 64], strides = [1, 1]} : vector<8x64xf32> to vector<1x64xf32>
    %298 = vector.broadcast %297 : vector<1x64xf32> to vector<16x64xf32>
    %299 = arith.addf %296, %298 : vector<16x64xf32>
    %300 = arith.addf %244, %299 : vector<16x64xf32>
    %301 = vector.extract_strided_slice %246 {offsets = [1, 0], sizes = [1, 64], strides = [1, 1]} : vector<8x64xf32> to vector<1x64xf32>
    %302 = vector.extract_strided_slice %246 {offsets = [2, 0], sizes = [1, 64], strides = [1, 1]} : vector<8x64xf32> to vector<1x64xf32>
    %cst_116 = arith.constant dense<0.000000e+00> : vector<16xf32>
    %303 = vector.multi_reduction <add>, %300, %cst_116 [1] : vector<16x64xf32> to vector<16xf32>
    %304 = vector.shape_cast %303 : vector<16xf32> to vector<16x1xf32>
    %cst_117 = arith.constant 1.562500e-02 : f32
    %305 = vector.broadcast %cst_117 : f32 to vector<16x1xf32>
    %306 = arith.mulf %304, %305 : vector<16x1xf32>
    %307 = arith.mulf %300, %300 : vector<16x64xf32>
    %cst_118 = arith.constant dense<0.000000e+00> : vector<16xf32>
    %308 = vector.multi_reduction <add>, %307, %cst_118 [1] : vector<16x64xf32> to vector<16xf32>
    %309 = vector.shape_cast %308 : vector<16xf32> to vector<16x1xf32>
    %cst_119 = arith.constant 1.562500e-02 : f32
    %310 = vector.broadcast %cst_119 : f32 to vector<16x1xf32>
    %311 = arith.mulf %309, %310 : vector<16x1xf32>
    %312 = arith.mulf %306, %306 : vector<16x1xf32>
    %313 = arith.subf %311, %312 : vector<16x1xf32>
    %314 = vector.broadcast %306 : vector<16x1xf32> to vector<16x64xf32>
    %315 = arith.subf %300, %314 : vector<16x64xf32>
    %cst_120 = arith.constant 9.99999974E-6 : f32
    %316 = vector.broadcast %cst_120 : f32 to vector<16x1xf32>
    %317 = arith.addf %313, %316 : vector<16x1xf32>
    %318 = math.rsqrt %317 : vector<16x1xf32>
    %319 = vector.broadcast %318 : vector<16x1xf32> to vector<16x64xf32>
    %320 = arith.mulf %315, %319 : vector<16x64xf32>
    %321 = vector.broadcast %301 : vector<1x64xf32> to vector<16x64xf32>
    %322 = arith.mulf %320, %321 : vector<16x64xf32>
    %323 = vector.broadcast %302 : vector<1x64xf32> to vector<16x64xf32>
    %324 = arith.addf %322, %323 : vector<16x64xf32>
    %c2_121 = arith.constant 2 : index
    %c0_122 = arith.constant 0 : index
    %c0_123 = arith.constant 0 : index
    %325 = vector.load %arg7[%c2_121, %c0_122, %c0_123] : memref<3x64x256xf32, #tpu.memory_space<vmem>>, vector<1x64x256xf32>
    %326 = vector.shape_cast %325 : vector<1x64x256xf32> to vector<64x256xf32>
    %cst_124 = arith.constant dense<0.000000e+00> : vector<16x256xf32>
    %327 = tpu.matmul %324, %326, %cst_124 {dimension_numbers = #tpu.dot_dimension_numbers<[1], [0], [0], [1], [0, 0, 1, 1], [], []>} : vector<16x64xf32>, vector<64x256xf32>, vector<16x256xf32> -> vector<16x256xf32>
    %c2_125 = arith.constant 2 : index
    %c0_126 = arith.constant 0 : index
    %c0_127 = arith.constant 0 : index
    %328 = vector.load %arg8[%c2_125, %c0_126, %c0_127] : memref<3x1x256xf32, #tpu.memory_space<vmem>>, vector<1x1x256xf32>
    %329 = vector.shape_cast %328 : vector<1x1x256xf32> to vector<1x256xf32>
    %330 = vector.broadcast %329 : vector<1x256xf32> to vector<16x256xf32>
    %331 = arith.addf %327, %330 : vector<16x256xf32>
    %cst_128 = arith.constant 0.000000e+00 : f32
    %332 = vector.broadcast %cst_128 : f32 to vector<16x256xf32>
    %333 = arith.maximumf %331, %332 : vector<16x256xf32>
    %c2_129 = arith.constant 2 : index
    %c0_130 = arith.constant 0 : index
    %c0_131 = arith.constant 0 : index
    %334 = vector.load %arg9[%c2_129, %c0_130, %c0_131] : memref<3x256x64xf32, #tpu.memory_space<vmem>>, vector<1x256x64xf32>
    %335 = vector.shape_cast %334 : vector<1x256x64xf32> to vector<256x64xf32>
    %cst_132 = arith.constant dense<0.000000e+00> : vector<16x64xf32>
    %336 = tpu.matmul %333, %335, %cst_132 {dimension_numbers = #tpu.dot_dimension_numbers<[1], [0], [0], [1], [0, 0, 1, 1], [], []>} : vector<16x256xf32>, vector<256x64xf32>, vector<16x64xf32> -> vector<16x64xf32>
    %337 = vector.extract_strided_slice %246 {offsets = [5, 0], sizes = [1, 64], strides = [1, 1]} : vector<8x64xf32> to vector<1x64xf32>
    %338 = vector.broadcast %337 : vector<1x64xf32> to vector<16x64xf32>
    %339 = arith.addf %336, %338 : vector<16x64xf32>
    %340 = arith.addf %324, %339 : vector<16x64xf32>
    %341 = vector.extract_strided_slice %246 {offsets = [3, 0], sizes = [1, 64], strides = [1, 1]} : vector<8x64xf32> to vector<1x64xf32>
    %342 = vector.extract_strided_slice %246 {offsets = [4, 0], sizes = [1, 64], strides = [1, 1]} : vector<8x64xf32> to vector<1x64xf32>
    %cst_133 = arith.constant dense<0.000000e+00> : vector<16xf32>
    %343 = vector.multi_reduction <add>, %340, %cst_133 [1] : vector<16x64xf32> to vector<16xf32>
    %344 = vector.shape_cast %343 : vector<16xf32> to vector<16x1xf32>
    %cst_134 = arith.constant 1.562500e-02 : f32
    %345 = vector.broadcast %cst_134 : f32 to vector<16x1xf32>
    %346 = arith.mulf %344, %345 : vector<16x1xf32>
    %347 = arith.mulf %340, %340 : vector<16x64xf32>
    %cst_135 = arith.constant dense<0.000000e+00> : vector<16xf32>
    %348 = vector.multi_reduction <add>, %347, %cst_135 [1] : vector<16x64xf32> to vector<16xf32>
    %349 = vector.shape_cast %348 : vector<16xf32> to vector<16x1xf32>
    %cst_136 = arith.constant 1.562500e-02 : f32
    %350 = vector.broadcast %cst_136 : f32 to vector<16x1xf32>
    %351 = arith.mulf %349, %350 : vector<16x1xf32>
    %352 = arith.mulf %346, %346 : vector<16x1xf32>
    %353 = arith.subf %351, %352 : vector<16x1xf32>
    %354 = vector.broadcast %346 : vector<16x1xf32> to vector<16x64xf32>
    %355 = arith.subf %340, %354 : vector<16x64xf32>
    %cst_137 = arith.constant 9.99999974E-6 : f32
    %356 = vector.broadcast %cst_137 : f32 to vector<16x1xf32>
    %357 = arith.addf %353, %356 : vector<16x1xf32>
    %358 = math.rsqrt %357 : vector<16x1xf32>
    %359 = vector.broadcast %358 : vector<16x1xf32> to vector<16x64xf32>
    %360 = arith.mulf %355, %359 : vector<16x64xf32>
    %361 = vector.broadcast %341 : vector<1x64xf32> to vector<16x64xf32>
    %362 = arith.mulf %360, %361 : vector<16x64xf32>
    %363 = vector.broadcast %342 : vector<1x64xf32> to vector<16x64xf32>
    %364 = arith.addf %362, %363 : vector<16x64xf32>
    %365 = tpu.iota {dimensions = array<i32: 0>} : vector<8x16xi32>
    %366 = tpu.iota {dimensions = array<i32: 1>} : vector<8x16xi32>
    %c2_i32 = arith.constant 2 : i32
    %367 = vector.broadcast %c2_i32 : i32 to vector<8x16xi32>
    %368 = arith.muli %365, %367 : vector<8x16xi32>
    %c1_i32 = arith.constant 1 : i32
    %369 = vector.broadcast %c1_i32 : i32 to vector<8x16xi32>
    %370 = arith.addi %368, %369 : vector<8x16xi32>
    %371 = arith.cmpi eq, %366, %370 : vector<8x16xi32>
    %372 = arith.extui %371 : vector<8x16xi1> to vector<8x16xi32>
    %373 = arith.sitofp %372 : vector<8x16xi32> to vector<8x16xf32>
    %cst_138 = arith.constant dense<0.000000e+00> : vector<8x64xf32>
    %374 = tpu.matmul %373, %364, %cst_138 {dimension_numbers = #tpu.dot_dimension_numbers<[1], [0], [0], [1], [0, 0, 1, 1], [], []>} : vector<8x16xf32>, vector<16x64xf32>, vector<8x64xf32> -> vector<8x64xf32>
    %c0_139 = arith.constant 0 : index
    %c0_140 = arith.constant 0 : index
    %375 = vector.load %arg12[%c0_139, %c0_140] : memref<64x32xf32, #tpu.memory_space<vmem>>, vector<64x32xf32>
    %cst_141 = arith.constant dense<0.000000e+00> : vector<8x32xf32>
    %376 = tpu.matmul %374, %375, %cst_141 {dimension_numbers = #tpu.dot_dimension_numbers<[1], [0], [0], [1], [0, 0, 1, 1], [], []>} : vector<8x64xf32>, vector<64x32xf32>, vector<8x32xf32> -> vector<8x32xf32>
    %c0_142 = arith.constant 0 : index
    %c0_143 = arith.constant 0 : index
    %377 = vector.load %arg13[%c0_142, %c0_143] : memref<1x32xf32, #tpu.memory_space<vmem>>, vector<1x32xf32>
    %378 = vector.broadcast %377 : vector<1x32xf32> to vector<8x32xf32>
    %379 = arith.addf %376, %378 : vector<8x32xf32>
    %c0_144 = arith.constant 0 : index
    %c0_145 = arith.constant 0 : index
    %380 = vector.load %arg14[%c0_144, %c0_145] : memref<8x32xf32, #tpu.memory_space<vmem>>, vector<8x32xf32>
    tpu.vector_store %arg14[%c0_144, %c0_145], %379 {strides = array<i32>} : memref<8x32xf32, #tpu.memory_space<vmem>>, vector<8x32xf32>,
    return
  }
}

</mosaic_0001>

<llo_original>
// kernel: transformer_forward.1
$region0: #{transformer_forward.1}
  #allocation0 [shape = 'u32[]', space=smem, size = 0x4, offset = 0x4, fixed_abs, tag = 'smem constant byte address 0x4 - core index']
  #allocation1 [shape = 'u32[144,128]{1,0:T(1,128)}', space=vmem, size = 0x12000, scoped, tag = 'internal scratch']
  %s0 = inlined_call_operand.vmem [shape: f32[16,16], index: 0, kind: input, shape index: {}]
  %s1 = inlined_call_operand.vmem [shape: f32[16,64], index: 1, kind: input, shape index: {}]
  %s2 = inlined_call_operand.vmem [shape: f32[16,64], index: 2, kind: input, shape index: {}]
  %s3 = inlined_call_operand.vmem [shape: f32[3,64,192], index: 3, kind: input, shape index: {}]
  %s4 = inlined_call_operand.vmem [shape: f32[3,1,192], index: 4, kind: input, shape index: {}]
  %s5 = inlined_call_operand.vmem [shape: f32[3,64,64], index: 5, kind: input, shape index: {}]
  %s6 = inlined_call_operand.vmem [shape: f32[3,8,64], index: 6, kind: input, shape index: {}]
  %s7 = inlined_call_operand.vmem [shape: f32[3,64,256], index: 7, kind: input, shape index: {}]
  %s8 = inlined_call_operand.vmem [shape: f32[3,1,256], index: 8, kind: input, shape index: {}]
  %s9 = inlined_call_operand.vmem [shape: f32[3,256,64], index: 9, kind: input, shape index: {}]
  %s10 = inlined_call_operand.vmem [shape: f32[128,128], index: 10, kind: input, shape index: {}]
  %s11 = inlined_call_operand.vmem [shape: f32[128,64], index: 11, kind: input, shape index: {}]
  %s12 = inlined_call_operand.vmem [shape: f32[64,32], index: 12, kind: input, shape index: {}]
  %s13 = inlined_call_operand.vmem [shape: f32[1,32], index: 13, kind: input, shape index: {}]
  %s14 = inlined_call_operand.vmem [shape: f32[8,32], index: 14, kind: output, shape index: {}]
  %s15 = sld [smem:[#allocation0]]
  $region66: #{transformer_forward.1} parent=0
    _
  %s17 = ssub.s32 1, %s15
  %s18 = scalar_select 0, %s17, %s15
  // Predicated region
  $region2: #{transformer_forward.1} parent=0 // pred_check
    _
  $region3: #{transformer_forward.1} parent=0 // pred_check_branch
    %20 = sbr.rel (0) target = $region5
  $region4: #{transformer_forward.1} parent=0 // pred_region
    _
  $region5: #{transformer_forward.1} parent=0 // pred_fallthru
    _
  // Predicated region
  $region6: #{transformer_forward.1} parent=0 // pred_check
    _
  $region7: #{transformer_forward.1} parent=0 // pred_check_branch
    %22 = sbr.rel (0) target = $region9
  $region8: #{transformer_forward.1} parent=0 // pred_region
    _
  $region9: #{transformer_forward.1} parent=0 // pred_fallthru
    _
  // Predicated region
  $region10: #{transformer_forward.1} parent=0 // pred_check
    _
  $region11: #{transformer_forward.1} parent=0 // pred_check_branch
    %24 = sbr.rel (0) target = $region13
  $region12: #{transformer_forward.1} parent=0 // pred_region
    _
  $region13: #{transformer_forward.1} parent=0 // pred_fallthru
    _
  // Predicated region
  $region14: #{transformer_forward.1} parent=0 // pred_check
    _
  $region15: #{transformer_forward.1} parent=0 // pred_check_branch
    %26 = sbr.rel (0) target = $region17
  $region16: #{transformer_forward.1} parent=0 // pred_region
    _
  $region17: #{transformer_forward.1} parent=0 // pred_fallthru
    _
  // Predicated region
  $region18: #{transformer_forward.1} parent=0 // pred_check
    _
  $region19: #{transformer_forward.1} parent=0 // pred_check_branch
    %28 = sbr.rel (0) target = $region21
  $region20: #{transformer_forward.1} parent=0 // pred_region
    _
  $region21: #{transformer_forward.1} parent=0 // pred_fallthru
    _
  // Predicated region
  $region22: #{transformer_forward.1} parent=0 // pred_check
    _
  $region23: #{transformer_forward.1} parent=0 // pred_check_branch
    %30 = sbr.rel (0) target = $region25
  $region24: #{transformer_forward.1} parent=0 // pred_region
    _
  $region25: #{transformer_forward.1} parent=0 // pred_fallthru
    _
  // Predicated region
  $region26: #{transformer_forward.1} parent=0 // pred_check
    _
  $region27: #{transformer_forward.1} parent=0 // pred_check_branch
    %32 = sbr.rel (0) target = $region29
  $region28: #{transformer_forward.1} parent=0 // pred_region
    _
  $region29: #{transformer_forward.1} parent=0 // pred_fallthru
    _
  // Predicated region
  $region30: #{transformer_forward.1} parent=0 // pred_check
    _
  $region31: #{transformer_forward.1} parent=0 // pred_check_branch
    %34 = sbr.rel (0) target = $region33
  $region32: #{transformer_forward.1} parent=0 // pred_region
    _
  $region33: #{transformer_forward.1} parent=0 // pred_fallthru
    _
  // Predicated region
  $region34: #{transformer_forward.1} parent=0 // pred_check
    _
  $region35: #{transformer_forward.1} parent=0 // pred_check_branch
    %36 = sbr.rel (0) target = $region37
  $region36: #{transformer_forward.1} parent=0 // pred_region
    _
  $region37: #{transformer_forward.1} parent=0 // pred_fallthru
    _
  // Predicated region
  $region38: #{transformer_forward.1} parent=0 // pred_check
    _
  $region39: #{transformer_forward.1} parent=0 // pred_check_branch
    %38 = sbr.rel (0) target = $region41
  $region40: #{transformer_forward.1} parent=0 // pred_region
    _
  $region41: #{transformer_forward.1} parent=0 // pred_fallthru
    _
  // Predicated region
  $region42: #{transformer_forward.1} parent=0 // pred_check
    _
  $region43: #{transformer_forward.1} parent=0 // pred_check_branch
    %40 = sbr.rel (0) target = $region45
  $region44: #{transformer_forward.1} parent=0 // pred_region
    _
  $region45: #{transformer_forward.1} parent=0 // pred_fallthru
    _
  // Predicated region
  $region46: #{transformer_forward.1} parent=0 // pred_check
    _
  $region47: #{transformer_forward.1} parent=0 // pred_check_branch
    %42 = sbr.rel (0) target = $region49
  $region48: #{transformer_forward.1} parent=0 // pred_region
    _
  $region49: #{transformer_forward.1} parent=0 // pred_fallthru
    _
  // Predicated region
  $region50: #{transformer_forward.1} parent=0 // pred_check
    _
  $region51: #{transformer_forward.1} parent=0 // pred_check_branch
    %44 = sbr.rel (0) target = $region53
  $region52: #{transformer_forward.1} parent=0 // pred_region
    _
  $region53: #{transformer_forward.1} parent=0 // pred_fallthru
    _
  // Predicated region
  $region54: #{transformer_forward.1} parent=0 // pred_check
    _
  $region55: #{transformer_forward.1} parent=0 // pred_check_branch
    %46 = sbr.rel (0) target = $region57
  $region56: #{transformer_forward.1} parent=0 // pred_region
    _
  $region57: #{transformer_forward.1} parent=0 // pred_fallthru
    _
  %v47 = vld [vmem:[%s0] sm:$0xff]
  %v48 = vld [vmem:[%s0 + $0x8] sm:$0xff]
  %v49 = vld [vmem:[%s2] sm:$0xff]
  %v50 = vld [vmem:[%s2 + $0x8] sm:$0xff]
  %v51 = vld [vmem:[%s1] sm:$0xff]
  %v52 = vld [vmem:[%s1 + $0x8] sm:$0xff]
  %vm53 = vcmask 130048
  %v55 = vsel %vm53, %v47, 0
  %v58 = vsel %vm53, %v48, 0
  %60 = vmatprep.subr.mxu0 0.0
  %61 = vmatpush1.msra.mxu0 %v49
  %62 = vmatprep.subr.mxu0 0.0
  %63 = vmatpush1.msra.mxu0 %v50
  %64 = vmatprep.subr.mxu0 0.0
  %65 = vmatpush1.msra.mxu0 0.0
  %66 = vmatprep.subr.mxu0 0.0
  %67 = vmatpush1.msra.mxu0 0.0
  %68 = vmatprep.subr.mxu0 0.0
  %69 = vmatpush1.msra.mxu0 0.0
  %70 = vmatprep.subr.mxu0 0.0
  %71 = vmatpush1.msra.mxu0 0.0
  %72 = vmatprep.subr.mxu0 0.0
  %73 = vmatpush1.msra.mxu0 0.0
  %74 = vmatprep.subr.mxu0 0.0
  %75 = vmatpush1.msra.mxu0 0.0
  %76 = vmatprep.subr.mxu0 0.0
  %77 = vmatpush1.msra.mxu0 0.0
  %78 = vmatprep.subr.mxu0 0.0
  %79 = vmatpush1.msra.mxu0 0.0
  %80 = vmatprep.subr.mxu0 0.0
  %81 = vmatpush1.msra.mxu0 0.0
  %82 = vmatprep.subr.mxu0 0.0
  %83 = vmatpush1.msra.mxu0 0.0
  %84 = vmatprep.subr.mxu0 0.0
  %85 = vmatpush1.msra.mxu0 0.0
  %86 = vmatprep.subr.mxu0 0.0
  %87 = vmatpush1.msra.mxu0 0.0
  %88 = vmatprep.subr.mxu0 0.0
  %89 = vmatpush1.msra.mxu0 0.0
  %90 = vmatprep.subr.mxu0 0.0
  %91 = vmatpush1.msra.mxu0 0.0
  %92 = vmatprep.subr.mxu0 0.0
  %93 = vmatpush1.msra.mxu0 0.0
  %94 = vmatprep.subr.mxu0 0.0
  %95 = vmatpush1.msra.mxu0 0.0
  %96 = vmatprep.subr.mxu0 0.0
  %97 = vmatpush1.msra.mxu0 0.0
  %98 = vmatprep.subr.mxu0 0.0
  %99 = vmatpush1.msra.mxu0 0.0
  %100 = vmatprep.subr.mxu0 0.0
  %101 = vmatpush1.msra.mxu0 0.0
  %102 = vmatprep.subr.mxu0 0.0
  %103 = vmatpush1.msra.mxu0 0.0
  %104 = vmatprep.subr.mxu0 0.0
  %105 = vmatpush1.msra.mxu0 0.0
  %106 = vmatprep.subr.mxu0 0.0
  %107 = vmatpush1.msra.mxu0 0.0
  %108 = vmatprep.subr.mxu0 0.0
  %109 = vmatpush1.msra.mxu0 0.0
  %110 = vmatprep.subr.mxu0 0.0
  %111 = vmatpush1.msra.mxu0 0.0
  %112 = vmatprep.subr.mxu0 0.0
  %113 = vmatpush1.msra.mxu0 0.0
  %114 = vmatprep.subr.mxu0 0.0
  %115 = vmatpush1.msra.mxu0 0.0
  %116 = vmatprep.subr.mxu0 0.0
  %117 = vmatpush1.msra.mxu0 0.0
  %118 = vmatprep.subr.mxu0 0.0
  %119 = vmatpush1.msra.mxu0 0.0
  %120 = vmatprep.subr.mxu0 0.0
  %121 = vmatpush1.msra.mxu0 0.0
  %122 = vmatprep.subr.mxu0 0.0
  %123 = vmatpush1.msra.mxu0 0.0
  %124 = vmatprep.mubr.f32.mxu0 0.0
  %125 = vmatmul.mubr.f32.gmra.mrb[0].mxu0 %v55
  %v126 = vpop.f32.mrb[0].mxu0
  %v127 = vadd.f32 %v51, %v126
  %v128 = vpop.f32.mrb[0].mxu0
  %129 = vmatprep.mubr.f32.mxu0 0.0
  %130 = vmatmul.mubr.f32.gmra.mrb[0].mxu0 %v58
  %v131 = vpop.f32.mrb[0].mxu0
  %v132 = vadd.f32 %v52, %v131
  %v133 = vpop.f32.mrb[0].mxu0
  %134 = vdwg.mxu0
  %v135 = vld [vmem:[%s6] sm:$0xff]
  %v136 = vld [vmem:[%s3] sm:$0xff]
  %v137 = vld [vmem:[%s3 + $0x8] sm:$0xff]
  %v138 = vld [vmem:[%s3 + $0x10] sm:$0xff]
  %v139 = vld [vmem:[%s3 + $0x18] sm:$0xff]
  %v140 = vld [vmem:[%s3 + $0x20] sm:$0xff]
  %v141 = vld [vmem:[%s3 + $0x28] sm:$0xff]
  %v142 = vld [vmem:[%s3 + $0x30] sm:$0xff]
  %v143 = vld [vmem:[%s3 + $0x38] sm:$0xff]
  %v144 = vld [vmem:[%s3 + $0x40] sm:$0xff]
  %v145 = vld [vmem:[%s3 + $0x48] sm:$0xff]
  %v146 = vld [vmem:[%s3 + $0x50] sm:$0xff]
  %v147 = vld [vmem:[%s3 + $0x58] sm:$0xff]
  %v148 = vld [vmem:[%s3 + $0x60] sm:$0xff]
  %v149 = vld [vmem:[%s3 + $0x68] sm:$0xff]
  %v150 = vld [vmem:[%s3 + $0x70] sm:$0xff]
  %v151 = vld [vmem:[%s3 + $0x78] sm:$0xff]
  %v152 = vld [vmem:[%s4] sm:$0x3]
  %v154 = vlaneseq
  %v155 = vshrl.u32 %v154, 7
  %v156 = vsub.s32 0, %v155
  %v157 = vrot.slane %v152, %v156
  %v158 = vlaneseq
  %v159 = vshrl.u32 %v158, 7
  %v160 = vsub.s32 1, %v159
  %v161 = vrot.slane %v152, %v160
  %vm164 = vcmask 523264
  %v166 = vsel %vm164, %v127, 0
  %v169 = vsel %vm164, %v132, 0
  %171 = vmatprep.subr.mxu0 %v137
  %172 = vmatpush1.msra.mxu0 %v136
  %173 = vmatprep.subr.mxu0 %v139
  %174 = vmatpush1.msra.mxu0 %v138
  %175 = vmatprep.subr.mxu0 %v141
  %176 = vmatpush1.msra.mxu0 %v140
  %177 = vmatprep.subr.mxu0 %v143
  %178 = vmatpush1.msra.mxu0 %v142
  %179 = vmatprep.subr.mxu0 %v145
  %180 = vmatpush1.msra.mxu0 %v144
  %181 = vmatprep.subr.mxu0 %v147
  %182 = vmatpush1.msra.mxu0 %v146
  %183 = vmatprep.subr.mxu0 %v149
  %184 = vmatpush1.msra.mxu0 %v148
  %185 = vmatprep.subr.mxu0 %v151
  %186 = vmatpush1.msra.mxu0 %v150
  %187 = vmatprep.subr.mxu0 0.0
  %188 = vmatpush1.msra.mxu0 0.0
  %189 = vmatprep.subr.mxu0 0.0
  %190 = vmatpush1.msra.mxu0 0.0
  %191 = vmatprep.subr.mxu0 0.0
  %192 = vmatpush1.msra.mxu0 0.0
  %193 = vmatprep.subr.mxu0 0.0
  %194 = vmatpush1.msra.mxu0 0.0
  %195 = vmatprep.subr.mxu0 0.0
  %196 = vmatpush1.msra.mxu0 0.0
  %197 = vmatprep.subr.mxu0 0.0
  %198 = vmatpush1.msra.mxu0 0.0
  %199 = vmatprep.subr.mxu0 0.0
  %200 = vmatpush1.msra.mxu0 0.0
  %201 = vmatprep.subr.mxu0 0.0
  %202 = vmatpush1.msra.mxu0 0.0
  %203 = vmatprep.subr.mxu0 0.0
  %204 = vmatpush1.msra.mxu0 0.0
  %205 = vmatprep.subr.mxu0 0.0
  %206 = vmatpush1.msra.mxu0 0.0
  %207 = vmatprep.subr.mxu0 0.0
  %208 = vmatpush1.msra.mxu0 0.0
  %209 = vmatprep.subr.mxu0 0.0
  %210 = vmatpush1.msra.mxu0 0.0
  %211 = vmatprep.subr.mxu0 0.0
  %212 = vmatpush1.msra.mxu0 0.0
  %213 = vmatprep.subr.mxu0 0.0
  %214 = vmatpush1.msra.mxu0 0.0
  %215 = vmatprep.subr.mxu0 0.0
  %216 = vmatpush1.msra.mxu0 0.0
  %217 = vmatprep.subr.mxu0 0.0
  %218 = vmatpush1.msra.mxu0 0.0
  %219 = vmatprep.subr.mxu0 0.0
  %220 = vmatpush1.msra.mxu0 0.0
  %221 = vmatprep.subr.mxu0 0.0
  %222 = vmatpush1.msra.mxu0 0.0
  %223 = vmatprep.subr.mxu0 0.0
  %224 = vmatpush1.msra.mxu0 0.0
  %225 = vmatprep.subr.mxu0 0.0
  %226 = vmatpush1.msra.mxu0 0.0
  %227 = vmatprep.subr.mxu0 0.0
  %228 = vmatpush1.msra.mxu0 0.0
  %229 = vmatprep.subr.mxu0 0.0
  %230 = vmatpush1.msra.mxu0 0.0
  %231 = vmatprep.subr.mxu0 0.0
  %232 = vmatpush1.msra.mxu0 0.0
  %233 = vmatprep.subr.mxu0 0.0
  %234 = vmatpush1.msra.mxu0 0.0
  %235 = vmatprep.mubr.f32.mxu0 0.0
  %236 = vmatmul.mubr.f32.gmra.mrb[0].mxu0 %v166
  %v237 = vpop.f32.mrb[0].mxu0
  %v238 = vadd.f32 %v157, %v237
  %v239 = vpop.f32.mrb[0].mxu0
  %v240 = vadd.f32 %v161, %v239
  %241 = vmatprep.mubr.f32.mxu0 0.0
  %242 = vmatmul.mubr.f32.gmra.mrb[0].mxu0 %v169
  %v243 = vpop.f32.mrb[0].mxu0
  %v244 = vadd.f32 %v157, %v243
  %v245 = vpop.f32.mrb[0].mxu0
  %v246 = vadd.f32 %v161, %v245
  %247 = vdwg.mxu0
  %v248 = vmul.f32 %v238, 0.35355338
  %v249 = vmul.f32 %v244, 0.35355338
  %v250 = vld [vmem:[%s11] sm:$0xff]
  %v251 = vld [vmem:[%s11 + $0x8] sm:$0xff]
  %v252 = vld [vmem:[%s11 + $0x10] sm:$0xff]
  %v253 = vld [vmem:[%s11 + $0x18] sm:$0xff]
  %v254 = vld [vmem:[%s11 + $0x20] sm:$0xff]
  %v255 = vld [vmem:[%s11 + $0x28] sm:$0xff]
  %v256 = vld [vmem:[%s11 + $0x30] sm:$0xff]
  %v257 = vld [vmem:[%s11 + $0x38] sm:$0xff]
  %v258 = vld [vmem:[%s11 + $0x40] sm:$0xff]
  %v259 = vld [vmem:[%s11 + $0x48] sm:$0xff]
  %v260 = vld [vmem:[%s11 + $0x50] sm:$0xff]
  %v261 = vld [vmem:[%s11 + $0x58] sm:$0xff]
  %v262 = vld [vmem:[%s11 + $0x60] sm:$0xff]
  %v263 = vld [vmem:[%s11 + $0x68] sm:$0xff]
  %v264 = vld [vmem:[%s11 + $0x70] sm:$0xff]
  %v265 = vld [vmem:[%s11 + $0x78] sm:$0xff]
  %282 = vrot.lane.b32.xlu0 %v250, 64
  %v283 = vpop.permute.xlu0 %282
  %284 = vrot.lane.b32.xlu0 %v251, 64
  %v285 = vpop.permute.xlu0 %284
  %286 = vrot.lane.b32.xlu0 %v252, 64
  %v287 = vpop.permute.xlu0 %286
  %288 = vrot.lane.b32.xlu0 %v253, 64
  %v289 = vpop.permute.xlu0 %288
  %290 = vrot.lane.b32.xlu0 %v254, 64
  %v291 = vpop.permute.xlu0 %290
  %292 = vrot.lane.b32.xlu0 %v255, 64
  %v293 = vpop.permute.xlu0 %292
  %294 = vrot.lane.b32.xlu0 %v256, 64
  %v295 = vpop.permute.xlu0 %294
  %296 = vrot.lane.b32.xlu0 %v257, 64
  %v297 = vpop.permute.xlu0 %296
  %298 = vrot.lane.b32.xlu0 %v258, 64
  %v299 = vpop.permute.xlu0 %298
  %300 = vrot.lane.b32.xlu0 %v259, 64
  %v301 = vpop.permute.xlu0 %300
  %302 = vrot.lane.b32.xlu0 %v260, 64
  %v303 = vpop.permute.xlu0 %302
  %304 = vrot.lane.b32.xlu0 %v261, 64
  %v305 = vpop.permute.xlu0 %304
  %306 = vrot.lane.b32.xlu0 %v262, 64
  %v307 = vpop.permute.xlu0 %306
  %308 = vrot.lane.b32.xlu0 %v263, 64
  %v309 = vpop.permute.xlu0 %308
  %310 = vrot.lane.b32.xlu0 %v264, 64
  %v311 = vpop.permute.xlu0 %310
  %312 = vrot.lane.b32.xlu0 %v265, 64
  %v313 = vpop.permute.xlu0 %312
  %v330 = vmul.f32 %v238, %v283
  %v331 = vmul.f32 %v244, %v285
  %v332 = vmul.f32 %v238, %v287
  %v333 = vmul.f32 %v244, %v289
  %v334 = vmul.f32 %v238, %v291
  %v335 = vmul.f32 %v244, %v293
  %v336 = vmul.f32 %v238, %v295
  %v337 = vmul.f32 %v244, %v297
  %v338 = vmul.f32 %v238, %v299
  %v339 = vmul.f32 %v244, %v301
  %v340 = vmul.f32 %v238, %v303
  %v341 = vmul.f32 %v244, %v305
  %v342 = vmul.f32 %v238, %v307
  %v343 = vmul.f32 %v244, %v309
  %v344 = vmul.f32 %v238, %v311
  %v345 = vmul.f32 %v244, %v313
  %v346 = vmul.f32 %v240, %v250
  %v347 = vmul.f32 %v246, %v251
  %v348 = vmul.f32 %v240, %v252
  %v349 = vmul.f32 %v246, %v253
  %v350 = vmul.f32 %v240, %v254
  %v351 = vmul.f32 %v246, %v255
  %v352 = vmul.f32 %v240, %v256
  %v353 = vmul.f32 %v246, %v257
  %v354 = vmul.f32 %v240, %v258
  %v355 = vmul.f32 %v246, %v259
  %v356 = vmul.f32 %v240, %v260
  %v357 = vmul.f32 %v246, %v261
  %v358 = vmul.f32 %v240, %v262
  %v359 = vmul.f32 %v246, %v263
  %v360 = vmul.f32 %v240, %v264
  %v361 = vmul.f32 %v246, %v265
  %378 = vrot.lane.b32.xlu0 %v330, 64
  %v379 = vpop.permute.xlu0 %378
  %380 = vrot.lane.b32.xlu0 %v331, 64
  %v381 = vpop.permute.xlu0 %380
  %382 = vrot.lane.b32.xlu0 %v332, 64
  %v383 = vpop.permute.xlu0 %382
  %384 = vrot.lane.b32.xlu0 %v333, 64
  %v385 = vpop.permute.xlu0 %384
  %386 = vrot.lane.b32.xlu0 %v334, 64
  %v387 = vpop.permute.xlu0 %386
  %388 = vrot.lane.b32.xlu0 %v335, 64
  %v389 = vpop.permute.xlu0 %388
  %390 = vrot.lane.b32.xlu0 %v336, 64
  %v391 = vpop.permute.xlu0 %390
  %392 = vrot.lane.b32.xlu0 %v337, 64
  %v393 = vpop.permute.xlu0 %392
  %394 = vrot.lane.b32.xlu0 %v338, 64
  %v395 = vpop.permute.xlu0 %394
  %396 = vrot.lane.b32.xlu0 %v339, 64
  %v397 = vpop.permute.xlu0 %396
  %398 = vrot.lane.b32.xlu0 %v340, 64
  %v399 = vpop.permute.xlu0 %398
  %400 = vrot.lane.b32.xlu0 %v341, 64
  %v401 = vpop.permute.xlu0 %400
  %402 = vrot.lane.b32.xlu0 %v342, 64
  %v403 = vpop.permute.xlu0 %402
  %404 = vrot.lane.b32.xlu0 %v343, 64
  %v405 = vpop.permute.xlu0 %404
  %406 = vrot.lane.b32.xlu0 %v344, 64
  %v407 = vpop.permute.xlu0 %406
  %408 = vrot.lane.b32.xlu0 %v345, 64
  %v409 = vpop.permute.xlu0 %408
  %v411 = vsel %vm164, %v248, 0
  %v414 = vsel %vm164, %v249, 0
  %v416 = vsel %vm164, %v379, 0
  %v418 = vsel %vm164, %v381, 0
  %v420 = vsel %vm164, %v383, 0
  %v422 = vsel %vm164, %v385, 0
  %v424 = vsel %vm164, %v387, 0
  %v426 = vsel %vm164, %v389, 0
  %v428 = vsel %vm164, %v391, 0
  %v430 = vsel %vm164, %v393, 0
  %v432 = vsel %vm164, %v395, 0
  %v434 = vsel %vm164, %v397, 0
  %v436 = vsel %vm164, %v399, 0
  %v438 = vsel %vm164, %v401, 0
  %v440 = vsel %vm164, %v403, 0
  %v442 = vsel %vm164, %v405, 0
  %v444 = vsel %vm164, %v407, 0
  %v446 = vsel %vm164, %v409, 0
  %448 = vmatprep.subr.mxu0 0.0
  %449 = vmatpush1.xpose.msra.mxu0 %v416
  %450 = vmatprep.subr.mxu0 0.0
  %451 = vmatpush1.xpose.msra.mxu0 %v418
  %452 = vmatprep.subr.mxu0 0.0
  %453 = vmatpush1.xpose.msra.mxu0 %v420
  %454 = vmatprep.subr.mxu0 0.0
  %455 = vmatpush1.xpose.msra.mxu0 %v422
  %456 = vmatprep.subr.mxu0 0.0
  %457 = vmatpush1.xpose.msra.mxu0 %v424
  %458 = vmatprep.subr.mxu0 0.0
  %459 = vmatpush1.xpose.msra.mxu0 %v426
  %460 = vmatprep.subr.mxu0 0.0
  %461 = vmatpush1.xpose.msra.mxu0 %v428
  %462 = vmatprep.subr.mxu0 0.0
  %463 = vmatpush1.xpose.msra.mxu0 %v430
  %464 = vmatprep.subr.mxu0 0.0
  %465 = vmatpush1.xpose.msra.mxu0 %v432
  %466 = vmatprep.subr.mxu0 0.0
  %467 = vmatpush1.xpose.msra.mxu0 %v434
  %468 = vmatprep.subr.mxu0 0.0
  %469 = vmatpush1.xpose.msra.mxu0 %v436
  %470 = vmatprep.subr.mxu0 0.0
  %471 = vmatpush1.xpose.msra.mxu0 %v438
  %472 = vmatprep.subr.mxu0 0.0
  %473 = vmatpush1.xpose.msra.mxu0 %v440
  %474 = vmatprep.subr.mxu0 0.0
  %475 = vmatpush1.xpose.msra.mxu0 %v442
  %476 = vmatprep.subr.mxu0 0.0
  %477 = vmatpush1.xpose.msra.mxu0 %v444
  %478 = vmatprep.subr.mxu0 0.0
  %479 = vmatpush1.xpose.msra.mxu0 %v446
  %480 = vmatprep.subr.mxu0 0.0
  %481 = vmatpush1.xpose.msra.mxu0 0.0
  %482 = vmatprep.subr.mxu0 0.0
  %483 = vmatpush1.xpose.msra.mxu0 0.0
  %484 = vmatprep.subr.mxu0 0.0
  %485 = vmatpush1.xpose.msra.mxu0 0.0
  %486 = vmatprep.subr.mxu0 0.0
  %487 = vmatpush1.xpose.msra.mxu0 0.0
  %488 = vmatprep.subr.mxu0 0.0
  %489 = vmatpush1.xpose.msra.mxu0 0.0
  %490 = vmatprep.subr.mxu0 0.0
  %491 = vmatpush1.xpose.msra.mxu0 0.0
  %492 = vmatprep.subr.mxu0 0.0
  %493 = vmatpush1.xpose.msra.mxu0 0.0
  %494 = vmatprep.subr.mxu0 0.0
  %495 = vmatpush1.xpose.msra.mxu0 0.0
  %496 = vmatprep.subr.mxu0 0.0
  %497 = vmatpush1.xpose.msra.mxu0 0.0
  %498 = vmatprep.subr.mxu0 0.0
  %499 = vmatpush1.xpose.msra.mxu0 0.0
  %500 = vmatprep.subr.mxu0 0.0
  %501 = vmatpush1.xpose.msra.mxu0 0.0
  %502 = vmatprep.subr.mxu0 0.0
  %503 = vmatpush1.xpose.msra.mxu0 0.0
  %504 = vmatprep.subr.mxu0 0.0
  %505 = vmatpush1.xpose.msra.mxu0 0.0
  %506 = vmatprep.subr.mxu0 0.0
  %507 = vmatpush1.xpose.msra.mxu0 0.0
  %508 = vmatprep.subr.mxu0 0.0
  %509 = vmatpush1.xpose.msra.mxu0 0.0
  %510 = vmatprep.subr.mxu0 0.0
  %511 = vmatpush1.xpose.msra.mxu0 0.0
  %512 = vmatprep.mubr.f32.mxu0 0.0
  %513 = vmatmul.mubr.f32.gmra.mrb[0].mxu0 %v411
  %v514 = vpop.f32.mrb[0].mxu0
  %v515 = vadd.f32 0.0, %v514
  %v516 = vpop.f32.mrb[0].mxu0
  %517 = vmatprep.mubr.f32.mxu0 0.0
  %518 = vmatmul.mubr.f32.gmra.mrb[0].mxu0 %v414
  %v519 = vpop.f32.mrb[0].mxu0
  %v520 = vadd.f32 0.0, %v519
  %v521 = vpop.f32.mrb[0].mxu0
  %522 = vdwg.mxu0
  %v523 = vld [vmem:[%s10] sm:$0xff]
  %v524 = vld [vmem:[%s10 + $0x8] sm:$0xff]
  %v525 = vld [vmem:[%s10 + $0x10] sm:$0xff]
  %v526 = vld [vmem:[%s10 + $0x18] sm:$0xff]
  %v527 = vld [vmem:[%s10 + $0x20] sm:$0xff]
  %v528 = vld [vmem:[%s10 + $0x28] sm:$0xff]
  %v529 = vld [vmem:[%s10 + $0x30] sm:$0xff]
  %v530 = vld [vmem:[%s10 + $0x38] sm:$0xff]
  %v531 = vld [vmem:[%s10 + $0x40] sm:$0xff]
  %v532 = vld [vmem:[%s10 + $0x48] sm:$0xff]
  %v533 = vld [vmem:[%s10 + $0x50] sm:$0xff]
  %v534 = vld [vmem:[%s10 + $0x58] sm:$0xff]
  %v535 = vld [vmem:[%s10 + $0x60] sm:$0xff]
  %v536 = vld [vmem:[%s10 + $0x68] sm:$0xff]
  %v537 = vld [vmem:[%s10 + $0x70] sm:$0xff]
  %v538 = vld [vmem:[%s10 + $0x78] sm:$0xff]
  %v539 = vadd.f32 %v515, %v523
  %v540 = vadd.f32 %v520, %v524
  %v541 = vadd.f32 %v515, %v525
  %v542 = vadd.f32 %v520, %v526
  %v543 = vadd.f32 %v515, %v527
  %v544 = vadd.f32 %v520, %v528
  %v545 = vadd.f32 %v515, %v529
  %v546 = vadd.f32 %v520, %v530
  %v547 = vadd.f32 %v515, %v531
  %v548 = vadd.f32 %v520, %v532
  %v549 = vadd.f32 %v515, %v533
  %v550 = vadd.f32 %v520, %v534
  %v551 = vadd.f32 %v515, %v535
  %v552 = vadd.f32 %v520, %v536
  %v553 = vadd.f32 %v515, %v537
  %v554 = vadd.f32 %v520, %v538
  %555 = vmax.xlane.f32.xlu0 %v539
  %v556 = vpop.xlane.xlu0 %555
  %557 = vmax.xlane.f32.xlu0 %v540
  %v558 = vpop.xlane.xlu0 %557
  %559 = vmax.xlane.f32.xlu0 %v541
  %v560 = vpop.xlane.xlu0 %559
  %561 = vmax.xlane.f32.xlu0 %v542
  %v562 = vpop.xlane.xlu0 %561
  %563 = vmax.xlane.f32.xlu0 %v543
  %v564 = vpop.xlane.xlu0 %563
  %565 = vmax.xlane.f32.xlu0 %v544
  %v566 = vpop.xlane.xlu0 %565
  %567 = vmax.xlane.f32.xlu0 %v545
  %v568 = vpop.xlane.xlu0 %567
  %569 = vmax.xlane.f32.xlu0 %v546
  %v570 = vpop.xlane.xlu0 %569
  %571 = vmax.xlane.f32.xlu0 %v547
  %v572 = vpop.xlane.xlu0 %571
  %573 = vmax.xlane.f32.xlu0 %v548
  %v574 = vpop.xlane.xlu0 %573
  %575 = vmax.xlane.f32.xlu0 %v549
  %v576 = vpop.xlane.xlu0 %575
  %577 = vmax.xlane.f32.xlu0 %v550
  %v578 = vpop.xlane.xlu0 %577
  %579 = vmax.xlane.f32.xlu0 %v551
  %v580 = vpop.xlane.xlu0 %579
  %581 = vmax.xlane.f32.xlu0 %v552
  %v582 = vpop.xlane.xlu0 %581
  %583 = vmax.xlane.f32.xlu0 %v553
  %v584 = vpop.xlane.xlu0 %583
  %585 = vmax.xlane.f32.xlu0 %v554
  %v586 = vpop.xlane.xlu0 %585
  %v587 = vsub.f32 %v539, %v556
  %v588 = vsub.f32 %v540, %v558
  %v589 = vsub.f32 %v541, %v560
  %v590 = vsub.f32 %v542, %v562
  %v591 = vsub.f32 %v543, %v564
  %v592 = vsub.f32 %v544, %v566
  %v593 = vsub.f32 %v545, %v568
  %v594 = vsub.f32 %v546, %v570
  %v595 = vsub.f32 %v547, %v572
  %v596 = vsub.f32 %v548, %v574
  %v597 = vsub.f32 %v549, %v576
  %v598 = vsub.f32 %v550, %v578
  %v599 = vsub.f32 %v551, %v580
  %v600 = vsub.f32 %v552, %v582
  %v601 = vsub.f32 %v553, %v584
  %v602 = vsub.f32 %v554, %v586
  %v603 = vmul.f32 %v587, 1.442695
  %v604 = vpow.pop %v603
  %v605 = vmul.f32 %v588, 1.442695
  %v606 = vpow.pop %v605
  %v607 = vmul.f32 %v589, 1.442695
  %v608 = vpow.pop %v607
  %v609 = vmul.f32 %v590, 1.442695
  %v610 = vpow.pop %v609
  %v611 = vmul.f32 %v591, 1.442695
  %v612 = vpow.pop %v611
  %v613 = vmul.f32 %v592, 1.442695
  %v614 = vpow.pop %v613
  %v615 = vmul.f32 %v593, 1.442695
  %v616 = vpow.pop %v615
  %v617 = vmul.f32 %v594, 1.442695
  %v618 = vpow.pop %v617
  %v619 = vmul.f32 %v595, 1.442695
  %v620 = vpow.pop %v619
  %v621 = vmul.f32 %v596, 1.442695
  %v622 = vpow.pop %v621
  %v623 = vmul.f32 %v597, 1.442695
  %v624 = vpow.pop %v623
  %v625 = vmul.f32 %v598, 1.442695
  %v626 = vpow.pop %v625
  %v627 = vmul.f32 %v599, 1.442695
  %v628 = vpow.pop %v627
  %v629 = vmul.f32 %v600, 1.442695
  %v630 = vpow.pop %v629
  %v631 = vmul.f32 %v601, 1.442695
  %v632 = vpow.pop %v631
  %v633 = vmul.f32 %v602, 1.442695
  %v634 = vpow.pop %v633
  %635 = vadd.xlane.f32.xlu0 %v604
  %v636 = vpop.xlane.xlu0 %635
  %637 = vadd.xlane.f32.xlu0 %v606
  %v638 = vpop.xlane.xlu0 %637
  %639 = vadd.xlane.f32.xlu0 %v608
  %v640 = vpop.xlane.xlu0 %639
  %641 = vadd.xlane.f32.xlu0 %v610
  %v642 = vpop.xlane.xlu0 %641
  %643 = vadd.xlane.f32.xlu0 %v612
  %v644 = vpop.xlane.xlu0 %643
  %645 = vadd.xlane.f32.xlu0 %v614
  %v646 = vpop.xlane.xlu0 %645
  %647 = vadd.xlane.f32.xlu0 %v616
  %v648 = vpop.xlane.xlu0 %647
  %649 = vadd.xlane.f32.xlu0 %v618
  %v650 = vpop.xlane.xlu0 %649
  %651 = vadd.xlane.f32.xlu0 %v620
  %v652 = vpop.xlane.xlu0 %651
  %653 = vadd.xlane.f32.xlu0 %v622
  %v654 = vpop.xlane.xlu0 %653
  %655 = vadd.xlane.f32.xlu0 %v624
  %v656 = vpop.xlane.xlu0 %655
  %657 = vadd.xlane.f32.xlu0 %v626
  %v658 = vpop.xlane.xlu0 %657
  %659 = vadd.xlane.f32.xlu0 %v628
  %v660 = vpop.xlane.xlu0 %659
  %661 = vadd.xlane.f32.xlu0 %v630
  %v662 = vpop.xlane.xlu0 %661
  %663 = vadd.xlane.f32.xlu0 %v632
  %v664 = vpop.xlane.xlu0 %663
  %665 = vadd.xlane.f32.xlu0 %v634
  %v666 = vpop.xlane.xlu0 %665
  %v667 = vrcp.pop %v636
  %v668 = vrcp.pop %v638
  %v669 = vrcp.pop %v640
  %v670 = vrcp.pop %v642
  %v671 = vrcp.pop %v644
  %v672 = vrcp.pop %v646
  %v673 = vrcp.pop %v648
  %v674 = vrcp.pop %v650
  %v675 = vrcp.pop %v652
  %v676 = vrcp.pop %v654
  %v677 = vrcp.pop %v656
  %v678 = vrcp.pop %v658
  %v679 = vrcp.pop %v660
  %v680 = vrcp.pop %v662
  %v681 = vrcp.pop %v664
  %v682 = vrcp.pop %v666
  %v683 = vmul.f32 %v604, %v667
  %v684 = vmul.f32 %v606, %v668
  %v685 = vmul.f32 %v608, %v669
  %v686 = vmul.f32 %v610, %v670
  %v687 = vmul.f32 %v612, %v671
  %v688 = vmul.f32 %v614, %v672
  %v689 = vmul.f32 %v616, %v673
  %v690 = vmul.f32 %v618, %v674
  %v691 = vmul.f32 %v620, %v675
  %v692 = vmul.f32 %v622, %v676
  %v693 = vmul.f32 %v624, %v677
  %v694 = vmul.f32 %v626, %v678
  %v695 = vmul.f32 %v628, %v679
  %v696 = vmul.f32 %v630, %v680
  %v697 = vmul.f32 %v632, %v681
  %v698 = vmul.f32 %v634, %v682
  %v699 = vadd.f32 %v683, %v685
  %v700 = vadd.f32 %v684, %v686
  %v701 = vadd.f32 %v699, %v687
  %v702 = vadd.f32 %v700, %v688
  %v703 = vadd.f32 %v701, %v689
  %v704 = vadd.f32 %v702, %v690
  %v705 = vadd.f32 %v703, %v691
  %v706 = vadd.f32 %v704, %v692
  %v707 = vadd.f32 %v705, %v693
  %v708 = vadd.f32 %v706, %v694
  %v709 = vadd.f32 %v707, %v695
  %v710 = vadd.f32 %v708, %v696
  %v711 = vadd.f32 %v709, %v697
  %v712 = vadd.f32 %v710, %v698
  %713 = vmatprep.subr.mxu0 0.0
  %714 = vmatpush1.msra.mxu0 %v346
  %715 = vmatprep.subr.mxu0 0.0
  %716 = vmatpush1.msra.mxu0 %v347
  %717 = vmatprep.subr.mxu0 0.0
  %718 = vmatpush1.msra.mxu0 %v348
  %719 = vmatprep.subr.mxu0 0.0
  %720 = vmatpush1.msra.mxu0 %v349
  %721 = vmatprep.subr.mxu0 0.0
  %722 = vmatpush1.msra.mxu0 %v350
  %723 = vmatprep.subr.mxu0 0.0
  %724 = vmatpush1.msra.mxu0 %v351
  %725 = vmatprep.subr.mxu0 0.0
  %726 = vmatpush1.msra.mxu0 %v352
  %727 = vmatprep.subr.mxu0 0.0
  %728 = vmatpush1.msra.mxu0 %v353
  %729 = vmatprep.subr.mxu0 0.0
  %730 = vmatpush1.msra.mxu0 %v354
  %731 = vmatprep.subr.mxu0 0.0
  %732 = vmatpush1.msra.mxu0 %v355
  %733 = vmatprep.subr.mxu0 0.0
  %734 = vmatpush1.msra.mxu0 %v356
  %735 = vmatprep.subr.mxu0 0.0
  %736 = vmatpush1.msra.mxu0 %v357
  %737 = vmatprep.subr.mxu0 0.0
  %738 = vmatpush1.msra.mxu0 %v358
  %739 = vmatprep.subr.mxu0 0.0
  %740 = vmatpush1.msra.mxu0 %v359
  %741 = vmatprep.subr.mxu0 0.0
  %742 = vmatpush1.msra.mxu0 %v360
  %743 = vmatprep.subr.mxu0 0.0
  %744 = vmatpush1.msra.mxu0 %v361
  %745 = vmatprep.subr.mxu0 0.0
  %746 = vmatpush1.msra.mxu0 0.0
  %747 = vmatprep.subr.mxu0 0.0
  %748 = vmatpush1.msra.mxu0 0.0
  %749 = vmatprep.subr.mxu0 0.0
  %750 = vmatpush1.msra.mxu0 0.0
  %751 = vmatprep.subr.mxu0 0.0
  %752 = vmatpush1.msra.mxu0 0.0
  %753 = vmatprep.subr.mxu0 0.0
  %754 = vmatpush1.msra.mxu0 0.0
  %755 = vmatprep.subr.mxu0 0.0
  %756 = vmatpush1.msra.mxu0 0.0
  %757 = vmatprep.subr.mxu0 0.0
  %758 = vmatpush1.msra.mxu0 0.0
  %759 = vmatprep.subr.mxu0 0.0
  %760 = vmatpush1.msra.mxu0 0.0
  %761 = vmatprep.subr.mxu0 0.0
  %762 = vmatpush1.msra.mxu0 0.0
  %763 = vmatprep.subr.mxu0 0.0
  %764 = vmatpush1.msra.mxu0 0.0
  %765 = vmatprep.subr.mxu0 0.0
  %766 = vmatpush1.msra.mxu0 0.0
  %767 = vmatprep.subr.mxu0 0.0
  %768 = vmatpush1.msra.mxu0 0.0
  %769 = vmatprep.subr.mxu0 0.0
  %770 = vmatpush1.msra.mxu0 0.0
  %771 = vmatprep.subr.mxu0 0.0
  %772 = vmatpush1.msra.mxu0 0.0
  %773 = vmatprep.subr.mxu0 0.0
  %774 = vmatpush1.msra.mxu0 0.0
  %775 = vmatprep.subr.mxu0 0.0
  %776 = vmatpush1.msra.mxu0 0.0
  %777 = vmatprep.mubr.f32.mxu0 0.0
  %778 = vmatmul.mubr.f32.gmra.mrb[0].mxu0 %v711
  %v779 = vpop.f32.mrb[0].mxu0
  %v780 = vadd.f32 0.0, %v779
  %v781 = vpop.f32.mrb[0].mxu0
  %782 = vmatprep.mubr.f32.mxu0 0.0
  %783 = vmatmul.mubr.f32.gmra.mrb[0].mxu0 %v712
  %v784 = vpop.f32.mrb[0].mxu0
  %v785 = vadd.f32 0.0, %v784
  %v786 = vpop.f32.mrb[0].mxu0
  %787 = vdwg.mxu0
  %v788 = vld [vmem:[%s5] sm:$0xff]
  %v789 = vld [vmem:[%s5 + $0x8] sm:$0xff]
  %v790 = vld [vmem:[%s5 + $0x10] sm:$0xff]
  %v791 = vld [vmem:[%s5 + $0x18] sm:$0xff]
  %v792 = vld [vmem:[%s5 + $0x20] sm:$0xff]
  %v793 = vld [vmem:[%s5 + $0x28] sm:$0xff]
  %v794 = vld [vmem:[%s5 + $0x30] sm:$0xff]
  %v795 = vld [vmem:[%s5 + $0x38] sm:$0xff]
  %v796 = vlaneseq
  %v797 = vshrl.u32 %v796, 7
  %v798 = vsub.s32 0, %v797
  %v799 = vrot.slane %v135, %v798
  %v801 = vsel %vm164, %v780, 0
  %v804 = vsel %vm164, %v785, 0
  %806 = vmatprep.subr.mxu0 0.0
  %807 = vmatpush1.msra.mxu0 %v788
  %808 = vmatprep.subr.mxu0 0.0
  %809 = vmatpush1.msra.mxu0 %v789
  %810 = vmatprep.subr.mxu0 0.0
  %811 = vmatpush1.msra.mxu0 %v790
  %812 = vmatprep.subr.mxu0 0.0
  %813 = vmatpush1.msra.mxu0 %v791
  %814 = vmatprep.subr.mxu0 0.0
  %815 = vmatpush1.msra.mxu0 %v792
  %816 = vmatprep.subr.mxu0 0.0
  %817 = vmatpush1.msra.mxu0 %v793
  %818 = vmatprep.subr.mxu0 0.0
  %819 = vmatpush1.msra.mxu0 %v794
  %820 = vmatprep.subr.mxu0 0.0
  %821 = vmatpush1.msra.mxu0 %v795
  %822 = vmatprep.subr.mxu0 0.0
  %823 = vmatpush1.msra.mxu0 0.0
  %824 = vmatprep.subr.mxu0 0.0
  %825 = vmatpush1.msra.mxu0 0.0
  %826 = vmatprep.subr.mxu0 0.0
  %827 = vmatpush1.msra.mxu0 0.0
  %828 = vmatprep.subr.mxu0 0.0
  %829 = vmatpush1.msra.mxu0 0.0
  %830 = vmatprep.subr.mxu0 0.0
  %831 = vmatpush1.msra.mxu0 0.0
  %832 = vmatprep.subr.mxu0 0.0
  %833 = vmatpush1.msra.mxu0 0.0
  %834 = vmatprep.subr.mxu0 0.0
  %835 = vmatpush1.msra.mxu0 0.0
  %836 = vmatprep.subr.mxu0 0.0
  %837 = vmatpush1.msra.mxu0 0.0
  %838 = vmatprep.subr.mxu0 0.0
  %839 = vmatpush1.msra.mxu0 0.0
  %840 = vmatprep.subr.mxu0 0.0
  %841 = vmatpush1.msra.mxu0 0.0
  %842 = vmatprep.subr.mxu0 0.0
  %843 = vmatpush1.msra.mxu0 0.0
  %844 = vmatprep.subr.mxu0 0.0
  %845 = vmatpush1.msra.mxu0 0.0
  %846 = vmatprep.subr.mxu0 0.0
  %847 = vmatpush1.msra.mxu0 0.0
  %848 = vmatprep.subr.mxu0 0.0
  %849 = vmatpush1.msra.mxu0 0.0
  %850 = vmatprep.subr.mxu0 0.0
  %851 = vmatpush1.msra.mxu0 0.0
  %852 = vmatprep.subr.mxu0 0.0
  %853 = vmatpush1.msra.mxu0 0.0
  %854 = vmatprep.subr.mxu0 0.0
  %855 = vmatpush1.msra.mxu0 0.0
  %856 = vmatprep.subr.mxu0 0.0
  %857 = vmatpush1.msra.mxu0 0.0
  %858 = vmatprep.subr.mxu0 0.0
  %859 = vmatpush1.msra.mxu0 0.0
  %860 = vmatprep.subr.mxu0 0.0
  %861 = vmatpush1.msra.mxu0 0.0
  %862 = vmatprep.subr.mxu0 0.0
  %863 = vmatpush1.msra.mxu0 0.0
  %864 = vmatprep.subr.mxu0 0.0
  %865 = vmatpush1.msra.mxu0 0.0
  %866 = vmatprep.subr.mxu0 0.0
  %867 = vmatpush1.msra.mxu0 0.0
  %868 = vmatprep.subr.mxu0 0.0
  %869 = vmatpush1.msra.mxu0 0.0
  %870 = vmatprep.mubr.f32.mxu0 0.0
  %871 = vmatmul.mubr.f32.gmra.mrb[0].mxu0 %v801
  %v872 = vpop.f32.mrb[0].mxu0
  %v873 = vadd.f32 %v799, %v872
  %v874 = vpop.f32.mrb[0].mxu0
  %875 = vmatprep.mubr.f32.mxu0 0.0
  %876 = vmatmul.mubr.f32.gmra.mrb[0].mxu0 %v804
  %v877 = vpop.f32.mrb[0].mxu0
  %v878 = vadd.f32 %v799, %v877
  %v879 = vpop.f32.mrb[0].mxu0
  %880 = vdwg.mxu0
  %v881 = vadd.f32 %v127, %v873
  %v882 = vadd.f32 %v132, %v878
  %v883 = vsel %vm164, %v881, 0.0
  %884 = vadd.xlane.f32.xlu0 %v883
  %v885 = vpop.xlane.xlu0 %884
  %v886 = vsel %vm164, %v882, 0.0
  %887 = vadd.xlane.f32.xlu0 %v886
  %v888 = vpop.xlane.xlu0 %887
  %v889 = vmul.f32 %v885, 0.015625
  %v890 = vmul.f32 %v888, 0.015625
  %v891 = vmul.f32 %v881, %v881
  %v892 = vmul.f32 %v882, %v882
  %v893 = vsel %vm164, %v891, 0.0
  %894 = vadd.xlane.f32.xlu0 %v893
  %v895 = vpop.xlane.xlu0 %894
  %v896 = vsel %vm164, %v892, 0.0
  %897 = vadd.xlane.f32.xlu0 %v896
  %v898 = vpop.xlane.xlu0 %897
  %v899 = vmul.f32 %v895, 0.015625
  %v900 = vmul.f32 %v898, 0.015625
  %v901 = vmul.f32 %v889, %v889
  %v902 = vmul.f32 %v890, %v890
  %v903 = vsub.f32 %v899, %v901
  %v904 = vsub.f32 %v900, %v902
  %v905 = vsub.f32 %v881, %v889
  %v906 = vsub.f32 %v882, %v890
  %v907 = vadd.f32 %v903, 1e-05
  %v908 = vadd.f32 %v904, 1e-05
  %v909 = vrsqrt.pop %v907
  %v910 = vrsqrt.pop %v908
  %v911 = vmul.f32 %v905, %v909
  %v912 = vmul.f32 %v906, %v910
  %v913 = vlaneseq
  %v914 = vshrl.u32 %v913, 7
  %v915 = vsub.s32 1, %v914
  %v916 = vrot.slane %v135, %v915
  %v917 = vmul.f32 %v911, %v916
  %v918 = vmul.f32 %v912, %v916
  %v919 = vlaneseq
  %v920 = vshrl.u32 %v919, 7
  %v921 = vsub.s32 2, %v920
  %v922 = vrot.slane %v135, %v921
  %v923 = vadd.f32 %v917, %v922
  %v924 = vadd.f32 %v918, %v922
  %v925 = vld [vmem:[%s7] sm:$0xff]
  %v926 = vld [vmem:[%s7 + $0x8] sm:$0xff]
  %v927 = vld [vmem:[%s7 + $0x10] sm:$0xff]
  %v928 = vld [vmem:[%s7 + $0x18] sm:$0xff]
  %v929 = vld [vmem:[%s7 + $0x20] sm:$0xff]
  %v930 = vld [vmem:[%s7 + $0x28] sm:$0xff]
  %v931 = vld [vmem:[%s7 + $0x30] sm:$0xff]
  %v932 = vld [vmem:[%s7 + $0x38] sm:$0xff]
  %v933 = vld [vmem:[%s7 + $0x40] sm:$0xff]
  %v934 = vld [vmem:[%s7 + $0x48] sm:$0xff]
  %v935 = vld [vmem:[%s7 + $0x50] sm:$0xff]
  %v936 = vld [vmem:[%s7 + $0x58] sm:$0xff]
  %v937 = vld [vmem:[%s7 + $0x60] sm:$0xff]
  %v938 = vld [vmem:[%s7 + $0x68] sm:$0xff]
  %v939 = vld [vmem:[%s7 + $0x70] sm:$0xff]
  %v940 = vld [vmem:[%s7 + $0x78] sm:$0xff]
  %v941 = vld [vmem:[%s8] sm:$0x3]
  %v943 = vlaneseq
  %v944 = vshrl.u32 %v943, 7
  %v945 = vsub.s32 0, %v944
  %v946 = vrot.slane %v941, %v945
  %v947 = vlaneseq
  %v948 = vshrl.u32 %v947, 7
  %v949 = vsub.s32 1, %v948
  %v950 = vrot.slane %v941, %v949
  %v954 = vsel %vm164, %v923, 0
  %v957 = vsel %vm164, %v924, 0
  %959 = vmatprep.subr.mxu0 %v926
  %960 = vmatpush1.msra.mxu0 %v925
  %961 = vmatprep.subr.mxu0 %v928
  %962 = vmatpush1.msra.mxu0 %v927
  %963 = vmatprep.subr.mxu0 %v930
  %964 = vmatpush1.msra.mxu0 %v929
  %965 = vmatprep.subr.mxu0 %v932
  %966 = vmatpush1.msra.mxu0 %v931
  %967 = vmatprep.subr.mxu0 %v934
  %968 = vmatpush1.msra.mxu0 %v933
  %969 = vmatprep.subr.mxu0 %v936
  %970 = vmatpush1.msra.mxu0 %v935
  %971 = vmatprep.subr.mxu0 %v938
  %972 = vmatpush1.msra.mxu0 %v937
  %973 = vmatprep.subr.mxu0 %v940
  %974 = vmatpush1.msra.mxu0 %v939
  %975 = vmatprep.subr.mxu0 0.0
  %976 = vmatpush1.msra.mxu0 0.0
  %977 = vmatprep.subr.mxu0 0.0
  %978 = vmatpush1.msra.mxu0 0.0
  %979 = vmatprep.subr.mxu0 0.0
  %980 = vmatpush1.msra.mxu0 0.0
  %981 = vmatprep.subr.mxu0 0.0
  %982 = vmatpush1.msra.mxu0 0.0
  %983 = vmatprep.subr.mxu0 0.0
  %984 = vmatpush1.msra.mxu0 0.0
  %985 = vmatprep.subr.mxu0 0.0
  %986 = vmatpush1.msra.mxu0 0.0
  %987 = vmatprep.subr.mxu0 0.0
  %988 = vmatpush1.msra.mxu0 0.0
  %989 = vmatprep.subr.mxu0 0.0
  %990 = vmatpush1.msra.mxu0 0.0
  %991 = vmatprep.subr.mxu0 0.0
  %992 = vmatpush1.msra.mxu0 0.0
  %993 = vmatprep.subr.mxu0 0.0
  %994 = vmatpush1.msra.mxu0 0.0
  %995 = vmatprep.subr.mxu0 0.0
  %996 = vmatpush1.msra.mxu0 0.0
  %997 = vmatprep.subr.mxu0 0.0
  %998 = vmatpush1.msra.mxu0 0.0
  %999 = vmatprep.subr.mxu0 0.0
  %1000 = vmatpush1.msra.mxu0 0.0
  %1001 = vmatprep.subr.mxu0 0.0
  %1002 = vmatpush1.msra.mxu0 0.0
  %1003 = vmatprep.subr.mxu0 0.0
  %1004 = vmatpush1.msra.mxu0 0.0
  %1005 = vmatprep.subr.mxu0 0.0
  %1006 = vmatpush1.msra.mxu0 0.0
  %1007 = vmatprep.subr.mxu0 0.0
  %1008 = vmatpush1.msra.mxu0 0.0
  %1009 = vmatprep.subr.mxu0 0.0
  %1010 = vmatpush1.msra.mxu0 0.0
  %1011 = vmatprep.subr.mxu0 0.0
  %1012 = vmatpush1.msra.mxu0 0.0
  %1013 = vmatprep.subr.mxu0 0.0
  %1014 = vmatpush1.msra.mxu0 0.0
  %1015 = vmatprep.subr.mxu0 0.0
  %1016 = vmatpush1.msra.mxu0 0.0
  %1017 = vmatprep.subr.mxu0 0.0
  %1018 = vmatpush1.msra.mxu0 0.0
  %1019 = vmatprep.subr.mxu0 0.0
  %1020 = vmatpush1.msra.mxu0 0.0
  %1021 = vmatprep.subr.mxu0 0.0
  %1022 = vmatpush1.msra.mxu0 0.0
  %1023 = vmatprep.mubr.f32.mxu0 0.0
  %1024 = vmatmul.mubr.f32.gmra.mrb[0].mxu0 %v954
  %v1025 = vpop.f32.mrb[0].mxu0
  %v1026 = vadd.f32 %v946, %v1025
  %v1027 = vpop.f32.mrb[0].mxu0
  %v1028 = vadd.f32 %v950, %v1027
  %1029 = vmatprep.mubr.f32.mxu0 0.0
  %1030 = vmatmul.mubr.f32.gmra.mrb[0].mxu0 %v957
  %v1031 = vpop.f32.mrb[0].mxu0
  %v1032 = vadd.f32 %v946, %v1031
  %v1033 = vpop.f32.mrb[0].mxu0
  %v1034 = vadd.f32 %v950, %v1033
  %1035 = vdwg.mxu0
  %v1036 = vmax.f32 %v1026, 0.0
  %v1037 = vmax.f32 %v1028, 0.0
  %v1038 = vmax.f32 %v1032, 0.0
  %v1039 = vmax.f32 %v1034, 0.0
  %v1040 = vld [vmem:[%s9] sm:$0xff]
  %v1041 = vld [vmem:[%s9 + $0x8] sm:$0xff]
  %v1042 = vld [vmem:[%s9 + $0x10] sm:$0xff]
  %v1043 = vld [vmem:[%s9 + $0x18] sm:$0xff]
  %v1044 = vld [vmem:[%s9 + $0x20] sm:$0xff]
  %v1045 = vld [vmem:[%s9 + $0x28] sm:$0xff]
  %v1046 = vld [vmem:[%s9 + $0x30] sm:$0xff]
  %v1047 = vld [vmem:[%s9 + $0x38] sm:$0xff]
  %v1048 = vld [vmem:[%s9 + $0x40] sm:$0xff]
  %v1049 = vld [vmem:[%s9 + $0x48] sm:$0xff]
  %v1050 = vld [vmem:[%s9 + $0x50] sm:$0xff]
  %v1051 = vld [vmem:[%s9 + $0x58] sm:$0xff]
  %v1052 = vld [vmem:[%s9 + $0x60] sm:$0xff]
  %v1053 = vld [vmem:[%s9 + $0x68] sm:$0xff]
  %v1054 = vld [vmem:[%s9 + $0x70] sm:$0xff]
  %v1055 = vld [vmem:[%s9 + $0x78] sm:$0xff]
  %v1056 = vld [vmem:[%s9 + $0x80] sm:$0xff]
  %v1057 = vld [vmem:[%s9 + $0x88] sm:$0xff]
  %v1058 = vld [vmem:[%s9 + $0x90] sm:$0xff]
  %v1059 = vld [vmem:[%s9 + $0x98] sm:$0xff]
  %v1060 = vld [vmem:[%s9 + $0xa0] sm:$0xff]
  %v1061 = vld [vmem:[%s9 + $0xa8] sm:$0xff]
  %v1062 = vld [vmem:[%s9 + $0xb0] sm:$0xff]
  %v1063 = vld [vmem:[%s9 + $0xb8] sm:$0xff]
  %v1064 = vld [vmem:[%s9 + $0xc0] sm:$0xff]
  %v1065 = vld [vmem:[%s9 + $0xc8] sm:$0xff]
  %v1066 = vld [vmem:[%s9 + $0xd0] sm:$0xff]
  %v1067 = vld [vmem:[%s9 + $0xd8] sm:$0xff]
  %v1068 = vld [vmem:[%s9 + $0xe0] sm:$0xff]
  %v1069 = vld [vmem:[%s9 + $0xe8] sm:$0xff]
  %v1070 = vld [vmem:[%s9 + $0xf0] sm:$0xff]
  %v1071 = vld [vmem:[%s9 + $0xf8] sm:$0xff]
  %v1072 = vlaneseq
  %v1073 = vshrl.u32 %v1072, 7
  %v1074 = vsub.s32 5, %v1073
  %v1075 = vrot.slane %v135, %v1074
  %1076 = vmatprep.subr.mxu0 0.0
  %1077 = vmatpush1.msra.mxu0 %v1040
  %1078 = vmatprep.subr.mxu0 0.0
  %1079 = vmatpush1.msra.mxu0 %v1041
  %1080 = vmatprep.subr.mxu0 0.0
  %1081 = vmatpush1.msra.mxu0 %v1042
  %1082 = vmatprep.subr.mxu0 0.0
  %1083 = vmatpush1.msra.mxu0 %v1043
  %1084 = vmatprep.subr.mxu0 0.0
  %1085 = vmatpush1.msra.mxu0 %v1044
  %1086 = vmatprep.subr.mxu0 0.0
  %1087 = vmatpush1.msra.mxu0 %v1045
  %1088 = vmatprep.subr.mxu0 0.0
  %1089 = vmatpush1.msra.mxu0 %v1046
  %1090 = vmatprep.subr.mxu0 0.0
  %1091 = vmatpush1.msra.mxu0 %v1047
  %1092 = vmatprep.subr.mxu0 0.0
  %1093 = vmatpush1.msra.mxu0 %v1048
  %1094 = vmatprep.subr.mxu0 0.0
  %1095 = vmatpush1.msra.mxu0 %v1049
  %1096 = vmatprep.subr.mxu0 0.0
  %1097 = vmatpush1.msra.mxu0 %v1050
  %1098 = vmatprep.subr.mxu0 0.0
  %1099 = vmatpush1.msra.mxu0 %v1051
  %1100 = vmatprep.subr.mxu0 0.0
  %1101 = vmatpush1.msra.mxu0 %v1052
  %1102 = vmatprep.subr.mxu0 0.0
  %1103 = vmatpush1.msra.mxu0 %v1053
  %1104 = vmatprep.subr.mxu0 0.0
  %1105 = vmatpush1.msra.mxu0 %v1054
  %1106 = vmatprep.subr.mxu0 0.0
  %1107 = vmatpush1.msra.mxu0 %v1055
  %1108 = vmatprep.subr.mxu0 0.0
  %1109 = vmatpush1.msra.mxu0 %v1056
  %1110 = vmatprep.subr.mxu0 0.0
  %1111 = vmatpush1.msra.mxu0 %v1057
  %1112 = vmatprep.subr.mxu0 0.0
  %1113 = vmatpush1.msra.mxu0 %v1058
  %1114 = vmatprep.subr.mxu0 0.0
  %1115 = vmatpush1.msra.mxu0 %v1059
  %1116 = vmatprep.subr.mxu0 0.0
  %1117 = vmatpush1.msra.mxu0 %v1060
  %1118 = vmatprep.subr.mxu0 0.0
  %1119 = vmatpush1.msra.mxu0 %v1061
  %1120 = vmatprep.subr.mxu0 0.0
  %1121 = vmatpush1.msra.mxu0 %v1062
  %1122 = vmatprep.subr.mxu0 0.0
  %1123 = vmatpush1.msra.mxu0 %v1063
  %1124 = vmatprep.subr.mxu0 0.0
  %1125 = vmatpush1.msra.mxu0 %v1064
  %1126 = vmatprep.subr.mxu0 0.0
  %1127 = vmatpush1.msra.mxu0 %v1065
  %1128 = vmatprep.subr.mxu0 0.0
  %1129 = vmatpush1.msra.mxu0 %v1066
  %1130 = vmatprep.subr.mxu0 0.0
  %1131 = vmatpush1.msra.mxu0 %v1067
  %1132 = vmatprep.subr.mxu0 0.0
  %1133 = vmatpush1.msra.mxu0 %v1068
  %1134 = vmatprep.subr.mxu0 0.0
  %1135 = vmatpush1.msra.mxu0 %v1069
  %1136 = vmatprep.subr.mxu0 0.0
  %1137 = vmatpush1.msra.mxu0 %v1070
  %1138 = vmatprep.subr.mxu0 0.0
  %1139 = vmatpush1.msra.mxu0 %v1071
  %1140 = vmatprep.mubr.f32.mxu0 %v1037
  %1141 = vmatmul.mubr.f32.gmra.mrb[0].mxu0 %v1036
  %v1142 = vpop.f32.mrb[0].mxu0
  %v1143 = vadd.f32 %v1075, %v1142
  %v1144 = vpop.f32.mrb[0].mxu0
  %1145 = vmatprep.mubr.f32.mxu0 %v1039
  %1146 = vmatmul.mubr.f32.gmra.mrb[0].mxu0 %v1038
  %v1147 = vpop.f32.mrb[0].mxu0
  %v1148 = vadd.f32 %v1075, %v1147
  %v1149 = vpop.f32.mrb[0].mxu0
  %1150 = vdwg.mxu0
  %v1151 = vadd.f32 %v923, %v1143
  %v1152 = vadd.f32 %v924, %v1148
  %v1153 = vsel %vm164, %v1151, 0.0
  %1154 = vadd.xlane.f32.xlu0 %v1153
  %v1155 = vpop.xlane.xlu0 %1154
  %v1156 = vsel %vm164, %v1152, 0.0
  %1157 = vadd.xlane.f32.xlu0 %v1156
  %v1158 = vpop.xlane.xlu0 %1157
  %v1159 = vmul.f32 %v1155, 0.015625
  %v1160 = vmul.f32 %v1158, 0.015625
  %v1161 = vmul.f32 %v1151, %v1151
  %v1162 = vmul.f32 %v1152, %v1152
  %v1163 = vsel %vm164, %v1161, 0.0
  %1164 = vadd.xlane.f32.xlu0 %v1163
  %v1165 = vpop.xlane.xlu0 %1164
  %v1166 = vsel %vm164, %v1162, 0.0
  %1167 = vadd.xlane.f32.xlu0 %v1166
  %v1168 = vpop.xlane.xlu0 %1167
  %v1169 = vmul.f32 %v1165, 0.015625
  %v1170 = vmul.f32 %v1168, 0.015625
  %v1171 = vmul.f32 %v1159, %v1159
  %v1172 = vmul.f32 %v1160, %v1160
  %v1173 = vsub.f32 %v1169, %v1171
  %v1174 = vsub.f32 %v1170, %v1172
  %v1175 = vsub.f32 %v1151, %v1159
  %v1176 = vsub.f32 %v1152, %v1160
  %v1177 = vadd.f32 %v1173, 1e-05
  %v1178 = vadd.f32 %v1174, 1e-05
  %v1179 = vrsqrt.pop %v1177
  %v1180 = vrsqrt.pop %v1178
  %v1181 = vmul.f32 %v1175, %v1179
  %v1182 = vmul.f32 %v1176, %v1180
  %v1183 = vlaneseq
  %v1184 = vshrl.u32 %v1183, 7
  %v1185 = vsub.s32 3, %v1184
  %v1186 = vrot.slane %v135, %v1185
  %v1187 = vmul.f32 %v1181, %v1186
  %v1188 = vmul.f32 %v1182, %v1186
  %v1189 = vlaneseq
  %v1190 = vshrl.u32 %v1189, 7
  %v1191 = vsub.s32 4, %v1190
  %v1192 = vrot.slane %v135, %v1191
  %v1193 = vadd.f32 %v1187, %v1192
  %v1194 = vadd.f32 %v1188, %v1192
  %s1195 = scalar_lea.vmem %s6, 8
  %v1196 = vld [vmem:[%s1195] sm:$0xff]
  %s1197 = scalar_lea.vmem %s3, 128
  %v1198 = vld [vmem:[%s1197] sm:$0xff]
  %v1199 = vld [vmem:[%s1197 + $0x8] sm:$0xff]
  %v1200 = vld [vmem:[%s1197 + $0x10] sm:$0xff]
  %v1201 = vld [vmem:[%s1197 + $0x18] sm:$0xff]
  %v1202 = vld [vmem:[%s1197 + $0x20] sm:$0xff]
  %v1203 = vld [vmem:[%s1197 + $0x28] sm:$0xff]
  %v1204 = vld [vmem:[%s1197 + $0x30] sm:$0xff]
  %v1205 = vld [vmem:[%s1197 + $0x38] sm:$0xff]
  %v1206 = vld [vmem:[%s1197 + $0x40] sm:$0xff]
  %v1207 = vld [vmem:[%s1197 + $0x48] sm:$0xff]
  %v1208 = vld [vmem:[%s1197 + $0x50] sm:$0xff]
  %v1209 = vld [vmem:[%s1197 + $0x58] sm:$0xff]
  %v1210 = vld [vmem:[%s1197 + $0x60] sm:$0xff]
  %v1211 = vld [vmem:[%s1197 + $0x68] sm:$0xff]
  %v1212 = vld [vmem:[%s1197 + $0x70] sm:$0xff]
  %v1213 = vld [vmem:[%s1197 + $0x78] sm:$0xff]
  %s1214 = scalar_lea.vmem %s4, 2
  %v1215 = vld [vmem:[%s1214] sm:$0x3]
  %v1217 = vlaneseq
  %v1218 = vshrl.u32 %v1217, 7
  %v1219 = vsub.s32 0, %v1218
  %v1220 = vrot.slane %v1215, %v1219
  %v1221 = vlaneseq
  %v1222 = vshrl.u32 %v1221, 7
  %v1223 = vsub.s32 1, %v1222
  %v1224 = vrot.slane %v1215, %v1223
  %v1228 = vsel %vm164, %v1193, 0
  %v1231 = vsel %vm164, %v1194, 0
  %1233 = vmatprep.subr.mxu0 %v1199
  %1234 = vmatpush1.msra.mxu0 %v1198
  %1235 = vmatprep.subr.mxu0 %v1201
  %1236 = vmatpush1.msra.mxu0 %v1200
  %1237 = vmatprep.subr.mxu0 %v1203
  %1238 = vmatpush1.msra.mxu0 %v1202
  %1239 = vmatprep.subr.mxu0 %v1205
  %1240 = vmatpush1.msra.mxu0 %v1204
  %1241 = vmatprep.subr.mxu0 %v1207
  %1242 = vmatpush1.msra.mxu0 %v1206
  %1243 = vmatprep.subr.mxu0 %v1209
  %1244 = vmatpush1.msra.mxu0 %v1208
  %1245 = vmatprep.subr.mxu0 %v1211
  %1246 = vmatpush1.msra.mxu0 %v1210
  %1247 = vmatprep.subr.mxu0 %v1213
  %1248 = vmatpush1.msra.mxu0 %v1212
  %1249 = vmatprep.subr.mxu0 0.0
  %1250 = vmatpush1.msra.mxu0 0.0
  %1251 = vmatprep.subr.mxu0 0.0
  %1252 = vmatpush1.msra.mxu0 0.0
  %1253 = vmatprep.subr.mxu0 0.0
  %1254 = vmatpush1.msra.mxu0 0.0
  %1255 = vmatprep.subr.mxu0 0.0
  %1256 = vmatpush1.msra.mxu0 0.0
  %1257 = vmatprep.subr.mxu0 0.0
  %1258 = vmatpush1.msra.mxu0 0.0
  %1259 = vmatprep.subr.mxu0 0.0
  %1260 = vmatpush1.msra.mxu0 0.0
  %1261 = vmatprep.subr.mxu0 0.0
  %1262 = vmatpush1.msra.mxu0 0.0
  %1263 = vmatprep.subr.mxu0 0.0
  %1264 = vmatpush1.msra.mxu0 0.0
  %1265 = vmatprep.subr.mxu0 0.0
  %1266 = vmatpush1.msra.mxu0 0.0
  %1267 = vmatprep.subr.mxu0 0.0
  %1268 = vmatpush1.msra.mxu0 0.0
  %1269 = vmatprep.subr.mxu0 0.0
  %1270 = vmatpush1.msra.mxu0 0.0
  %1271 = vmatprep.subr.mxu0 0.0
  %1272 = vmatpush1.msra.mxu0 0.0
  %1273 = vmatprep.subr.mxu0 0.0
  %1274 = vmatpush1.msra.mxu0 0.0
  %1275 = vmatprep.subr.mxu0 0.0
  %1276 = vmatpush1.msra.mxu0 0.0
  %1277 = vmatprep.subr.mxu0 0.0
  %1278 = vmatpush1.msra.mxu0 0.0
  %1279 = vmatprep.subr.mxu0 0.0
  %1280 = vmatpush1.msra.mxu0 0.0
  %1281 = vmatprep.subr.mxu0 0.0
  %1282 = vmatpush1.msra.mxu0 0.0
  %1283 = vmatprep.subr.mxu0 0.0
  %1284 = vmatpush1.msra.mxu0 0.0
  %1285 = vmatprep.subr.mxu0 0.0
  %1286 = vmatpush1.msra.mxu0 0.0
  %1287 = vmatprep.subr.mxu0 0.0
  %1288 = vmatpush1.msra.mxu0 0.0
  %1289 = vmatprep.subr.mxu0 0.0
  %1290 = vmatpush1.msra.mxu0 0.0
  %1291 = vmatprep.subr.mxu0 0.0
  %1292 = vmatpush1.msra.mxu0 0.0
  %1293 = vmatprep.subr.mxu0 0.0
  %1294 = vmatpush1.msra.mxu0 0.0
  %1295 = vmatprep.subr.mxu0 0.0
  %1296 = vmatpush1.msra.mxu0 0.0
  %1297 = vmatprep.mubr.f32.mxu0 0.0
  %1298 = vmatmul.mubr.f32.gmra.mrb[0].mxu0 %v1228
  %v1299 = vpop.f32.mrb[0].mxu0
  %v1300 = vadd.f32 %v1220, %v1299
  %v1301 = vpop.f32.mrb[0].mxu0
  %v1302 = vadd.f32 %v1224, %v1301
  %1303 = vmatprep.mubr.f32.mxu0 0.0
  %1304 = vmatmul.mubr.f32.gmra.mrb[0].mxu0 %v1231
  %v1305 = vpop.f32.mrb[0].mxu0
  %v1306 = vadd.f32 %v1220, %v1305
  %v1307 = vpop.f32.mrb[0].mxu0
  %v1308 = vadd.f32 %v1224, %v1307
  %1309 = vdwg.mxu0
  %v1310 = vmul.f32 %v1300, 0.35355338
  %v1311 = vmul.f32 %v1306, 0.35355338
  %v1312 = vmul.f32 %v1300, %v283
  %v1313 = vmul.f32 %v1306, %v285
  %v1314 = vmul.f32 %v1300, %v287
  %v1315 = vmul.f32 %v1306, %v289
  %v1316 = vmul.f32 %v1300, %v291
  %v1317 = vmul.f32 %v1306, %v293
  %v1318 = vmul.f32 %v1300, %v295
  %v1319 = vmul.f32 %v1306, %v297
  %v1320 = vmul.f32 %v1300, %v299
  %v1321 = vmul.f32 %v1306, %v301
  %v1322 = vmul.f32 %v1300, %v303
  %v1323 = vmul.f32 %v1306, %v305
  %v1324 = vmul.f32 %v1300, %v307
  %v1325 = vmul.f32 %v1306, %v309
  %v1326 = vmul.f32 %v1300, %v311
  %v1327 = vmul.f32 %v1306, %v313
  %v1328 = vmul.f32 %v1302, %v250
  %v1329 = vmul.f32 %v1308, %v251
  %v1330 = vmul.f32 %v1302, %v252
  %v1331 = vmul.f32 %v1308, %v253
  %v1332 = vmul.f32 %v1302, %v254
  %v1333 = vmul.f32 %v1308, %v255
  %v1334 = vmul.f32 %v1302, %v256
  %v1335 = vmul.f32 %v1308, %v257
  %v1336 = vmul.f32 %v1302, %v258
  %v1337 = vmul.f32 %v1308, %v259
  %v1338 = vmul.f32 %v1302, %v260
  %v1339 = vmul.f32 %v1308, %v261
  %v1340 = vmul.f32 %v1302, %v262
  %v1341 = vmul.f32 %v1308, %v263
  %v1342 = vmul.f32 %v1302, %v264
  %v1343 = vmul.f32 %v1308, %v265
  %1360 = vrot.lane.b32.xlu0 %v1312, 64
  %v1361 = vpop.permute.xlu0 %1360
  %1362 = vrot.lane.b32.xlu0 %v1313, 64
  %v1363 = vpop.permute.xlu0 %1362
  %1364 = vrot.lane.b32.xlu0 %v1314, 64
  %v1365 = vpop.permute.xlu0 %1364
  %1366 = vrot.lane.b32.xlu0 %v1315, 64
  %v1367 = vpop.permute.xlu0 %1366
  %1368 = vrot.lane.b32.xlu0 %v1316, 64
  %v1369 = vpop.permute.xlu0 %1368
  %1370 = vrot.lane.b32.xlu0 %v1317, 64
  %v1371 = vpop.permute.xlu0 %1370
  %1372 = vrot.lane.b32.xlu0 %v1318, 64
  %v1373 = vpop.permute.xlu0 %1372
  %1374 = vrot.lane.b32.xlu0 %v1319, 64
  %v1375 = vpop.permute.xlu0 %1374
  %1376 = vrot.lane.b32.xlu0 %v1320, 64
  %v1377 = vpop.permute.xlu0 %1376
  %1378 = vrot.lane.b32.xlu0 %v1321, 64
  %v1379 = vpop.permute.xlu0 %1378
  %1380 = vrot.lane.b32.xlu0 %v1322, 64
  %v1381 = vpop.permute.xlu0 %1380
  %1382 = vrot.lane.b32.xlu0 %v1323, 64
  %v1383 = vpop.permute.xlu0 %1382
  %1384 = vrot.lane.b32.xlu0 %v1324, 64
  %v1385 = vpop.permute.xlu0 %1384
  %1386 = vrot.lane.b32.xlu0 %v1325, 64
  %v1387 = vpop.permute.xlu0 %1386
  %1388 = vrot.lane.b32.xlu0 %v1326, 64
  %v1389 = vpop.permute.xlu0 %1388
  %1390 = vrot.lane.b32.xlu0 %v1327, 64
  %v1391 = vpop.permute.xlu0 %1390
  %v1393 = vsel %vm164, %v1310, 0
  %v1396 = vsel %vm164, %v1311, 0
  %v1398 = vsel %vm164, %v1361, 0
  %v1400 = vsel %vm164, %v1363, 0
  %v1402 = vsel %vm164, %v1365, 0
  %v1404 = vsel %vm164, %v1367, 0
  %v1406 = vsel %vm164, %v1369, 0
  %v1408 = vsel %vm164, %v1371, 0
  %v1410 = vsel %vm164, %v1373, 0
  %v1412 = vsel %vm164, %v1375, 0
  %v1414 = vsel %vm164, %v1377, 0
  %v1416 = vsel %vm164, %v1379, 0
  %v1418 = vsel %vm164, %v1381, 0
  %v1420 = vsel %vm164, %v1383, 0
  %v1422 = vsel %vm164, %v1385, 0
  %v1424 = vsel %vm164, %v1387, 0
  %v1426 = vsel %vm164, %v1389, 0
  %v1428 = vsel %vm164, %v1391, 0
  %1430 = vmatprep.subr.mxu0 0.0
  %1431 = vmatpush1.xpose.msra.mxu0 %v1398
  %1432 = vmatprep.subr.mxu0 0.0
  %1433 = vmatpush1.xpose.msra.mxu0 %v1400
  %1434 = vmatprep.subr.mxu0 0.0
  %1435 = vmatpush1.xpose.msra.mxu0 %v1402
  %1436 = vmatprep.subr.mxu0 0.0
  %1437 = vmatpush1.xpose.msra.mxu0 %v1404
  %1438 = vmatprep.subr.mxu0 0.0
  %1439 = vmatpush1.xpose.msra.mxu0 %v1406
  %1440 = vmatprep.subr.mxu0 0.0
  %1441 = vmatpush1.xpose.msra.mxu0 %v1408
  %1442 = vmatprep.subr.mxu0 0.0
  %1443 = vmatpush1.xpose.msra.mxu0 %v1410
  %1444 = vmatprep.subr.mxu0 0.0
  %1445 = vmatpush1.xpose.msra.mxu0 %v1412
  %1446 = vmatprep.subr.mxu0 0.0
  %1447 = vmatpush1.xpose.msra.mxu0 %v1414
  %1448 = vmatprep.subr.mxu0 0.0
  %1449 = vmatpush1.xpose.msra.mxu0 %v1416
  %1450 = vmatprep.subr.mxu0 0.0
  %1451 = vmatpush1.xpose.msra.mxu0 %v1418
  %1452 = vmatprep.subr.mxu0 0.0
  %1453 = vmatpush1.xpose.msra.mxu0 %v1420
  %1454 = vmatprep.subr.mxu0 0.0
  %1455 = vmatpush1.xpose.msra.mxu0 %v1422
  %1456 = vmatprep.subr.mxu0 0.0
  %1457 = vmatpush1.xpose.msra.mxu0 %v1424
  %1458 = vmatprep.subr.mxu0 0.0
  %1459 = vmatpush1.xpose.msra.mxu0 %v1426
  %1460 = vmatprep.subr.mxu0 0.0
  %1461 = vmatpush1.xpose.msra.mxu0 %v1428
  %1462 = vmatprep.subr.mxu0 0.0
  %1463 = vmatpush1.xpose.msra.mxu0 0.0
  %1464 = vmatprep.subr.mxu0 0.0
  %1465 = vmatpush1.xpose.msra.mxu0 0.0
  %1466 = vmatprep.subr.mxu0 0.0
  %1467 = vmatpush1.xpose.msra.mxu0 0.0
  %1468 = vmatprep.subr.mxu0 0.0
  %1469 = vmatpush1.xpose.msra.mxu0 0.0
  %1470 = vmatprep.subr.mxu0 0.0
  %1471 = vmatpush1.xpose.msra.mxu0 0.0
  %1472 = vmatprep.subr.mxu0 0.0
  %1473 = vmatpush1.xpose.msra.mxu0 0.0
  %1474 = vmatprep.subr.mxu0 0.0
  %1475 = vmatpush1.xpose.msra.mxu0 0.0
  %1476 = vmatprep.subr.mxu0 0.0
  %1477 = vmatpush1.xpose.msra.mxu0 0.0
  %1478 = vmatprep.subr.mxu0 0.0
  %1479 = vmatpush1.xpose.msra.mxu0 0.0
  %1480 = vmatprep.subr.mxu0 0.0
  %1481 = vmatpush1.xpose.msra.mxu0 0.0
  %1482 = vmatprep.subr.mxu0 0.0
  %1483 = vmatpush1.xpose.msra.mxu0 0.0
  %1484 = vmatprep.subr.mxu0 0.0
  %1485 = vmatpush1.xpose.msra.mxu0 0.0
  %1486 = vmatprep.subr.mxu0 0.0
  %1487 = vmatpush1.xpose.msra.mxu0 0.0
  %1488 = vmatprep.subr.mxu0 0.0
  %1489 = vmatpush1.xpose.msra.mxu0 0.0
  %1490 = vmatprep.subr.mxu0 0.0
  %1491 = vmatpush1.xpose.msra.mxu0 0.0
  %1492 = vmatprep.subr.mxu0 0.0
  %1493 = vmatpush1.xpose.msra.mxu0 0.0
  %1494 = vmatprep.mubr.f32.mxu0 0.0
  %1495 = vmatmul.mubr.f32.gmra.mrb[0].mxu0 %v1393
  %v1496 = vpop.f32.mrb[0].mxu0
  %v1497 = vadd.f32 0.0, %v1496
  %v1498 = vpop.f32.mrb[0].mxu0
  %1499 = vmatprep.mubr.f32.mxu0 0.0
  %1500 = vmatmul.mubr.f32.gmra.mrb[0].mxu0 %v1396
  %v1501 = vpop.f32.mrb[0].mxu0
  %v1502 = vadd.f32 0.0, %v1501
  %v1503 = vpop.f32.mrb[0].mxu0
  %1504 = vdwg.mxu0
  %v1505 = vadd.f32 %v1497, %v523
  %v1506 = vadd.f32 %v1502, %v524
  %v1507 = vadd.f32 %v1497, %v525
  %v1508 = vadd.f32 %v1502, %v526
  %v1509 = vadd.f32 %v1497, %v527
  %v1510 = vadd.f32 %v1502, %v528
  %v1511 = vadd.f32 %v1497, %v529
  %v1512 = vadd.f32 %v1502, %v530
  %v1513 = vadd.f32 %v1497, %v531
  %v1514 = vadd.f32 %v1502, %v532
  %v1515 = vadd.f32 %v1497, %v533
  %v1516 = vadd.f32 %v1502, %v534
  %v1517 = vadd.f32 %v1497, %v535
  %v1518 = vadd.f32 %v1502, %v536
  %v1519 = vadd.f32 %v1497, %v537
  %v1520 = vadd.f32 %v1502, %v538
  %1521 = vmax.xlane.f32.xlu0 %v1505
  %v1522 = vpop.xlane.xlu0 %1521
  %1523 = vmax.xlane.f32.xlu0 %v1506
  %v1524 = vpop.xlane.xlu0 %1523
  %1525 = vmax.xlane.f32.xlu0 %v1507
  %v1526 = vpop.xlane.xlu0 %1525
  %1527 = vmax.xlane.f32.xlu0 %v1508
  %v1528 = vpop.xlane.xlu0 %1527
  %1529 = vmax.xlane.f32.xlu0 %v1509
  %v1530 = vpop.xlane.xlu0 %1529
  %1531 = vmax.xlane.f32.xlu0 %v1510
  %v1532 = vpop.xlane.xlu0 %1531
  %1533 = vmax.xlane.f32.xlu0 %v1511
  %v1534 = vpop.xlane.xlu0 %1533
  %1535 = vmax.xlane.f32.xlu0 %v1512
  %v1536 = vpop.xlane.xlu0 %1535
  %1537 = vmax.xlane.f32.xlu0 %v1513
  %v1538 = vpop.xlane.xlu0 %1537
  %1539 = vmax.xlane.f32.xlu0 %v1514
  %v1540 = vpop.xlane.xlu0 %1539
  %1541 = vmax.xlane.f32.xlu0 %v1515
  %v1542 = vpop.xlane.xlu0 %1541
  %1543 = vmax.xlane.f32.xlu0 %v1516
  %v1544 = vpop.xlane.xlu0 %1543
  %1545 = vmax.xlane.f32.xlu0 %v1517
  %v1546 = vpop.xlane.xlu0 %1545
  %1547 = vmax.xlane.f32.xlu0 %v1518
  %v1548 = vpop.xlane.xlu0 %1547
  %1549 = vmax.xlane.f32.xlu0 %v1519
  %v1550 = vpop.xlane.xlu0 %1549
  %1551 = vmax.xlane.f32.xlu0 %v1520
  %v1552 = vpop.xlane.xlu0 %1551
  %v1553 = vsub.f32 %v1505, %v1522
  %v1554 = vsub.f32 %v1506, %v1524
  %v1555 = vsub.f32 %v1507, %v1526
  %v1556 = vsub.f32 %v1508, %v1528
  %v1557 = vsub.f32 %v1509, %v1530
  %v1558 = vsub.f32 %v1510, %v1532
  %v1559 = vsub.f32 %v1511, %v1534
  %v1560 = vsub.f32 %v1512, %v1536
  %v1561 = vsub.f32 %v1513, %v1538
  %v1562 = vsub.f32 %v1514, %v1540
  %v1563 = vsub.f32 %v1515, %v1542
  %v1564 = vsub.f32 %v1516, %v1544
  %v1565 = vsub.f32 %v1517, %v1546
  %v1566 = vsub.f32 %v1518, %v1548
  %v1567 = vsub.f32 %v1519, %v1550
  %v1568 = vsub.f32 %v1520, %v1552
  %v1569 = vmul.f32 %v1553, 1.442695
  %v1570 = vpow.pop %v1569
  %v1571 = vmul.f32 %v1554, 1.442695
  %v1572 = vpow.pop %v1571
  %v1573 = vmul.f32 %v1555, 1.442695
  %v1574 = vpow.pop %v1573
  %v1575 = vmul.f32 %v1556, 1.442695
  %v1576 = vpow.pop %v1575
  %v1577 = vmul.f32 %v1557, 1.442695
  %v1578 = vpow.pop %v1577
  %v1579 = vmul.f32 %v1558, 1.442695
  %v1580 = vpow.pop %v1579
  %v1581 = vmul.f32 %v1559, 1.442695
  %v1582 = vpow.pop %v1581
  %v1583 = vmul.f32 %v1560, 1.442695
  %v1584 = vpow.pop %v1583
  %v1585 = vmul.f32 %v1561, 1.442695
  %v1586 = vpow.pop %v1585
  %v1587 = vmul.f32 %v1562, 1.442695
  %v1588 = vpow.pop %v1587
  %v1589 = vmul.f32 %v1563, 1.442695
  %v1590 = vpow.pop %v1589
  %v1591 = vmul.f32 %v1564, 1.442695
  %v1592 = vpow.pop %v1591
  %v1593 = vmul.f32 %v1565, 1.442695
  %v1594 = vpow.pop %v1593
  %v1595 = vmul.f32 %v1566, 1.442695
  %v1596 = vpow.pop %v1595
  %v1597 = vmul.f32 %v1567, 1.442695
  %v1598 = vpow.pop %v1597
  %v1599 = vmul.f32 %v1568, 1.442695
  %v1600 = vpow.pop %v1599
  %1601 = vadd.xlane.f32.xlu0 %v1570
  %v1602 = vpop.xlane.xlu0 %1601
  %1603 = vadd.xlane.f32.xlu0 %v1572
  %v1604 = vpop.xlane.xlu0 %1603
  %1605 = vadd.xlane.f32.xlu0 %v1574
  %v1606 = vpop.xlane.xlu0 %1605
  %1607 = vadd.xlane.f32.xlu0 %v1576
  %v1608 = vpop.xlane.xlu0 %1607
  %1609 = vadd.xlane.f32.xlu0 %v1578
  %v1610 = vpop.xlane.xlu0 %1609
  %1611 = vadd.xlane.f32.xlu0 %v1580
  %v1612 = vpop.xlane.xlu0 %1611
  %1613 = vadd.xlane.f32.xlu0 %v1582
  %v1614 = vpop.xlane.xlu0 %1613
  %1615 = vadd.xlane.f32.xlu0 %v1584
  %v1616 = vpop.xlane.xlu0 %1615
  %1617 = vadd.xlane.f32.xlu0 %v1586
  %v1618 = vpop.xlane.xlu0 %1617
  %1619 = vadd.xlane.f32.xlu0 %v1588
  %v1620 = vpop.xlane.xlu0 %1619
  %1621 = vadd.xlane.f32.xlu0 %v1590
  %v1622 = vpop.xlane.xlu0 %1621
  %1623 = vadd.xlane.f32.xlu0 %v1592
  %v1624 = vpop.xlane.xlu0 %1623
  %1625 = vadd.xlane.f32.xlu0 %v1594
  %v1626 = vpop.xlane.xlu0 %1625
  %1627 = vadd.xlane.f32.xlu0 %v1596
  %v1628 = vpop.xlane.xlu0 %1627
  %1629 = vadd.xlane.f32.xlu0 %v1598
  %v1630 = vpop.xlane.xlu0 %1629
  %1631 = vadd.xlane.f32.xlu0 %v1600
  %v1632 = vpop.xlane.xlu0 %1631
  %v1633 = vrcp.pop %v1602
  %v1634 = vrcp.pop %v1604
  %v1635 = vrcp.pop %v1606
  %v1636 = vrcp.pop %v1608
  %v1637 = vrcp.pop %v1610
  %v1638 = vrcp.pop %v1612
  %v1639 = vrcp.pop %v1614
  %v1640 = vrcp.pop %v1616
  %v1641 = vrcp.pop %v1618
  %v1642 = vrcp.pop %v1620
  %v1643 = vrcp.pop %v1622
  %v1644 = vrcp.pop %v1624
  %v1645 = vrcp.pop %v1626
  %v1646 = vrcp.pop %v1628
  %v1647 = vrcp.pop %v1630
  %v1648 = vrcp.pop %v1632
  %v1649 = vmul.f32 %v1570, %v1633
  %v1650 = vmul.f32 %v1572, %v1634
  %v1651 = vmul.f32 %v1574, %v1635
  %v1652 = vmul.f32 %v1576, %v1636
  %v1653 = vmul.f32 %v1578, %v1637
  %v1654 = vmul.f32 %v1580, %v1638
  %v1655 = vmul.f32 %v1582, %v1639
  %v1656 = vmul.f32 %v1584, %v1640
  %v1657 = vmul.f32 %v1586, %v1641
  %v1658 = vmul.f32 %v1588, %v1642
  %v1659 = vmul.f32 %v1590, %v1643
  %v1660 = vmul.f32 %v1592, %v1644
  %v1661 = vmul.f32 %v1594, %v1645
  %v1662 = vmul.f32 %v1596, %v1646
  %v1663 = vmul.f32 %v1598, %v1647
  %v1664 = vmul.f32 %v1600, %v1648
  %v1665 = vadd.f32 %v1649, %v1651
  %v1666 = vadd.f32 %v1650, %v1652
  %v1667 = vadd.f32 %v1665, %v1653
  %v1668 = vadd.f32 %v1666, %v1654
  %v1669 = vadd.f32 %v1667, %v1655
  %v1670 = vadd.f32 %v1668, %v1656
  %v1671 = vadd.f32 %v1669, %v1657
  %v1672 = vadd.f32 %v1670, %v1658
  %v1673 = vadd.f32 %v1671, %v1659
  %v1674 = vadd.f32 %v1672, %v1660
  %v1675 = vadd.f32 %v1673, %v1661
  %v1676 = vadd.f32 %v1674, %v1662
  %v1677 = vadd.f32 %v1675, %v1663
  %v1678 = vadd.f32 %v1676, %v1664
  %1679 = vmatprep.subr.mxu0 0.0
  %1680 = vmatpush1.msra.mxu0 %v1328
  %1681 = vmatprep.subr.mxu0 0.0
  %1682 = vmatpush1.msra.mxu0 %v1329
  %1683 = vmatprep.subr.mxu0 0.0
  %1684 = vmatpush1.msra.mxu0 %v1330
  %1685 = vmatprep.subr.mxu0 0.0
  %1686 = vmatpush1.msra.mxu0 %v1331
  %1687 = vmatprep.subr.mxu0 0.0
  %1688 = vmatpush1.msra.mxu0 %v1332
  %1689 = vmatprep.subr.mxu0 0.0
  %1690 = vmatpush1.msra.mxu0 %v1333
  %1691 = vmatprep.subr.mxu0 0.0
  %1692 = vmatpush1.msra.mxu0 %v1334
  %1693 = vmatprep.subr.mxu0 0.0
  %1694 = vmatpush1.msra.mxu0 %v1335
  %1695 = vmatprep.subr.mxu0 0.0
  %1696 = vmatpush1.msra.mxu0 %v1336
  %1697 = vmatprep.subr.mxu0 0.0
  %1698 = vmatpush1.msra.mxu0 %v1337
  %1699 = vmatprep.subr.mxu0 0.0
  %1700 = vmatpush1.msra.mxu0 %v1338
  %1701 = vmatprep.subr.mxu0 0.0
  %1702 = vmatpush1.msra.mxu0 %v1339
  %1703 = vmatprep.subr.mxu0 0.0
  %1704 = vmatpush1.msra.mxu0 %v1340
  %1705 = vmatprep.subr.mxu0 0.0
  %1706 = vmatpush1.msra.mxu0 %v1341
  %1707 = vmatprep.subr.mxu0 0.0
  %1708 = vmatpush1.msra.mxu0 %v1342
  %1709 = vmatprep.subr.mxu0 0.0
  %1710 = vmatpush1.msra.mxu0 %v1343
  %1711 = vmatprep.subr.mxu0 0.0
  %1712 = vmatpush1.msra.mxu0 0.0
  %1713 = vmatprep.subr.mxu0 0.0
  %1714 = vmatpush1.msra.mxu0 0.0
  %1715 = vmatprep.subr.mxu0 0.0
  %1716 = vmatpush1.msra.mxu0 0.0
  %1717 = vmatprep.subr.mxu0 0.0
  %1718 = vmatpush1.msra.mxu0 0.0
  %1719 = vmatprep.subr.mxu0 0.0
  %1720 = vmatpush1.msra.mxu0 0.0
  %1721 = vmatprep.subr.mxu0 0.0
  %1722 = vmatpush1.msra.mxu0 0.0
  %1723 = vmatprep.subr.mxu0 0.0
  %1724 = vmatpush1.msra.mxu0 0.0
  %1725 = vmatprep.subr.mxu0 0.0
  %1726 = vmatpush1.msra.mxu0 0.0
  %1727 = vmatprep.subr.mxu0 0.0
  %1728 = vmatpush1.msra.mxu0 0.0
  %1729 = vmatprep.subr.mxu0 0.0
  %1730 = vmatpush1.msra.mxu0 0.0
  %1731 = vmatprep.subr.mxu0 0.0
  %1732 = vmatpush1.msra.mxu0 0.0
  %1733 = vmatprep.subr.mxu0 0.0
  %1734 = vmatpush1.msra.mxu0 0.0
  %1735 = vmatprep.subr.mxu0 0.0
  %1736 = vmatpush1.msra.mxu0 0.0
  %1737 = vmatprep.subr.mxu0 0.0
  %1738 = vmatpush1.msra.mxu0 0.0
  %1739 = vmatprep.subr.mxu0 0.0
  %1740 = vmatpush1.msra.mxu0 0.0
  %1741 = vmatprep.subr.mxu0 0.0
  %1742 = vmatpush1.msra.mxu0 0.0
  %1743 = vmatprep.mubr.f32.mxu0 0.0
  %1744 = vmatmul.mubr.f32.gmra.mrb[0].mxu0 %v1677
  %v1745 = vpop.f32.mrb[0].mxu0
  %v1746 = vadd.f32 0.0, %v1745
  %v1747 = vpop.f32.mrb[0].mxu0
  %1748 = vmatprep.mubr.f32.mxu0 0.0
  %1749 = vmatmul.mubr.f32.gmra.mrb[0].mxu0 %v1678
  %v1750 = vpop.f32.mrb[0].mxu0
  %v1751 = vadd.f32 0.0, %v1750
  %v1752 = vpop.f32.mrb[0].mxu0
  %1753 = vdwg.mxu0
  %s1754 = scalar_lea.vmem %s5, 64
  %v1755 = vld [vmem:[%s1754] sm:$0xff]
  %v1756 = vld [vmem:[%s1754 + $0x8] sm:$0xff]
  %v1757 = vld [vmem:[%s1754 + $0x10] sm:$0xff]
  %v1758 = vld [vmem:[%s1754 + $0x18] sm:$0xff]
  %v1759 = vld [vmem:[%s1754 + $0x20] sm:$0xff]
  %v1760 = vld [vmem:[%s1754 + $0x28] sm:$0xff]
  %v1761 = vld [vmem:[%s1754 + $0x30] sm:$0xff]
  %v1762 = vld [vmem:[%s1754 + $0x38] sm:$0xff]
  %v1763 = vlaneseq
  %v1764 = vshrl.u32 %v1763, 7
  %v1765 = vsub.s32 0, %v1764
  %v1766 = vrot.slane %v1196, %v1765
  %v1768 = vsel %vm164, %v1746, 0
  %v1771 = vsel %vm164, %v1751, 0
  %1773 = vmatprep.subr.mxu0 0.0
  %1774 = vmatpush1.msra.mxu0 %v1755
  %1775 = vmatprep.subr.mxu0 0.0
  %1776 = vmatpush1.msra.mxu0 %v1756
  %1777 = vmatprep.subr.mxu0 0.0
  %1778 = vmatpush1.msra.mxu0 %v1757
  %1779 = vmatprep.subr.mxu0 0.0
  %1780 = vmatpush1.msra.mxu0 %v1758
  %1781 = vmatprep.subr.mxu0 0.0
  %1782 = vmatpush1.msra.mxu0 %v1759
  %1783 = vmatprep.subr.mxu0 0.0
  %1784 = vmatpush1.msra.mxu0 %v1760
  %1785 = vmatprep.subr.mxu0 0.0
  %1786 = vmatpush1.msra.mxu0 %v1761
  %1787 = vmatprep.subr.mxu0 0.0
  %1788 = vmatpush1.msra.mxu0 %v1762
  %1789 = vmatprep.subr.mxu0 0.0
  %1790 = vmatpush1.msra.mxu0 0.0
  %1791 = vmatprep.subr.mxu0 0.0
  %1792 = vmatpush1.msra.mxu0 0.0
  %1793 = vmatprep.subr.mxu0 0.0
  %1794 = vmatpush1.msra.mxu0 0.0
  %1795 = vmatprep.subr.mxu0 0.0
  %1796 = vmatpush1.msra.mxu0 0.0
  %1797 = vmatprep.subr.mxu0 0.0
  %1798 = vmatpush1.msra.mxu0 0.0
  %1799 = vmatprep.subr.mxu0 0.0
  %1800 = vmatpush1.msra.mxu0 0.0
  %1801 = vmatprep.subr.mxu0 0.0
  %1802 = vmatpush1.msra.mxu0 0.0
  %1803 = vmatprep.subr.mxu0 0.0
  %1804 = vmatpush1.msra.mxu0 0.0
  %1805 = vmatprep.subr.mxu0 0.0
  %1806 = vmatpush1.msra.mxu0 0.0
  %1807 = vmatprep.subr.mxu0 0.0
  %1808 = vmatpush1.msra.mxu0 0.0
  %1809 = vmatprep.subr.mxu0 0.0
  %1810 = vmatpush1.msra.mxu0 0.0
  %1811 = vmatprep.subr.mxu0 0.0
  %1812 = vmatpush1.msra.mxu0 0.0
  %1813 = vmatprep.subr.mxu0 0.0
  %1814 = vmatpush1.msra.mxu0 0.0
  %1815 = vmatprep.subr.mxu0 0.0
  %1816 = vmatpush1.msra.mxu0 0.0
  %1817 = vmatprep.subr.mxu0 0.0
  %1818 = vmatpush1.msra.mxu0 0.0
  %1819 = vmatprep.subr.mxu0 0.0
  %1820 = vmatpush1.msra.mxu0 0.0
  %1821 = vmatprep.subr.mxu0 0.0
  %1822 = vmatpush1.msra.mxu0 0.0
  %1823 = vmatprep.subr.mxu0 0.0
  %1824 = vmatpush1.msra.mxu0 0.0
  %1825 = vmatprep.subr.mxu0 0.0
  %1826 = vmatpush1.msra.mxu0 0.0
  %1827 = vmatprep.subr.mxu0 0.0
  %1828 = vmatpush1.msra.mxu0 0.0
  %1829 = vmatprep.subr.mxu0 0.0
  %1830 = vmatpush1.msra.mxu0 0.0
  %1831 = vmatprep.subr.mxu0 0.0
  %1832 = vmatpush1.msra.mxu0 0.0
  %1833 = vmatprep.subr.mxu0 0.0
  %1834 = vmatpush1.msra.mxu0 0.0
  %1835 = vmatprep.subr.mxu0 0.0
  %1836 = vmatpush1.msra.mxu0 0.0
  %1837 = vmatprep.mubr.f32.mxu0 0.0
  %1838 = vmatmul.mubr.f32.gmra.mrb[0].mxu0 %v1768
  %v1839 = vpop.f32.mrb[0].mxu0
  %v1840 = vadd.f32 %v1766, %v1839
  %v1841 = vpop.f32.mrb[0].mxu0
  %1842 = vmatprep.mubr.f32.mxu0 0.0
  %1843 = vmatmul.mubr.f32.gmra.mrb[0].mxu0 %v1771
  %v1844 = vpop.f32.mrb[0].mxu0
  %v1845 = vadd.f32 %v1766, %v1844
  %v1846 = vpop.f32.mrb[0].mxu0
  %1847 = vdwg.mxu0
  %v1848 = vadd.f32 %v1193, %v1840
  %v1849 = vadd.f32 %v1194, %v1845
  %v1850 = vsel %vm164, %v1848, 0.0
  %1851 = vadd.xlane.f32.xlu0 %v1850
  %v1852 = vpop.xlane.xlu0 %1851
  %v1853 = vsel %vm164, %v1849, 0.0
  %1854 = vadd.xlane.f32.xlu0 %v1853
  %v1855 = vpop.xlane.xlu0 %1854
  %v1856 = vmul.f32 %v1852, 0.015625
  %v1857 = vmul.f32 %v1855, 0.015625
  %v1858 = vmul.f32 %v1848, %v1848
  %v1859 = vmul.f32 %v1849, %v1849
  %v1860 = vsel %vm164, %v1858, 0.0
  %1861 = vadd.xlane.f32.xlu0 %v1860
  %v1862 = vpop.xlane.xlu0 %1861
  %v1863 = vsel %vm164, %v1859, 0.0
  %1864 = vadd.xlane.f32.xlu0 %v1863
  %v1865 = vpop.xlane.xlu0 %1864
  %v1866 = vmul.f32 %v1862, 0.015625
  %v1867 = vmul.f32 %v1865, 0.015625
  %v1868 = vmul.f32 %v1856, %v1856
  %v1869 = vmul.f32 %v1857, %v1857
  %v1870 = vsub.f32 %v1866, %v1868
  %v1871 = vsub.f32 %v1867, %v1869
  %v1872 = vsub.f32 %v1848, %v1856
  %v1873 = vsub.f32 %v1849, %v1857
  %v1874 = vadd.f32 %v1870, 1e-05
  %v1875 = vadd.f32 %v1871, 1e-05
  %v1876 = vrsqrt.pop %v1874
  %v1877 = vrsqrt.pop %v1875
  %v1878 = vmul.f32 %v1872, %v1876
  %v1879 = vmul.f32 %v1873, %v1877
  %v1880 = vlaneseq
  %v1881 = vshrl.u32 %v1880, 7
  %v1882 = vsub.s32 1, %v1881
  %v1883 = vrot.slane %v1196, %v1882
  %v1884 = vmul.f32 %v1878, %v1883
  %v1885 = vmul.f32 %v1879, %v1883
  %v1886 = vlaneseq
  %v1887 = vshrl.u32 %v1886, 7
  %v1888 = vsub.s32 2, %v1887
  %v1889 = vrot.slane %v1196, %v1888
  %v1890 = vadd.f32 %v1884, %v1889
  %v1891 = vadd.f32 %v1885, %v1889
  %s1892 = scalar_lea.vmem %s7, 128
  %v1893 = vld [vmem:[%s1892] sm:$0xff]
  %v1894 = vld [vmem:[%s1892 + $0x8] sm:$0xff]
  %v1895 = vld [vmem:[%s1892 + $0x10] sm:$0xff]
  %v1896 = vld [vmem:[%s1892 + $0x18] sm:$0xff]
  %v1897 = vld [vmem:[%s1892 + $0x20] sm:$0xff]
  %v1898 = vld [vmem:[%s1892 + $0x28] sm:$0xff]
  %v1899 = vld [vmem:[%s1892 + $0x30] sm:$0xff]
  %v1900 = vld [vmem:[%s1892 + $0x38] sm:$0xff]
  %v1901 = vld [vmem:[%s1892 + $0x40] sm:$0xff]
  %v1902 = vld [vmem:[%s1892 + $0x48] sm:$0xff]
  %v1903 = vld [vmem:[%s1892 + $0x50] sm:$0xff]
  %v1904 = vld [vmem:[%s1892 + $0x58] sm:$0xff]
  %v1905 = vld [vmem:[%s1892 + $0x60] sm:$0xff]
  %v1906 = vld [vmem:[%s1892 + $0x68] sm:$0xff]
  %v1907 = vld [vmem:[%s1892 + $0x70] sm:$0xff]
  %v1908 = vld [vmem:[%s1892 + $0x78] sm:$0xff]
  %s1909 = scalar_lea.vmem %s8, 2
  %v1910 = vld [vmem:[%s1909] sm:$0x3]
  %v1912 = vlaneseq
  %v1913 = vshrl.u32 %v1912, 7
  %v1914 = vsub.s32 0, %v1913
  %v1915 = vrot.slane %v1910, %v1914
  %v1916 = vlaneseq
  %v1917 = vshrl.u32 %v1916, 7
  %v1918 = vsub.s32 1, %v1917
  %v1919 = vrot.slane %v1910, %v1918
  %v1923 = vsel %vm164, %v1890, 0
  %v1926 = vsel %vm164, %v1891, 0
  %1928 = vmatprep.subr.mxu0 %v1894
  %1929 = vmatpush1.msra.mxu0 %v1893
  %1930 = vmatprep.subr.mxu0 %v1896
  %1931 = vmatpush1.msra.mxu0 %v1895
  %1932 = vmatprep.subr.mxu0 %v1898
  %1933 = vmatpush1.msra.mxu0 %v1897
  %1934 = vmatprep.subr.mxu0 %v1900
  %1935 = vmatpush1.msra.mxu0 %v1899
  %1936 = vmatprep.subr.mxu0 %v1902
  %1937 = vmatpush1.msra.mxu0 %v1901
  %1938 = vmatprep.subr.mxu0 %v1904
  %1939 = vmatpush1.msra.mxu0 %v1903
  %1940 = vmatprep.subr.mxu0 %v1906
  %1941 = vmatpush1.msra.mxu0 %v1905
  %1942 = vmatprep.subr.mxu0 %v1908
  %1943 = vmatpush1.msra.mxu0 %v1907
  %1944 = vmatprep.subr.mxu0 0.0
  %1945 = vmatpush1.msra.mxu0 0.0
  %1946 = vmatprep.subr.mxu0 0.0
  %1947 = vmatpush1.msra.mxu0 0.0
  %1948 = vmatprep.subr.mxu0 0.0
  %1949 = vmatpush1.msra.mxu0 0.0
  %1950 = vmatprep.subr.mxu0 0.0
  %1951 = vmatpush1.msra.mxu0 0.0
  %1952 = vmatprep.subr.mxu0 0.0
  %1953 = vmatpush1.msra.mxu0 0.0
  %1954 = vmatprep.subr.mxu0 0.0
  %1955 = vmatpush1.msra.mxu0 0.0
  %1956 = vmatprep.subr.mxu0 0.0
  %1957 = vmatpush1.msra.mxu0 0.0
  %1958 = vmatprep.subr.mxu0 0.0
  %1959 = vmatpush1.msra.mxu0 0.0
  %1960 = vmatprep.subr.mxu0 0.0
  %1961 = vmatpush1.msra.mxu0 0.0
  %1962 = vmatprep.subr.mxu0 0.0
  %1963 = vmatpush1.msra.mxu0 0.0
  %1964 = vmatprep.subr.mxu0 0.0
  %1965 = vmatpush1.msra.mxu0 0.0
  %1966 = vmatprep.subr.mxu0 0.0
  %1967 = vmatpush1.msra.mxu0 0.0
  %1968 = vmatprep.subr.mxu0 0.0
  %1969 = vmatpush1.msra.mxu0 0.0
  %1970 = vmatprep.subr.mxu0 0.0
  %1971 = vmatpush1.msra.mxu0 0.0
  %1972 = vmatprep.subr.mxu0 0.0
  %1973 = vmatpush1.msra.mxu0 0.0
  %1974 = vmatprep.subr.mxu0 0.0
  %1975 = vmatpush1.msra.mxu0 0.0
  %1976 = vmatprep.subr.mxu0 0.0
  %1977 = vmatpush1.msra.mxu0 0.0
  %1978 = vmatprep.subr.mxu0 0.0
  %1979 = vmatpush1.msra.mxu0 0.0
  %1980 = vmatprep.subr.mxu0 0.0
  %1981 = vmatpush1.msra.mxu0 0.0
  %1982 = vmatprep.subr.mxu0 0.0
  %1983 = vmatpush1.msra.mxu0 0.0
  %1984 = vmatprep.subr.mxu0 0.0
  %1985 = vmatpush1.msra.mxu0 0.0
  %1986 = vmatprep.subr.mxu0 0.0
  %1987 = vmatpush1.msra.mxu0 0.0
  %1988 = vmatprep.subr.mxu0 0.0
  %1989 = vmatpush1.msra.mxu0 0.0
  %1990 = vmatprep.subr.mxu0 0.0
  %1991 = vmatpush1.msra.mxu0 0.0
  %1992 = vmatprep.mubr.f32.mxu0 0.0
  %1993 = vmatmul.mubr.f32.gmra.mrb[0].mxu0 %v1923
  %v1994 = vpop.f32.mrb[0].mxu0
  %v1995 = vadd.f32 %v1915, %v1994
  %v1996 = vpop.f32.mrb[0].mxu0
  %v1997 = vadd.f32 %v1919, %v1996
  %1998 = vmatprep.mubr.f32.mxu0 0.0
  %1999 = vmatmul.mubr.f32.gmra.mrb[0].mxu0 %v1926
  %v2000 = vpop.f32.mrb[0].mxu0
  %v2001 = vadd.f32 %v1915, %v2000
  %v2002 = vpop.f32.mrb[0].mxu0
  %v2003 = vadd.f32 %v1919, %v2002
  %2004 = vdwg.mxu0
  %v2005 = vmax.f32 %v1995, 0.0
  %v2006 = vmax.f32 %v1997, 0.0
  %v2007 = vmax.f32 %v2001, 0.0
  %v2008 = vmax.f32 %v2003, 0.0
  %s2009 = scalar_lea.vmem %s9, 256
  %v2010 = vld [vmem:[%s2009] sm:$0xff]
  %v2011 = vld [vmem:[%s2009 + $0x8] sm:$0xff]
  %v2012 = vld [vmem:[%s2009 + $0x10] sm:$0xff]
  %v2013 = vld [vmem:[%s2009 + $0x18] sm:$0xff]
  %v2014 = vld [vmem:[%s2009 + $0x20] sm:$0xff]
  %v2015 = vld [vmem:[%s2009 + $0x28] sm:$0xff]
  %v2016 = vld [vmem:[%s2009 + $0x30] sm:$0xff]
  %v2017 = vld [vmem:[%s2009 + $0x38] sm:$0xff]
  %v2018 = vld [vmem:[%s2009 + $0x40] sm:$0xff]
  %v2019 = vld [vmem:[%s2009 + $0x48] sm:$0xff]
  %v2020 = vld [vmem:[%s2009 + $0x50] sm:$0xff]
  %v2021 = vld [vmem:[%s2009 + $0x58] sm:$0xff]
  %v2022 = vld [vmem:[%s2009 + $0x60] sm:$0xff]
  %v2023 = vld [vmem:[%s2009 + $0x68] sm:$0xff]
  %v2024 = vld [vmem:[%s2009 + $0x70] sm:$0xff]
  %v2025 = vld [vmem:[%s2009 + $0x78] sm:$0xff]
  %v2026 = vld [vmem:[%s2009 + $0x80] sm:$0xff]
  %v2027 = vld [vmem:[%s2009 + $0x88] sm:$0xff]
  %v2028 = vld [vmem:[%s2009 + $0x90] sm:$0xff]
  %v2029 = vld [vmem:[%s2009 + $0x98] sm:$0xff]
  %v2030 = vld [vmem:[%s2009 + $0xa0] sm:$0xff]
  %v2031 = vld [vmem:[%s2009 + $0xa8] sm:$0xff]
  %v2032 = vld [vmem:[%s2009 + $0xb0] sm:$0xff]
  %v2033 = vld [vmem:[%s2009 + $0xb8] sm:$0xff]
  %v2034 = vld [vmem:[%s2009 + $0xc0] sm:$0xff]
  %v2035 = vld [vmem:[%s2009 + $0xc8] sm:$0xff]
  %v2036 = vld [vmem:[%s2009 + $0xd0] sm:$0xff]
  %v2037 = vld [vmem:[%s2009 + $0xd8] sm:$0xff]
  %v2038 = vld [vmem:[%s2009 + $0xe0] sm:$0xff]
  %v2039 = vld [vmem:[%s2009 + $0xe8] sm:$0xff]
  %v2040 = vld [vmem:[%s2009 + $0xf0] sm:$0xff]
  %v2041 = vld [vmem:[%s2009 + $0xf8] sm:$0xff]
  %v2042 = vlaneseq
  %v2043 = vshrl.u32 %v2042, 7
  %v2044 = vsub.s32 5, %v2043
  %v2045 = vrot.slane %v1196, %v2044
  %2046 = vmatprep.subr.mxu0 0.0
  %2047 = vmatpush1.msra.mxu0 %v2010
  %2048 = vmatprep.subr.mxu0 0.0
  %2049 = vmatpush1.msra.mxu0 %v2011
  %2050 = vmatprep.subr.mxu0 0.0
  %2051 = vmatpush1.msra.mxu0 %v2012
  %2052 = vmatprep.subr.mxu0 0.0
  %2053 = vmatpush1.msra.mxu0 %v2013
  %2054 = vmatprep.subr.mxu0 0.0
  %2055 = vmatpush1.msra.mxu0 %v2014
  %2056 = vmatprep.subr.mxu0 0.0
  %2057 = vmatpush1.msra.mxu0 %v2015
  %2058 = vmatprep.subr.mxu0 0.0
  %2059 = vmatpush1.msra.mxu0 %v2016
  %2060 = vmatprep.subr.mxu0 0.0
  %2061 = vmatpush1.msra.mxu0 %v2017
  %2062 = vmatprep.subr.mxu0 0.0
  %2063 = vmatpush1.msra.mxu0 %v2018
  %2064 = vmatprep.subr.mxu0 0.0
  %2065 = vmatpush1.msra.mxu0 %v2019
  %2066 = vmatprep.subr.mxu0 0.0
  %2067 = vmatpush1.msra.mxu0 %v2020
  %2068 = vmatprep.subr.mxu0 0.0
  %2069 = vmatpush1.msra.mxu0 %v2021
  %2070 = vmatprep.subr.mxu0 0.0
  %2071 = vmatpush1.msra.mxu0 %v2022
  %2072 = vmatprep.subr.mxu0 0.0
  %2073 = vmatpush1.msra.mxu0 %v2023
  %2074 = vmatprep.subr.mxu0 0.0
  %2075 = vmatpush1.msra.mxu0 %v2024
  %2076 = vmatprep.subr.mxu0 0.0
  %2077 = vmatpush1.msra.mxu0 %v2025
  %2078 = vmatprep.subr.mxu0 0.0
  %2079 = vmatpush1.msra.mxu0 %v2026
  %2080 = vmatprep.subr.mxu0 0.0
  %2081 = vmatpush1.msra.mxu0 %v2027
  %2082 = vmatprep.subr.mxu0 0.0
  %2083 = vmatpush1.msra.mxu0 %v2028
  %2084 = vmatprep.subr.mxu0 0.0
  %2085 = vmatpush1.msra.mxu0 %v2029
  %2086 = vmatprep.subr.mxu0 0.0
  %2087 = vmatpush1.msra.mxu0 %v2030
  %2088 = vmatprep.subr.mxu0 0.0
  %2089 = vmatpush1.msra.mxu0 %v2031
  %2090 = vmatprep.subr.mxu0 0.0
  %2091 = vmatpush1.msra.mxu0 %v2032
  %2092 = vmatprep.subr.mxu0 0.0
  %2093 = vmatpush1.msra.mxu0 %v2033
  %2094 = vmatprep.subr.mxu0 0.0
  %2095 = vmatpush1.msra.mxu0 %v2034
  %2096 = vmatprep.subr.mxu0 0.0
  %2097 = vmatpush1.msra.mxu0 %v2035
  %2098 = vmatprep.subr.mxu0 0.0
  %2099 = vmatpush1.msra.mxu0 %v2036
  %2100 = vmatprep.subr.mxu0 0.0
  %2101 = vmatpush1.msra.mxu0 %v2037
  %2102 = vmatprep.subr.mxu0 0.0
  %2103 = vmatpush1.msra.mxu0 %v2038
  %2104 = vmatprep.subr.mxu0 0.0
  %2105 = vmatpush1.msra.mxu0 %v2039
  %2106 = vmatprep.subr.mxu0 0.0
  %2107 = vmatpush1.msra.mxu0 %v2040
  %2108 = vmatprep.subr.mxu0 0.0
  %2109 = vmatpush1.msra.mxu0 %v2041
  %2110 = vmatprep.mubr.f32.mxu0 %v2006
  %2111 = vmatmul.mubr.f32.gmra.mrb[0].mxu0 %v2005
  %v2112 = vpop.f32.mrb[0].mxu0
  %v2113 = vadd.f32 %v2045, %v2112
  %v2114 = vpop.f32.mrb[0].mxu0
  %2115 = vmatprep.mubr.f32.mxu0 %v2008
  %2116 = vmatmul.mubr.f32.gmra.mrb[0].mxu0 %v2007
  %v2117 = vpop.f32.mrb[0].mxu0
  %v2118 = vadd.f32 %v2045, %v2117
  %v2119 = vpop.f32.mrb[0].mxu0
  %2120 = vdwg.mxu0
  %v2121 = vadd.f32 %v1890, %v2113
  %v2122 = vadd.f32 %v1891, %v2118
  %v2123 = vsel %vm164, %v2121, 0.0
  %2124 = vadd.xlane.f32.xlu0 %v2123
  %v2125 = vpop.xlane.xlu0 %2124
  %v2126 = vsel %vm164, %v2122, 0.0
  %2127 = vadd.xlane.f32.xlu0 %v2126
  %v2128 = vpop.xlane.xlu0 %2127
  %v2129 = vmul.f32 %v2125, 0.015625
  %v2130 = vmul.f32 %v2128, 0.015625
  %v2131 = vmul.f32 %v2121, %v2121
  %v2132 = vmul.f32 %v2122, %v2122
  %v2133 = vsel %vm164, %v2131, 0.0
  %2134 = vadd.xlane.f32.xlu0 %v2133
  %v2135 = vpop.xlane.xlu0 %2134
  %v2136 = vsel %vm164, %v2132, 0.0
  %2137 = vadd.xlane.f32.xlu0 %v2136
  %v2138 = vpop.xlane.xlu0 %2137
  %v2139 = vmul.f32 %v2135, 0.015625
  %v2140 = vmul.f32 %v2138, 0.015625
  %v2141 = vmul.f32 %v2129, %v2129
  %v2142 = vmul.f32 %v2130, %v2130
  %v2143 = vsub.f32 %v2139, %v2141
  %v2144 = vsub.f32 %v2140, %v2142
  %v2145 = vsub.f32 %v2121, %v2129
  %v2146 = vsub.f32 %v2122, %v2130
  %v2147 = vadd.f32 %v2143, 1e-05
  %v2148 = vadd.f32 %v2144, 1e-05
  %v2149 = vrsqrt.pop %v2147
  %v2150 = vrsqrt.pop %v2148
  %v2151 = vmul.f32 %v2145, %v2149
  %v2152 = vmul.f32 %v2146, %v2150
  %v2153 = vlaneseq
  %v2154 = vshrl.u32 %v2153, 7
  %v2155 = vsub.s32 3, %v2154
  %v2156 = vrot.slane %v1196, %v2155
  %v2157 = vmul.f32 %v2151, %v2156
  %v2158 = vmul.f32 %v2152, %v2156
  %v2159 = vlaneseq
  %v2160 = vshrl.u32 %v2159, 7
  %v2161 = vsub.s32 4, %v2160
  %v2162 = vrot.slane %v1196, %v2161
  %v2163 = vadd.f32 %v2157, %v2162
  %v2164 = vadd.f32 %v2158, %v2162
  %s2165 = scalar_lea.vmem %s6, 16
  %v2166 = vld [vmem:[%s2165] sm:$0xff]
  %s2167 = scalar_lea.vmem %s3, 256
  %v2168 = vld [vmem:[%s2167] sm:$0xff]
  %v2169 = vld [vmem:[%s2167 + $0x8] sm:$0xff]
  %v2170 = vld [vmem:[%s2167 + $0x10] sm:$0xff]
  %v2171 = vld [vmem:[%s2167 + $0x18] sm:$0xff]
  %v2172 = vld [vmem:[%s2167 + $0x20] sm:$0xff]
  %v2173 = vld [vmem:[%s2167 + $0x28] sm:$0xff]
  %v2174 = vld [vmem:[%s2167 + $0x30] sm:$0xff]
  %v2175 = vld [vmem:[%s2167 + $0x38] sm:$0xff]
  %v2176 = vld [vmem:[%s2167 + $0x40] sm:$0xff]
  %v2177 = vld [vmem:[%s2167 + $0x48] sm:$0xff]
  %v2178 = vld [vmem:[%s2167 + $0x50] sm:$0xff]
  %v2179 = vld [vmem:[%s2167 + $0x58] sm:$0xff]
  %v2180 = vld [vmem:[%s2167 + $0x60] sm:$0xff]
  %v2181 = vld [vmem:[%s2167 + $0x68] sm:$0xff]
  %v2182 = vld [vmem:[%s2167 + $0x70] sm:$0xff]
  %v2183 = vld [vmem:[%s2167 + $0x78] sm:$0xff]
  %s2184 = scalar_lea.vmem %s4, 4
  %v2185 = vld [vmem:[%s2184] sm:$0x3]
  %v2187 = vlaneseq
  %v2188 = vshrl.u32 %v2187, 7
  %v2189 = vsub.s32 0, %v2188
  %v2190 = vrot.slane %v2185, %v2189
  %v2191 = vlaneseq
  %v2192 = vshrl.u32 %v2191, 7
  %v2193 = vsub.s32 1, %v2192
  %v2194 = vrot.slane %v2185, %v2193
  %v2198 = vsel %vm164, %v2163, 0
  %v2201 = vsel %vm164, %v2164, 0
  %2203 = vmatprep.subr.mxu0 %v2169
  %2204 = vmatpush1.msra.mxu0 %v2168
  %2205 = vmatprep.subr.mxu0 %v2171
  %2206 = vmatpush1.msra.mxu0 %v2170
  %2207 = vmatprep.subr.mxu0 %v2173
  %2208 = vmatpush1.msra.mxu0 %v2172
  %2209 = vmatprep.subr.mxu0 %v2175
  %2210 = vmatpush1.msra.mxu0 %v2174
  %2211 = vmatprep.subr.mxu0 %v2177
  %2212 = vmatpush1.msra.mxu0 %v2176
  %2213 = vmatprep.subr.mxu0 %v2179
  %2214 = vmatpush1.msra.mxu0 %v2178
  %2215 = vmatprep.subr.mxu0 %v2181
  %2216 = vmatpush1.msra.mxu0 %v2180
  %2217 = vmatprep.subr.mxu0 %v2183
  %2218 = vmatpush1.msra.mxu0 %v2182
  %2219 = vmatprep.subr.mxu0 0.0
  %2220 = vmatpush1.msra.mxu0 0.0
  %2221 = vmatprep.subr.mxu0 0.0
  %2222 = vmatpush1.msra.mxu0 0.0
  %2223 = vmatprep.subr.mxu0 0.0
  %2224 = vmatpush1.msra.mxu0 0.0
  %2225 = vmatprep.subr.mxu0 0.0
  %2226 = vmatpush1.msra.mxu0 0.0
  %2227 = vmatprep.subr.mxu0 0.0
  %2228 = vmatpush1.msra.mxu0 0.0
  %2229 = vmatprep.subr.mxu0 0.0
  %2230 = vmatpush1.msra.mxu0 0.0
  %2231 = vmatprep.subr.mxu0 0.0
  %2232 = vmatpush1.msra.mxu0 0.0
  %2233 = vmatprep.subr.mxu0 0.0
  %2234 = vmatpush1.msra.mxu0 0.0
  %2235 = vmatprep.subr.mxu0 0.0
  %2236 = vmatpush1.msra.mxu0 0.0
  %2237 = vmatprep.subr.mxu0 0.0
  %2238 = vmatpush1.msra.mxu0 0.0
  %2239 = vmatprep.subr.mxu0 0.0
  %2240 = vmatpush1.msra.mxu0 0.0
  %2241 = vmatprep.subr.mxu0 0.0
  %2242 = vmatpush1.msra.mxu0 0.0
  %2243 = vmatprep.subr.mxu0 0.0
  %2244 = vmatpush1.msra.mxu0 0.0
  %2245 = vmatprep.subr.mxu0 0.0
  %2246 = vmatpush1.msra.mxu0 0.0
  %2247 = vmatprep.subr.mxu0 0.0
  %2248 = vmatpush1.msra.mxu0 0.0
  %2249 = vmatprep.subr.mxu0 0.0
  %2250 = vmatpush1.msra.mxu0 0.0
  %2251 = vmatprep.subr.mxu0 0.0
  %2252 = vmatpush1.msra.mxu0 0.0
  %2253 = vmatprep.subr.mxu0 0.0
  %2254 = vmatpush1.msra.mxu0 0.0
  %2255 = vmatprep.subr.mxu0 0.0
  %2256 = vmatpush1.msra.mxu0 0.0
  %2257 = vmatprep.subr.mxu0 0.0
  %2258 = vmatpush1.msra.mxu0 0.0
  %2259 = vmatprep.subr.mxu0 0.0
  %2260 = vmatpush1.msra.mxu0 0.0
  %2261 = vmatprep.subr.mxu0 0.0
  %2262 = vmatpush1.msra.mxu0 0.0
  %2263 = vmatprep.subr.mxu0 0.0
  %2264 = vmatpush1.msra.mxu0 0.0
  %2265 = vmatprep.subr.mxu0 0.0
  %2266 = vmatpush1.msra.mxu0 0.0
  %2267 = vmatprep.mubr.f32.mxu0 0.0
  %2268 = vmatmul.mubr.f32.gmra.mrb[0].mxu0 %v2198
  %v2269 = vpop.f32.mrb[0].mxu0
  %v2270 = vadd.f32 %v2190, %v2269
  %v2271 = vpop.f32.mrb[0].mxu0
  %v2272 = vadd.f32 %v2194, %v2271
  %2273 = vmatprep.mubr.f32.mxu0 0.0
  %2274 = vmatmul.mubr.f32.gmra.mrb[0].mxu0 %v2201
  %v2275 = vpop.f32.mrb[0].mxu0
  %v2276 = vadd.f32 %v2190, %v2275
  %v2277 = vpop.f32.mrb[0].mxu0
  %v2278 = vadd.f32 %v2194, %v2277
  %2279 = vdwg.mxu0
  %v2280 = vmul.f32 %v2270, 0.35355338
  %v2281 = vmul.f32 %v2276, 0.35355338
  %v2282 = vmul.f32 %v2270, %v283
  %v2283 = vmul.f32 %v2276, %v285
  %v2284 = vmul.f32 %v2270, %v287
  %v2285 = vmul.f32 %v2276, %v289
  %v2286 = vmul.f32 %v2270, %v291
  %v2287 = vmul.f32 %v2276, %v293
  %v2288 = vmul.f32 %v2270, %v295
  %v2289 = vmul.f32 %v2276, %v297
  %v2290 = vmul.f32 %v2270, %v299
  %v2291 = vmul.f32 %v2276, %v301
  %v2292 = vmul.f32 %v2270, %v303
  %v2293 = vmul.f32 %v2276, %v305
  %v2294 = vmul.f32 %v2270, %v307
  %v2295 = vmul.f32 %v2276, %v309
  %v2296 = vmul.f32 %v2270, %v311
  %v2297 = vmul.f32 %v2276, %v313
  %v2298 = vmul.f32 %v2272, %v250
  %v2299 = vmul.f32 %v2278, %v251
  %v2300 = vmul.f32 %v2272, %v252
  %v2301 = vmul.f32 %v2278, %v253
  %v2302 = vmul.f32 %v2272, %v254
  %v2303 = vmul.f32 %v2278, %v255
  %v2304 = vmul.f32 %v2272, %v256
  %v2305 = vmul.f32 %v2278, %v257
  %v2306 = vmul.f32 %v2272, %v258
  %v2307 = vmul.f32 %v2278, %v259
  %v2308 = vmul.f32 %v2272, %v260
  %v2309 = vmul.f32 %v2278, %v261
  %v2310 = vmul.f32 %v2272, %v262
  %v2311 = vmul.f32 %v2278, %v263
  %v2312 = vmul.f32 %v2272, %v264
  %v2313 = vmul.f32 %v2278, %v265
  %2330 = vrot.lane.b32.xlu0 %v2282, 64
  %v2331 = vpop.permute.xlu0 %2330
  %2332 = vrot.lane.b32.xlu0 %v2283, 64
  %v2333 = vpop.permute.xlu0 %2332
  %2334 = vrot.lane.b32.xlu0 %v2284, 64
  %v2335 = vpop.permute.xlu0 %2334
  %2336 = vrot.lane.b32.xlu0 %v2285, 64
  %v2337 = vpop.permute.xlu0 %2336
  %2338 = vrot.lane.b32.xlu0 %v2286, 64
  %v2339 = vpop.permute.xlu0 %2338
  %2340 = vrot.lane.b32.xlu0 %v2287, 64
  %v2341 = vpop.permute.xlu0 %2340
  %2342 = vrot.lane.b32.xlu0 %v2288, 64
  %v2343 = vpop.permute.xlu0 %2342
  %2344 = vrot.lane.b32.xlu0 %v2289, 64
  %v2345 = vpop.permute.xlu0 %2344
  %2346 = vrot.lane.b32.xlu0 %v2290, 64
  %v2347 = vpop.permute.xlu0 %2346
  %2348 = vrot.lane.b32.xlu0 %v2291, 64
  %v2349 = vpop.permute.xlu0 %2348
  %2350 = vrot.lane.b32.xlu0 %v2292, 64
  %v2351 = vpop.permute.xlu0 %2350
  %2352 = vrot.lane.b32.xlu0 %v2293, 64
  %v2353 = vpop.permute.xlu0 %2352
  %2354 = vrot.lane.b32.xlu0 %v2294, 64
  %v2355 = vpop.permute.xlu0 %2354
  %2356 = vrot.lane.b32.xlu0 %v2295, 64
  %v2357 = vpop.permute.xlu0 %2356
  %2358 = vrot.lane.b32.xlu0 %v2296, 64
  %v2359 = vpop.permute.xlu0 %2358
  %2360 = vrot.lane.b32.xlu0 %v2297, 64
  %v2361 = vpop.permute.xlu0 %2360
  %v2363 = vsel %vm164, %v2280, 0
  %v2366 = vsel %vm164, %v2281, 0
  %v2368 = vsel %vm164, %v2331, 0
  %v2370 = vsel %vm164, %v2333, 0
  %v2372 = vsel %vm164, %v2335, 0
  %v2374 = vsel %vm164, %v2337, 0
  %v2376 = vsel %vm164, %v2339, 0
  %v2378 = vsel %vm164, %v2341, 0
  %v2380 = vsel %vm164, %v2343, 0
  %v2382 = vsel %vm164, %v2345, 0
  %v2384 = vsel %vm164, %v2347, 0
  %v2386 = vsel %vm164, %v2349, 0
  %v2388 = vsel %vm164, %v2351, 0
  %v2390 = vsel %vm164, %v2353, 0
  %v2392 = vsel %vm164, %v2355, 0
  %v2394 = vsel %vm164, %v2357, 0
  %v2396 = vsel %vm164, %v2359, 0
  %v2398 = vsel %vm164, %v2361, 0
  %2400 = vmatprep.subr.mxu0 0.0
  %2401 = vmatpush1.xpose.msra.mxu0 %v2368
  %2402 = vmatprep.subr.mxu0 0.0
  %2403 = vmatpush1.xpose.msra.mxu0 %v2370
  %2404 = vmatprep.subr.mxu0 0.0
  %2405 = vmatpush1.xpose.msra.mxu0 %v2372
  %2406 = vmatprep.subr.mxu0 0.0
  %2407 = vmatpush1.xpose.msra.mxu0 %v2374
  %2408 = vmatprep.subr.mxu0 0.0
  %2409 = vmatpush1.xpose.msra.mxu0 %v2376
  %2410 = vmatprep.subr.mxu0 0.0
  %2411 = vmatpush1.xpose.msra.mxu0 %v2378
  %2412 = vmatprep.subr.mxu0 0.0
  %2413 = vmatpush1.xpose.msra.mxu0 %v2380
  %2414 = vmatprep.subr.mxu0 0.0
  %2415 = vmatpush1.xpose.msra.mxu0 %v2382
  %2416 = vmatprep.subr.mxu0 0.0
  %2417 = vmatpush1.xpose.msra.mxu0 %v2384
  %2418 = vmatprep.subr.mxu0 0.0
  %2419 = vmatpush1.xpose.msra.mxu0 %v2386
  %2420 = vmatprep.subr.mxu0 0.0
  %2421 = vmatpush1.xpose.msra.mxu0 %v2388
  %2422 = vmatprep.subr.mxu0 0.0
  %2423 = vmatpush1.xpose.msra.mxu0 %v2390
  %2424 = vmatprep.subr.mxu0 0.0
  %2425 = vmatpush1.xpose.msra.mxu0 %v2392
  %2426 = vmatprep.subr.mxu0 0.0
  %2427 = vmatpush1.xpose.msra.mxu0 %v2394
  %2428 = vmatprep.subr.mxu0 0.0
  %2429 = vmatpush1.xpose.msra.mxu0 %v2396
  %2430 = vmatprep.subr.mxu0 0.0
  %2431 = vmatpush1.xpose.msra.mxu0 %v2398
  %2432 = vmatprep.subr.mxu0 0.0
  %2433 = vmatpush1.xpose.msra.mxu0 0.0
  %2434 = vmatprep.subr.mxu0 0.0
  %2435 = vmatpush1.xpose.msra.mxu0 0.0
  %2436 = vmatprep.subr.mxu0 0.0
  %2437 = vmatpush1.xpose.msra.mxu0 0.0
  %2438 = vmatprep.subr.mxu0 0.0
  %2439 = vmatpush1.xpose.msra.mxu0 0.0
  %2440 = vmatprep.subr.mxu0 0.0
  %2441 = vmatpush1.xpose.msra.mxu0 0.0
  %2442 = vmatprep.subr.mxu0 0.0
  %2443 = vmatpush1.xpose.msra.mxu0 0.0
  %2444 = vmatprep.subr.mxu0 0.0
  %2445 = vmatpush1.xpose.msra.mxu0 0.0
  %2446 = vmatprep.subr.mxu0 0.0
  %2447 = vmatpush1.xpose.msra.mxu0 0.0
  %2448 = vmatprep.subr.mxu0 0.0
  %2449 = vmatpush1.xpose.msra.mxu0 0.0
  %2450 = vmatprep.subr.mxu0 0.0
  %2451 = vmatpush1.xpose.msra.mxu0 0.0
  %2452 = vmatprep.subr.mxu0 0.0
  %2453 = vmatpush1.xpose.msra.mxu0 0.0
  %2454 = vmatprep.subr.mxu0 0.0
  %2455 = vmatpush1.xpose.msra.mxu0 0.0
  %2456 = vmatprep.subr.mxu0 0.0
  %2457 = vmatpush1.xpose.msra.mxu0 0.0
  %2458 = vmatprep.subr.mxu0 0.0
  %2459 = vmatpush1.xpose.msra.mxu0 0.0
  %2460 = vmatprep.subr.mxu0 0.0
  %2461 = vmatpush1.xpose.msra.mxu0 0.0
  %2462 = vmatprep.subr.mxu0 0.0
  %2463 = vmatpush1.xpose.msra.mxu0 0.0
  %2464 = vmatprep.mubr.f32.mxu0 0.0
  %2465 = vmatmul.mubr.f32.gmra.mrb[0].mxu0 %v2363
  %v2466 = vpop.f32.mrb[0].mxu0
  %v2467 = vadd.f32 0.0, %v2466
  %v2468 = vpop.f32.mrb[0].mxu0
  %2469 = vmatprep.mubr.f32.mxu0 0.0
  %2470 = vmatmul.mubr.f32.gmra.mrb[0].mxu0 %v2366
  %v2471 = vpop.f32.mrb[0].mxu0
  %v2472 = vadd.f32 0.0, %v2471
  %v2473 = vpop.f32.mrb[0].mxu0
  %2474 = vdwg.mxu0
  %v2475 = vadd.f32 %v2467, %v523
  %v2476 = vadd.f32 %v2472, %v524
  %v2477 = vadd.f32 %v2467, %v525
  %v2478 = vadd.f32 %v2472, %v526
  %v2479 = vadd.f32 %v2467, %v527
  %v2480 = vadd.f32 %v2472, %v528
  %v2481 = vadd.f32 %v2467, %v529
  %v2482 = vadd.f32 %v2472, %v530
  %v2483 = vadd.f32 %v2467, %v531
  %v2484 = vadd.f32 %v2472, %v532
  %v2485 = vadd.f32 %v2467, %v533
  %v2486 = vadd.f32 %v2472, %v534
  %v2487 = vadd.f32 %v2467, %v535
  %v2488 = vadd.f32 %v2472, %v536
  %v2489 = vadd.f32 %v2467, %v537
  %v2490 = vadd.f32 %v2472, %v538
  %2491 = vmax.xlane.f32.xlu0 %v2475
  %v2492 = vpop.xlane.xlu0 %2491
  %2493 = vmax.xlane.f32.xlu0 %v2476
  %v2494 = vpop.xlane.xlu0 %2493
  %2495 = vmax.xlane.f32.xlu0 %v2477
  %v2496 = vpop.xlane.xlu0 %2495
  %2497 = vmax.xlane.f32.xlu0 %v2478
  %v2498 = vpop.xlane.xlu0 %2497
  %2499 = vmax.xlane.f32.xlu0 %v2479
  %v2500 = vpop.xlane.xlu0 %2499
  %2501 = vmax.xlane.f32.xlu0 %v2480
  %v2502 = vpop.xlane.xlu0 %2501
  %2503 = vmax.xlane.f32.xlu0 %v2481
  %v2504 = vpop.xlane.xlu0 %2503
  %2505 = vmax.xlane.f32.xlu0 %v2482
  %v2506 = vpop.xlane.xlu0 %2505
  %2507 = vmax.xlane.f32.xlu0 %v2483
  %v2508 = vpop.xlane.xlu0 %2507
  %2509 = vmax.xlane.f32.xlu0 %v2484
  %v2510 = vpop.xlane.xlu0 %2509
  %2511 = vmax.xlane.f32.xlu0 %v2485
  %v2512 = vpop.xlane.xlu0 %2511
  %2513 = vmax.xlane.f32.xlu0 %v2486
  %v2514 = vpop.xlane.xlu0 %2513
  %2515 = vmax.xlane.f32.xlu0 %v2487
  %v2516 = vpop.xlane.xlu0 %2515
  %2517 = vmax.xlane.f32.xlu0 %v2488
  %v2518 = vpop.xlane.xlu0 %2517
  %2519 = vmax.xlane.f32.xlu0 %v2489
  %v2520 = vpop.xlane.xlu0 %2519
  %2521 = vmax.xlane.f32.xlu0 %v2490
  %v2522 = vpop.xlane.xlu0 %2521
  %v2523 = vsub.f32 %v2475, %v2492
  %v2524 = vsub.f32 %v2476, %v2494
  %v2525 = vsub.f32 %v2477, %v2496
  %v2526 = vsub.f32 %v2478, %v2498
  %v2527 = vsub.f32 %v2479, %v2500
  %v2528 = vsub.f32 %v2480, %v2502
  %v2529 = vsub.f32 %v2481, %v2504
  %v2530 = vsub.f32 %v2482, %v2506
  %v2531 = vsub.f32 %v2483, %v2508
  %v2532 = vsub.f32 %v2484, %v2510
  %v2533 = vsub.f32 %v2485, %v2512
  %v2534 = vsub.f32 %v2486, %v2514
  %v2535 = vsub.f32 %v2487, %v2516
  %v2536 = vsub.f32 %v2488, %v2518
  %v2537 = vsub.f32 %v2489, %v2520
  %v2538 = vsub.f32 %v2490, %v2522
  %v2539 = vmul.f32 %v2523, 1.442695
  %v2540 = vpow.pop %v2539
  %v2541 = vmul.f32 %v2524, 1.442695
  %v2542 = vpow.pop %v2541
  %v2543 = vmul.f32 %v2525, 1.442695
  %v2544 = vpow.pop %v2543
  %v2545 = vmul.f32 %v2526, 1.442695
  %v2546 = vpow.pop %v2545
  %v2547 = vmul.f32 %v2527, 1.442695
  %v2548 = vpow.pop %v2547
  %v2549 = vmul.f32 %v2528, 1.442695
  %v2550 = vpow.pop %v2549
  %v2551 = vmul.f32 %v2529, 1.442695
  %v2552 = vpow.pop %v2551
  %v2553 = vmul.f32 %v2530, 1.442695
  %v2554 = vpow.pop %v2553
  %v2555 = vmul.f32 %v2531, 1.442695
  %v2556 = vpow.pop %v2555
  %v2557 = vmul.f32 %v2532, 1.442695
  %v2558 = vpow.pop %v2557
  %v2559 = vmul.f32 %v2533, 1.442695
  %v2560 = vpow.pop %v2559
  %v2561 = vmul.f32 %v2534, 1.442695
  %v2562 = vpow.pop %v2561
  %v2563 = vmul.f32 %v2535, 1.442695
  %v2564 = vpow.pop %v2563
  %v2565 = vmul.f32 %v2536, 1.442695
  %v2566 = vpow.pop %v2565
  %v2567 = vmul.f32 %v2537, 1.442695
  %v2568 = vpow.pop %v2567
  %v2569 = vmul.f32 %v2538, 1.442695
  %v2570 = vpow.pop %v2569
  %2571 = vadd.xlane.f32.xlu0 %v2540
  %v2572 = vpop.xlane.xlu0 %2571
  %2573 = vadd.xlane.f32.xlu0 %v2542
  %v2574 = vpop.xlane.xlu0 %2573
  %2575 = vadd.xlane.f32.xlu0 %v2544
  %v2576 = vpop.xlane.xlu0 %2575
  %2577 = vadd.xlane.f32.xlu0 %v2546
  %v2578 = vpop.xlane.xlu0 %2577
  %2579 = vadd.xlane.f32.xlu0 %v2548
  %v2580 = vpop.xlane.xlu0 %2579
  %2581 = vadd.xlane.f32.xlu0 %v2550
  %v2582 = vpop.xlane.xlu0 %2581
  %2583 = vadd.xlane.f32.xlu0 %v2552
  %v2584 = vpop.xlane.xlu0 %2583
  %2585 = vadd.xlane.f32.xlu0 %v2554
  %v2586 = vpop.xlane.xlu0 %2585
  %2587 = vadd.xlane.f32.xlu0 %v2556
  %v2588 = vpop.xlane.xlu0 %2587
  %2589 = vadd.xlane.f32.xlu0 %v2558
  %v2590 = vpop.xlane.xlu0 %2589
  %2591 = vadd.xlane.f32.xlu0 %v2560
  %v2592 = vpop.xlane.xlu0 %2591
  %2593 = vadd.xlane.f32.xlu0 %v2562
  %v2594 = vpop.xlane.xlu0 %2593
  %2595 = vadd.xlane.f32.xlu0 %v2564
  %v2596 = vpop.xlane.xlu0 %2595
  %2597 = vadd.xlane.f32.xlu0 %v2566
  %v2598 = vpop.xlane.xlu0 %2597
  %2599 = vadd.xlane.f32.xlu0 %v2568
  %v2600 = vpop.xlane.xlu0 %2599
  %2601 = vadd.xlane.f32.xlu0 %v2570
  %v2602 = vpop.xlane.xlu0 %2601
  %v2603 = vrcp.pop %v2572
  %v2604 = vrcp.pop %v2574
  %v2605 = vrcp.pop %v2576
  %v2606 = vrcp.pop %v2578
  %v2607 = vrcp.pop %v2580
  %v2608 = vrcp.pop %v2582
  %v2609 = vrcp.pop %v2584
  %v2610 = vrcp.pop %v2586
  %v2611 = vrcp.pop %v2588
  %v2612 = vrcp.pop %v2590
  %v2613 = vrcp.pop %v2592
  %v2614 = vrcp.pop %v2594
  %v2615 = vrcp.pop %v2596
  %v2616 = vrcp.pop %v2598
  %v2617 = vrcp.pop %v2600
  %v2618 = vrcp.pop %v2602
  %v2619 = vmul.f32 %v2540, %v2603
  %v2620 = vmul.f32 %v2542, %v2604
  %v2621 = vmul.f32 %v2544, %v2605
  %v2622 = vmul.f32 %v2546, %v2606
  %v2623 = vmul.f32 %v2548, %v2607
  %v2624 = vmul.f32 %v2550, %v2608
  %v2625 = vmul.f32 %v2552, %v2609
  %v2626 = vmul.f32 %v2554, %v2610
  %v2627 = vmul.f32 %v2556, %v2611
  %v2628 = vmul.f32 %v2558, %v2612
  %v2629 = vmul.f32 %v2560, %v2613
  %v2630 = vmul.f32 %v2562, %v2614
  %v2631 = vmul.f32 %v2564, %v2615
  %v2632 = vmul.f32 %v2566, %v2616
  %v2633 = vmul.f32 %v2568, %v2617
  %v2634 = vmul.f32 %v2570, %v2618
  %v2635 = vadd.f32 %v2619, %v2621
  %v2636 = vadd.f32 %v2620, %v2622
  %v2637 = vadd.f32 %v2635, %v2623
  %v2638 = vadd.f32 %v2636, %v2624
  %v2639 = vadd.f32 %v2637, %v2625
  %v2640 = vadd.f32 %v2638, %v2626
  %v2641 = vadd.f32 %v2639, %v2627
  %v2642 = vadd.f32 %v2640, %v2628
  %v2643 = vadd.f32 %v2641, %v2629
  %v2644 = vadd.f32 %v2642, %v2630
  %v2645 = vadd.f32 %v2643, %v2631
  %v2646 = vadd.f32 %v2644, %v2632
  %v2647 = vadd.f32 %v2645, %v2633
  %v2648 = vadd.f32 %v2646, %v2634
  %2649 = vmatprep.subr.mxu0 0.0
  %2650 = vmatpush1.msra.mxu0 %v2298
  %2651 = vmatprep.subr.mxu0 0.0
  %2652 = vmatpush1.msra.mxu0 %v2299
  %2653 = vmatprep.subr.mxu0 0.0
  %2654 = vmatpush1.msra.mxu0 %v2300
  %2655 = vmatprep.subr.mxu0 0.0
  %2656 = vmatpush1.msra.mxu0 %v2301
  %2657 = vmatprep.subr.mxu0 0.0
  %2658 = vmatpush1.msra.mxu0 %v2302
  %2659 = vmatprep.subr.mxu0 0.0
  %2660 = vmatpush1.msra.mxu0 %v2303
  %2661 = vmatprep.subr.mxu0 0.0
  %2662 = vmatpush1.msra.mxu0 %v2304
  %2663 = vmatprep.subr.mxu0 0.0
  %2664 = vmatpush1.msra.mxu0 %v2305
  %2665 = vmatprep.subr.mxu0 0.0
  %2666 = vmatpush1.msra.mxu0 %v2306
  %2667 = vmatprep.subr.mxu0 0.0
  %2668 = vmatpush1.msra.mxu0 %v2307
  %2669 = vmatprep.subr.mxu0 0.0
  %2670 = vmatpush1.msra.mxu0 %v2308
  %2671 = vmatprep.subr.mxu0 0.0
  %2672 = vmatpush1.msra.mxu0 %v2309
  %2673 = vmatprep.subr.mxu0 0.0
  %2674 = vmatpush1.msra.mxu0 %v2310
  %2675 = vmatprep.subr.mxu0 0.0
  %2676 = vmatpush1.msra.mxu0 %v2311
  %2677 = vmatprep.subr.mxu0 0.0
  %2678 = vmatpush1.msra.mxu0 %v2312
  %2679 = vmatprep.subr.mxu0 0.0
  %2680 = vmatpush1.msra.mxu0 %v2313
  %2681 = vmatprep.subr.mxu0 0.0
  %2682 = vmatpush1.msra.mxu0 0.0
  %2683 = vmatprep.subr.mxu0 0.0
  %2684 = vmatpush1.msra.mxu0 0.0
  %2685 = vmatprep.subr.mxu0 0.0
  %2686 = vmatpush1.msra.mxu0 0.0
  %2687 = vmatprep.subr.mxu0 0.0
  %2688 = vmatpush1.msra.mxu0 0.0
  %2689 = vmatprep.subr.mxu0 0.0
  %2690 = vmatpush1.msra.mxu0 0.0
  %2691 = vmatprep.subr.mxu0 0.0
  %2692 = vmatpush1.msra.mxu0 0.0
  %2693 = vmatprep.subr.mxu0 0.0
  %2694 = vmatpush1.msra.mxu0 0.0
  %2695 = vmatprep.subr.mxu0 0.0
  %2696 = vmatpush1.msra.mxu0 0.0
  %2697 = vmatprep.subr.mxu0 0.0
  %2698 = vmatpush1.msra.mxu0 0.0
  %2699 = vmatprep.subr.mxu0 0.0
  %2700 = vmatpush1.msra.mxu0 0.0
  %2701 = vmatprep.subr.mxu0 0.0
  %2702 = vmatpush1.msra.mxu0 0.0
  %2703 = vmatprep.subr.mxu0 0.0
  %2704 = vmatpush1.msra.mxu0 0.0
  %2705 = vmatprep.subr.mxu0 0.0
  %2706 = vmatpush1.msra.mxu0 0.0
  %2707 = vmatprep.subr.mxu0 0.0
  %2708 = vmatpush1.msra.mxu0 0.0
  %2709 = vmatprep.subr.mxu0 0.0
  %2710 = vmatpush1.msra.mxu0 0.0
  %2711 = vmatprep.subr.mxu0 0.0
  %2712 = vmatpush1.msra.mxu0 0.0
  %2713 = vmatprep.mubr.f32.mxu0 0.0
  %2714 = vmatmul.mubr.f32.gmra.mrb[0].mxu0 %v2647
  %v2715 = vpop.f32.mrb[0].mxu0
  %v2716 = vadd.f32 0.0, %v2715
  %v2717 = vpop.f32.mrb[0].mxu0
  %2718 = vmatprep.mubr.f32.mxu0 0.0
  %2719 = vmatmul.mubr.f32.gmra.mrb[0].mxu0 %v2648
  %v2720 = vpop.f32.mrb[0].mxu0
  %v2721 = vadd.f32 0.0, %v2720
  %v2722 = vpop.f32.mrb[0].mxu0
  %2723 = vdwg.mxu0
  %s2724 = scalar_lea.vmem %s5, 128
  %v2725 = vld [vmem:[%s2724] sm:$0xff]
  %v2726 = vld [vmem:[%s2724 + $0x8] sm:$0xff]
  %v2727 = vld [vmem:[%s2724 + $0x10] sm:$0xff]
  %v2728 = vld [vmem:[%s2724 + $0x18] sm:$0xff]
  %v2729 = vld [vmem:[%s2724 + $0x20] sm:$0xff]
  %v2730 = vld [vmem:[%s2724 + $0x28] sm:$0xff]
  %v2731 = vld [vmem:[%s2724 + $0x30] sm:$0xff]
  %v2732 = vld [vmem:[%s2724 + $0x38] sm:$0xff]
  %v2733 = vlaneseq
  %v2734 = vshrl.u32 %v2733, 7
  %v2735 = vsub.s32 0, %v2734
  %v2736 = vrot.slane %v2166, %v2735
  %v2738 = vsel %vm164, %v2716, 0
  %v2741 = vsel %vm164, %v2721, 0
  %2743 = vmatprep.subr.mxu0 0.0
  %2744 = vmatpush1.msra.mxu0 %v2725
  %2745 = vmatprep.subr.mxu0 0.0
  %2746 = vmatpush1.msra.mxu0 %v2726
  %2747 = vmatprep.subr.mxu0 0.0
  %2748 = vmatpush1.msra.mxu0 %v2727
  %2749 = vmatprep.subr.mxu0 0.0
  %2750 = vmatpush1.msra.mxu0 %v2728
  %2751 = vmatprep.subr.mxu0 0.0
  %2752 = vmatpush1.msra.mxu0 %v2729
  %2753 = vmatprep.subr.mxu0 0.0
  %2754 = vmatpush1.msra.mxu0 %v2730
  %2755 = vmatprep.subr.mxu0 0.0
  %2756 = vmatpush1.msra.mxu0 %v2731
  %2757 = vmatprep.subr.mxu0 0.0
  %2758 = vmatpush1.msra.mxu0 %v2732
  %2759 = vmatprep.subr.mxu0 0.0
  %2760 = vmatpush1.msra.mxu0 0.0
  %2761 = vmatprep.subr.mxu0 0.0
  %2762 = vmatpush1.msra.mxu0 0.0
  %2763 = vmatprep.subr.mxu0 0.0
  %2764 = vmatpush1.msra.mxu0 0.0
  %2765 = vmatprep.subr.mxu0 0.0
  %2766 = vmatpush1.msra.mxu0 0.0
  %2767 = vmatprep.subr.mxu0 0.0
  %2768 = vmatpush1.msra.mxu0 0.0
  %2769 = vmatprep.subr.mxu0 0.0
  %2770 = vmatpush1.msra.mxu0 0.0
  %2771 = vmatprep.subr.mxu0 0.0
  %2772 = vmatpush1.msra.mxu0 0.0
  %2773 = vmatprep.subr.mxu0 0.0
  %2774 = vmatpush1.msra.mxu0 0.0
  %2775 = vmatprep.subr.mxu0 0.0
  %2776 = vmatpush1.msra.mxu0 0.0
  %2777 = vmatprep.subr.mxu0 0.0
  %2778 = vmatpush1.msra.mxu0 0.0
  %2779 = vmatprep.subr.mxu0 0.0
  %2780 = vmatpush1.msra.mxu0 0.0
  %2781 = vmatprep.subr.mxu0 0.0
  %2782 = vmatpush1.msra.mxu0 0.0
  %2783 = vmatprep.subr.mxu0 0.0
  %2784 = vmatpush1.msra.mxu0 0.0
  %2785 = vmatprep.subr.mxu0 0.0
  %2786 = vmatpush1.msra.mxu0 0.0
  %2787 = vmatprep.subr.mxu0 0.0
  %2788 = vmatpush1.msra.mxu0 0.0
  %2789 = vmatprep.subr.mxu0 0.0
  %2790 = vmatpush1.msra.mxu0 0.0
  %2791 = vmatprep.subr.mxu0 0.0
  %2792 = vmatpush1.msra.mxu0 0.0
  %2793 = vmatprep.subr.mxu0 0.0
  %2794 = vmatpush1.msra.mxu0 0.0
  %2795 = vmatprep.subr.mxu0 0.0
  %2796 = vmatpush1.msra.mxu0 0.0
  %2797 = vmatprep.subr.mxu0 0.0
  %2798 = vmatpush1.msra.mxu0 0.0
  %2799 = vmatprep.subr.mxu0 0.0
  %2800 = vmatpush1.msra.mxu0 0.0
  %2801 = vmatprep.subr.mxu0 0.0
  %2802 = vmatpush1.msra.mxu0 0.0
  %2803 = vmatprep.subr.mxu0 0.0
  %2804 = vmatpush1.msra.mxu0 0.0
  %2805 = vmatprep.subr.mxu0 0.0
  %2806 = vmatpush1.msra.mxu0 0.0
  %2807 = vmatprep.mubr.f32.mxu0 0.0
  %2808 = vmatmul.mubr.f32.gmra.mrb[0].mxu0 %v2738
  %v2809 = vpop.f32.mrb[0].mxu0
  %v2810 = vadd.f32 %v2736, %v2809
  %v2811 = vpop.f32.mrb[0].mxu0
  %2812 = vmatprep.mubr.f32.mxu0 0.0
  %2813 = vmatmul.mubr.f32.gmra.mrb[0].mxu0 %v2741
  %v2814 = vpop.f32.mrb[0].mxu0
  %v2815 = vadd.f32 %v2736, %v2814
  %v2816 = vpop.f32.mrb[0].mxu0
  %2817 = vdwg.mxu0
  %v2818 = vadd.f32 %v2163, %v2810
  %v2819 = vadd.f32 %v2164, %v2815
  %v2820 = vsel %vm164, %v2818, 0.0
  %2821 = vadd.xlane.f32.xlu0 %v2820
  %v2822 = vpop.xlane.xlu0 %2821
  %v2823 = vsel %vm164, %v2819, 0.0
  %2824 = vadd.xlane.f32.xlu0 %v2823
  %v2825 = vpop.xlane.xlu0 %2824
  %v2826 = vmul.f32 %v2822, 0.015625
  %v2827 = vmul.f32 %v2825, 0.015625
  %v2828 = vmul.f32 %v2818, %v2818
  %v2829 = vmul.f32 %v2819, %v2819
  %v2830 = vsel %vm164, %v2828, 0.0
  %2831 = vadd.xlane.f32.xlu0 %v2830
  %v2832 = vpop.xlane.xlu0 %2831
  %v2833 = vsel %vm164, %v2829, 0.0
  %2834 = vadd.xlane.f32.xlu0 %v2833
  %v2835 = vpop.xlane.xlu0 %2834
  %v2836 = vmul.f32 %v2832, 0.015625
  %v2837 = vmul.f32 %v2835, 0.015625
  %v2838 = vmul.f32 %v2826, %v2826
  %v2839 = vmul.f32 %v2827, %v2827
  %v2840 = vsub.f32 %v2836, %v2838
  %v2841 = vsub.f32 %v2837, %v2839
  %v2842 = vsub.f32 %v2818, %v2826
  %v2843 = vsub.f32 %v2819, %v2827
  %v2844 = vadd.f32 %v2840, 1e-05
  %v2845 = vadd.f32 %v2841, 1e-05
  %v2846 = vrsqrt.pop %v2844
  %v2847 = vrsqrt.pop %v2845
  %v2848 = vmul.f32 %v2842, %v2846
  %v2849 = vmul.f32 %v2843, %v2847
  %v2850 = vlaneseq
  %v2851 = vshrl.u32 %v2850, 7
  %v2852 = vsub.s32 1, %v2851
  %v2853 = vrot.slane %v2166, %v2852
  %v2854 = vmul.f32 %v2848, %v2853
  %v2855 = vmul.f32 %v2849, %v2853
  %v2856 = vlaneseq
  %v2857 = vshrl.u32 %v2856, 7
  %v2858 = vsub.s32 2, %v2857
  %v2859 = vrot.slane %v2166, %v2858
  %v2860 = vadd.f32 %v2854, %v2859
  %v2861 = vadd.f32 %v2855, %v2859
  %s2862 = scalar_lea.vmem %s7, 256
  %v2863 = vld [vmem:[%s2862] sm:$0xff]
  %v2864 = vld [vmem:[%s2862 + $0x8] sm:$0xff]
  %v2865 = vld [vmem:[%s2862 + $0x10] sm:$0xff]
  %v2866 = vld [vmem:[%s2862 + $0x18] sm:$0xff]
  %v2867 = vld [vmem:[%s2862 + $0x20] sm:$0xff]
  %v2868 = vld [vmem:[%s2862 + $0x28] sm:$0xff]
  %v2869 = vld [vmem:[%s2862 + $0x30] sm:$0xff]
  %v2870 = vld [vmem:[%s2862 + $0x38] sm:$0xff]
  %v2871 = vld [vmem:[%s2862 + $0x40] sm:$0xff]
  %v2872 = vld [vmem:[%s2862 + $0x48] sm:$0xff]
  %v2873 = vld [vmem:[%s2862 + $0x50] sm:$0xff]
  %v2874 = vld [vmem:[%s2862 + $0x58] sm:$0xff]
  %v2875 = vld [vmem:[%s2862 + $0x60] sm:$0xff]
  %v2876 = vld [vmem:[%s2862 + $0x68] sm:$0xff]
  %v2877 = vld [vmem:[%s2862 + $0x70] sm:$0xff]
  %v2878 = vld [vmem:[%s2862 + $0x78] sm:$0xff]
  %s2879 = scalar_lea.vmem %s8, 4
  %v2880 = vld [vmem:[%s2879] sm:$0x3]
  %v2882 = vlaneseq
  %v2883 = vshrl.u32 %v2882, 7
  %v2884 = vsub.s32 0, %v2883
  %v2885 = vrot.slane %v2880, %v2884
  %v2886 = vlaneseq
  %v2887 = vshrl.u32 %v2886, 7
  %v2888 = vsub.s32 1, %v2887
  %v2889 = vrot.slane %v2880, %v2888
  %v2893 = vsel %vm164, %v2860, 0
  %v2896 = vsel %vm164, %v2861, 0
  %2898 = vmatprep.subr.mxu0 %v2864
  %2899 = vmatpush1.msra.mxu0 %v2863
  %2900 = vmatprep.subr.mxu0 %v2866
  %2901 = vmatpush1.msra.mxu0 %v2865
  %2902 = vmatprep.subr.mxu0 %v2868
  %2903 = vmatpush1.msra.mxu0 %v2867
  %2904 = vmatprep.subr.mxu0 %v2870
  %2905 = vmatpush1.msra.mxu0 %v2869
  %2906 = vmatprep.subr.mxu0 %v2872
  %2907 = vmatpush1.msra.mxu0 %v2871
  %2908 = vmatprep.subr.mxu0 %v2874
  %2909 = vmatpush1.msra.mxu0 %v2873
  %2910 = vmatprep.subr.mxu0 %v2876
  %2911 = vmatpush1.msra.mxu0 %v2875
  %2912 = vmatprep.subr.mxu0 %v2878
  %2913 = vmatpush1.msra.mxu0 %v2877
  %2914 = vmatprep.subr.mxu0 0.0
  %2915 = vmatpush1.msra.mxu0 0.0
  %2916 = vmatprep.subr.mxu0 0.0
  %2917 = vmatpush1.msra.mxu0 0.0
  %2918 = vmatprep.subr.mxu0 0.0
  %2919 = vmatpush1.msra.mxu0 0.0
  %2920 = vmatprep.subr.mxu0 0.0
  %2921 = vmatpush1.msra.mxu0 0.0
  %2922 = vmatprep.subr.mxu0 0.0
  %2923 = vmatpush1.msra.mxu0 0.0
  %2924 = vmatprep.subr.mxu0 0.0
  %2925 = vmatpush1.msra.mxu0 0.0
  %2926 = vmatprep.subr.mxu0 0.0
  %2927 = vmatpush1.msra.mxu0 0.0
  %2928 = vmatprep.subr.mxu0 0.0
  %2929 = vmatpush1.msra.mxu0 0.0
  %2930 = vmatprep.subr.mxu0 0.0
  %2931 = vmatpush1.msra.mxu0 0.0
  %2932 = vmatprep.subr.mxu0 0.0
  %2933 = vmatpush1.msra.mxu0 0.0
  %2934 = vmatprep.subr.mxu0 0.0
  %2935 = vmatpush1.msra.mxu0 0.0
  %2936 = vmatprep.subr.mxu0 0.0
  %2937 = vmatpush1.msra.mxu0 0.0
  %2938 = vmatprep.subr.mxu0 0.0
  %2939 = vmatpush1.msra.mxu0 0.0
  %2940 = vmatprep.subr.mxu0 0.0
  %2941 = vmatpush1.msra.mxu0 0.0
  %2942 = vmatprep.subr.mxu0 0.0
  %2943 = vmatpush1.msra.mxu0 0.0
  %2944 = vmatprep.subr.mxu0 0.0
  %2945 = vmatpush1.msra.mxu0 0.0
  %2946 = vmatprep.subr.mxu0 0.0
  %2947 = vmatpush1.msra.mxu0 0.0
  %2948 = vmatprep.subr.mxu0 0.0
  %2949 = vmatpush1.msra.mxu0 0.0
  %2950 = vmatprep.subr.mxu0 0.0
  %2951 = vmatpush1.msra.mxu0 0.0
  %2952 = vmatprep.subr.mxu0 0.0
  %2953 = vmatpush1.msra.mxu0 0.0
  %2954 = vmatprep.subr.mxu0 0.0
  %2955 = vmatpush1.msra.mxu0 0.0
  %2956 = vmatprep.subr.mxu0 0.0
  %2957 = vmatpush1.msra.mxu0 0.0
  %2958 = vmatprep.subr.mxu0 0.0
  %2959 = vmatpush1.msra.mxu0 0.0
  %2960 = vmatprep.subr.mxu0 0.0
  %2961 = vmatpush1.msra.mxu0 0.0
  %2962 = vmatprep.mubr.f32.mxu0 0.0
  %2963 = vmatmul.mubr.f32.gmra.mrb[0].mxu0 %v2893
  %v2964 = vpop.f32.mrb[0].mxu0
  %v2965 = vadd.f32 %v2885, %v2964
  %v2966 = vpop.f32.mrb[0].mxu0
  %v2967 = vadd.f32 %v2889, %v2966
  %2968 = vmatprep.mubr.f32.mxu0 0.0
  %2969 = vmatmul.mubr.f32.gmra.mrb[0].mxu0 %v2896
  %v2970 = vpop.f32.mrb[0].mxu0
  %v2971 = vadd.f32 %v2885, %v2970
  %v2972 = vpop.f32.mrb[0].mxu0
  %v2973 = vadd.f32 %v2889, %v2972
  %2974 = vdwg.mxu0
  %v2975 = vmax.f32 %v2965, 0.0
  %v2976 = vmax.f32 %v2967, 0.0
  %v2977 = vmax.f32 %v2971, 0.0
  %v2978 = vmax.f32 %v2973, 0.0
  %s2979 = scalar_lea.vmem %s9, 512
  %v2980 = vld [vmem:[%s2979] sm:$0xff]
  %v2981 = vld [vmem:[%s2979 + $0x8] sm:$0xff]
  %v2982 = vld [vmem:[%s2979 + $0x10] sm:$0xff]
  %v2983 = vld [vmem:[%s2979 + $0x18] sm:$0xff]
  %v2984 = vld [vmem:[%s2979 + $0x20] sm:$0xff]
  %v2985 = vld [vmem:[%s2979 + $0x28] sm:$0xff]
  %v2986 = vld [vmem:[%s2979 + $0x30] sm:$0xff]
  %v2987 = vld [vmem:[%s2979 + $0x38] sm:$0xff]
  %v2988 = vld [vmem:[%s2979 + $0x40] sm:$0xff]
  %v2989 = vld [vmem:[%s2979 + $0x48] sm:$0xff]
  %v2990 = vld [vmem:[%s2979 + $0x50] sm:$0xff]
  %v2991 = vld [vmem:[%s2979 + $0x58] sm:$0xff]
  %v2992 = vld [vmem:[%s2979 + $0x60] sm:$0xff]
  %v2993 = vld [vmem:[%s2979 + $0x68] sm:$0xff]
  %v2994 = vld [vmem:[%s2979 + $0x70] sm:$0xff]
  %v2995 = vld [vmem:[%s2979 + $0x78] sm:$0xff]
  %v2996 = vld [vmem:[%s2979 + $0x80] sm:$0xff]
  %v2997 = vld [vmem:[%s2979 + $0x88] sm:$0xff]
  %v2998 = vld [vmem:[%s2979 + $0x90] sm:$0xff]
  %v2999 = vld [vmem:[%s2979 + $0x98] sm:$0xff]
  %v3000 = vld [vmem:[%s2979 + $0xa0] sm:$0xff]
  %v3001 = vld [vmem:[%s2979 + $0xa8] sm:$0xff]
  %v3002 = vld [vmem:[%s2979 + $0xb0] sm:$0xff]
  %v3003 = vld [vmem:[%s2979 + $0xb8] sm:$0xff]
  %v3004 = vld [vmem:[%s2979 + $0xc0] sm:$0xff]
  %v3005 = vld [vmem:[%s2979 + $0xc8] sm:$0xff]
  %v3006 = vld [vmem:[%s2979 + $0xd0] sm:$0xff]
  %v3007 = vld [vmem:[%s2979 + $0xd8] sm:$0xff]
  %v3008 = vld [vmem:[%s2979 + $0xe0] sm:$0xff]
  %v3009 = vld [vmem:[%s2979 + $0xe8] sm:$0xff]
  %v3010 = vld [vmem:[%s2979 + $0xf0] sm:$0xff]
  %v3011 = vld [vmem:[%s2979 + $0xf8] sm:$0xff]
  %v3012 = vlaneseq
  %v3013 = vshrl.u32 %v3012, 7
  %v3014 = vsub.s32 5, %v3013
  %v3015 = vrot.slane %v2166, %v3014
  %3016 = vmatprep.subr.mxu0 0.0
  %3017 = vmatpush1.msra.mxu0 %v2980
  %3018 = vmatprep.subr.mxu0 0.0
  %3019 = vmatpush1.msra.mxu0 %v2981
  %3020 = vmatprep.subr.mxu0 0.0
  %3021 = vmatpush1.msra.mxu0 %v2982
  %3022 = vmatprep.subr.mxu0 0.0
  %3023 = vmatpush1.msra.mxu0 %v2983
  %3024 = vmatprep.subr.mxu0 0.0
  %3025 = vmatpush1.msra.mxu0 %v2984
  %3026 = vmatprep.subr.mxu0 0.0
  %3027 = vmatpush1.msra.mxu0 %v2985
  %3028 = vmatprep.subr.mxu0 0.0
  %3029 = vmatpush1.msra.mxu0 %v2986
  %3030 = vmatprep.subr.mxu0 0.0
  %3031 = vmatpush1.msra.mxu0 %v2987
  %3032 = vmatprep.subr.mxu0 0.0
  %3033 = vmatpush1.msra.mxu0 %v2988
  %3034 = vmatprep.subr.mxu0 0.0
  %3035 = vmatpush1.msra.mxu0 %v2989
  %3036 = vmatprep.subr.mxu0 0.0
  %3037 = vmatpush1.msra.mxu0 %v2990
  %3038 = vmatprep.subr.mxu0 0.0
  %3039 = vmatpush1.msra.mxu0 %v2991
  %3040 = vmatprep.subr.mxu0 0.0
  %3041 = vmatpush1.msra.mxu0 %v2992
  %3042 = vmatprep.subr.mxu0 0.0
  %3043 = vmatpush1.msra.mxu0 %v2993
  %3044 = vmatprep.subr.mxu0 0.0
  %3045 = vmatpush1.msra.mxu0 %v2994
  %3046 = vmatprep.subr.mxu0 0.0
  %3047 = vmatpush1.msra.mxu0 %v2995
  %3048 = vmatprep.subr.mxu0 0.0
  %3049 = vmatpush1.msra.mxu0 %v2996
  %3050 = vmatprep.subr.mxu0 0.0
  %3051 = vmatpush1.msra.mxu0 %v2997
  %3052 = vmatprep.subr.mxu0 0.0
  %3053 = vmatpush1.msra.mxu0 %v2998
  %3054 = vmatprep.subr.mxu0 0.0
  %3055 = vmatpush1.msra.mxu0 %v2999
  %3056 = vmatprep.subr.mxu0 0.0
  %3057 = vmatpush1.msra.mxu0 %v3000
  %3058 = vmatprep.subr.mxu0 0.0
  %3059 = vmatpush1.msra.mxu0 %v3001
  %3060 = vmatprep.subr.mxu0 0.0
  %3061 = vmatpush1.msra.mxu0 %v3002
  %3062 = vmatprep.subr.mxu0 0.0
  %3063 = vmatpush1.msra.mxu0 %v3003
  %3064 = vmatprep.subr.mxu0 0.0
  %3065 = vmatpush1.msra.mxu0 %v3004
  %3066 = vmatprep.subr.mxu0 0.0
  %3067 = vmatpush1.msra.mxu0 %v3005
  %3068 = vmatprep.subr.mxu0 0.0
  %3069 = vmatpush1.msra.mxu0 %v3006
  %3070 = vmatprep.subr.mxu0 0.0
  %3071 = vmatpush1.msra.mxu0 %v3007
  %3072 = vmatprep.subr.mxu0 0.0
  %3073 = vmatpush1.msra.mxu0 %v3008
  %3074 = vmatprep.subr.mxu0 0.0
  %3075 = vmatpush1.msra.mxu0 %v3009
  %3076 = vmatprep.subr.mxu0 0.0
  %3077 = vmatpush1.msra.mxu0 %v3010
  %3078 = vmatprep.subr.mxu0 0.0
  %3079 = vmatpush1.msra.mxu0 %v3011
  %3080 = vmatprep.mubr.f32.mxu0 %v2976
  %3081 = vmatmul.mubr.f32.gmra.mrb[0].mxu0 %v2975
  %v3082 = vpop.f32.mrb[0].mxu0
  %v3083 = vadd.f32 %v3015, %v3082
  %v3084 = vpop.f32.mrb[0].mxu0
  %3085 = vmatprep.mubr.f32.mxu0 %v2978
  %3086 = vmatmul.mubr.f32.gmra.mrb[0].mxu0 %v2977
  %v3087 = vpop.f32.mrb[0].mxu0
  %v3088 = vadd.f32 %v3015, %v3087
  %v3089 = vpop.f32.mrb[0].mxu0
  %3090 = vdwg.mxu0
  %v3091 = vadd.f32 %v2860, %v3083
  %v3092 = vadd.f32 %v2861, %v3088
  %v3093 = vsel %vm164, %v3091, 0.0
  %3094 = vadd.xlane.f32.xlu0 %v3093
  %v3095 = vpop.xlane.xlu0 %3094
  %v3096 = vsel %vm164, %v3092, 0.0
  %3097 = vadd.xlane.f32.xlu0 %v3096
  %v3098 = vpop.xlane.xlu0 %3097
  %v3099 = vmul.f32 %v3095, 0.015625
  %v3100 = vmul.f32 %v3098, 0.015625
  %v3101 = vmul.f32 %v3091, %v3091
  %v3102 = vmul.f32 %v3092, %v3092
  %v3103 = vsel %vm164, %v3101, 0.0
  %3104 = vadd.xlane.f32.xlu0 %v3103
  %v3105 = vpop.xlane.xlu0 %3104
  %v3106 = vsel %vm164, %v3102, 0.0
  %3107 = vadd.xlane.f32.xlu0 %v3106
  %v3108 = vpop.xlane.xlu0 %3107
  %v3109 = vmul.f32 %v3105, 0.015625
  %v3110 = vmul.f32 %v3108, 0.015625
  %v3111 = vmul.f32 %v3099, %v3099
  %v3112 = vmul.f32 %v3100, %v3100
  %v3113 = vsub.f32 %v3109, %v3111
  %v3114 = vsub.f32 %v3110, %v3112
  %v3115 = vsub.f32 %v3091, %v3099
  %v3116 = vsub.f32 %v3092, %v3100
  %v3117 = vadd.f32 %v3113, 1e-05
  %v3118 = vadd.f32 %v3114, 1e-05
  %v3119 = vrsqrt.pop %v3117
  %v3120 = vrsqrt.pop %v3118
  %v3121 = vmul.f32 %v3115, %v3119
  %v3122 = vmul.f32 %v3116, %v3120
  %v3123 = vlaneseq
  %v3124 = vshrl.u32 %v3123, 7
  %v3125 = vsub.s32 3, %v3124
  %v3126 = vrot.slane %v2166, %v3125
  %v3127 = vmul.f32 %v3121, %v3126
  %v3128 = vmul.f32 %v3122, %v3126
  %v3129 = vlaneseq
  %v3130 = vshrl.u32 %v3129, 7
  %v3131 = vsub.s32 4, %v3130
  %v3132 = vrot.slane %v2166, %v3131
  %v3133 = vadd.f32 %v3127, %v3132
  %v3134 = vadd.f32 %v3128, %v3132
  %v3135 = vlaneseq
  %v3136 = vshrl.u32 %v3135, 7
  %v3137 = vlaneseq
  %v3138 = vand.u32 %v3137, 127
  %v3139 = vmul.u32 %v3136, 2
  %v3140 = vadd.s32 %v3139, 1
  %vm3141 = vcmp.eq.s32.totalorder %v3138, %v3140
  %v3142 = vsel %vm3141, 1, 0
  %v3143 = vcvt.s32.f32 %v3142
  %v3145 = vsel %vm53, %v3143, 0
  %3147 = vmatprep.subr.mxu0 0.0
  %3148 = vmatpush1.msra.mxu0 %v3133
  %3149 = vmatprep.subr.mxu0 0.0
  %3150 = vmatpush1.msra.mxu0 %v3134
  %3151 = vmatprep.subr.mxu0 0.0
  %3152 = vmatpush1.msra.mxu0 0.0
  %3153 = vmatprep.subr.mxu0 0.0
  %3154 = vmatpush1.msra.mxu0 0.0
  %3155 = vmatprep.subr.mxu0 0.0
  %3156 = vmatpush1.msra.mxu0 0.0
  %3157 = vmatprep.subr.mxu0 0.0
  %3158 = vmatpush1.msra.mxu0 0.0
  %3159 = vmatprep.subr.mxu0 0.0
  %3160 = vmatpush1.msra.mxu0 0.0
  %3161 = vmatprep.subr.mxu0 0.0
  %3162 = vmatpush1.msra.mxu0 0.0
  %3163 = vmatprep.subr.mxu0 0.0
  %3164 = vmatpush1.msra.mxu0 0.0
  %3165 = vmatprep.subr.mxu0 0.0
  %3166 = vmatpush1.msra.mxu0 0.0
  %3167 = vmatprep.subr.mxu0 0.0
  %3168 = vmatpush1.msra.mxu0 0.0
  %3169 = vmatprep.subr.mxu0 0.0
  %3170 = vmatpush1.msra.mxu0 0.0
  %3171 = vmatprep.subr.mxu0 0.0
  %3172 = vmatpush1.msra.mxu0 0.0
  %3173 = vmatprep.subr.mxu0 0.0
  %3174 = vmatpush1.msra.mxu0 0.0
  %3175 = vmatprep.subr.mxu0 0.0
  %3176 = vmatpush1.msra.mxu0 0.0
  %3177 = vmatprep.subr.mxu0 0.0
  %3178 = vmatpush1.msra.mxu0 0.0
  %3179 = vmatprep.subr.mxu0 0.0
  %3180 = vmatpush1.msra.mxu0 0.0
  %3181 = vmatprep.subr.mxu0 0.0
  %3182 = vmatpush1.msra.mxu0 0.0
  %3183 = vmatprep.subr.mxu0 0.0
  %3184 = vmatpush1.msra.mxu0 0.0
  %3185 = vmatprep.subr.mxu0 0.0
  %3186 = vmatpush1.msra.mxu0 0.0
  %3187 = vmatprep.subr.mxu0 0.0
  %3188 = vmatpush1.msra.mxu0 0.0
  %3189 = vmatprep.subr.mxu0 0.0
  %3190 = vmatpush1.msra.mxu0 0.0
  %3191 = vmatprep.subr.mxu0 0.0
  %3192 = vmatpush1.msra.mxu0 0.0
  %3193 = vmatprep.subr.mxu0 0.0
  %3194 = vmatpush1.msra.mxu0 0.0
  %3195 = vmatprep.subr.mxu0 0.0
  %3196 = vmatpush1.msra.mxu0 0.0
  %3197 = vmatprep.subr.mxu0 0.0
  %3198 = vmatpush1.msra.mxu0 0.0
  %3199 = vmatprep.subr.mxu0 0.0
  %3200 = vmatpush1.msra.mxu0 0.0
  %3201 = vmatprep.subr.mxu0 0.0
  %3202 = vmatpush1.msra.mxu0 0.0
  %3203 = vmatprep.subr.mxu0 0.0
  %3204 = vmatpush1.msra.mxu0 0.0
  %3205 = vmatprep.subr.mxu0 0.0
  %3206 = vmatpush1.msra.mxu0 0.0
  %3207 = vmatprep.subr.mxu0 0.0
  %3208 = vmatpush1.msra.mxu0 0.0
  %3209 = vmatprep.subr.mxu0 0.0
  %3210 = vmatpush1.msra.mxu0 0.0
  %3211 = vmatprep.mubr.f32.mxu0 0.0
  %3212 = vmatmul.mubr.f32.gmra.mrb[0].mxu0 %v3145
  %v3213 = vpop.f32.mrb[0].mxu0
  %v3214 = vadd.f32 0.0, %v3213
  %v3215 = vpop.f32.mrb[0].mxu0
  %3216 = vdwg.mxu0
  %v3217 = vld [vmem:[%s12] sm:$0xff]
  %v3218 = vld [vmem:[%s12 + $0x8] sm:$0xff]
  %v3219 = vld [vmem:[%s12 + $0x10] sm:$0xff]
  %v3220 = vld [vmem:[%s12 + $0x18] sm:$0xff]
  %v3221 = vld [vmem:[%s12 + $0x20] sm:$0xff]
  %v3222 = vld [vmem:[%s12 + $0x28] sm:$0xff]
  %v3223 = vld [vmem:[%s12 + $0x30] sm:$0xff]
  %v3224 = vld [vmem:[%s12 + $0x38] sm:$0xff]
  %v3225 = vld [vmem:[%s13] sm:$0x1]
  %v3227 = vlaneseq
  %v3228 = vshrl.u32 %v3227, 7
  %v3229 = vsub.s32 0, %v3228
  %v3230 = vrot.slane %v3225, %v3229
  %v3233 = vsel %vm164, %v3214, 0
  %3235 = vmatprep.subr.mxu0 0.0
  %3236 = vmatpush1.msra.mxu0 %v3217
  %3237 = vmatprep.subr.mxu0 0.0
  %3238 = vmatpush1.msra.mxu0 %v3218
  %3239 = vmatprep.subr.mxu0 0.0
  %3240 = vmatpush1.msra.mxu0 %v3219
  %3241 = vmatprep.subr.mxu0 0.0
  %3242 = vmatpush1.msra.mxu0 %v3220
  %3243 = vmatprep.subr.mxu0 0.0
  %3244 = vmatpush1.msra.mxu0 %v3221
  %3245 = vmatprep.subr.mxu0 0.0
  %3246 = vmatpush1.msra.mxu0 %v3222
  %3247 = vmatprep.subr.mxu0 0.0
  %3248 = vmatpush1.msra.mxu0 %v3223
  %3249 = vmatprep.subr.mxu0 0.0
  %3250 = vmatpush1.msra.mxu0 %v3224
  %3251 = vmatprep.subr.mxu0 0.0
  %3252 = vmatpush1.msra.mxu0 0.0
  %3253 = vmatprep.subr.mxu0 0.0
  %3254 = vmatpush1.msra.mxu0 0.0
  %3255 = vmatprep.subr.mxu0 0.0
  %3256 = vmatpush1.msra.mxu0 0.0
  %3257 = vmatprep.subr.mxu0 0.0
  %3258 = vmatpush1.msra.mxu0 0.0
  %3259 = vmatprep.subr.mxu0 0.0
  %3260 = vmatpush1.msra.mxu0 0.0
  %3261 = vmatprep.subr.mxu0 0.0
  %3262 = vmatpush1.msra.mxu0 0.0
  %3263 = vmatprep.subr.mxu0 0.0
  %3264 = vmatpush1.msra.mxu0 0.0
  %3265 = vmatprep.subr.mxu0 0.0
  %3266 = vmatpush1.msra.mxu0 0.0
  %3267 = vmatprep.subr.mxu0 0.0
  %3268 = vmatpush1.msra.mxu0 0.0
  %3269 = vmatprep.subr.mxu0 0.0
  %3270 = vmatpush1.msra.mxu0 0.0
  %3271 = vmatprep.subr.mxu0 0.0
  %3272 = vmatpush1.msra.mxu0 0.0
  %3273 = vmatprep.subr.mxu0 0.0
  %3274 = vmatpush1.msra.mxu0 0.0
  %3275 = vmatprep.subr.mxu0 0.0
  %3276 = vmatpush1.msra.mxu0 0.0
  %3277 = vmatprep.subr.mxu0 0.0
  %3278 = vmatpush1.msra.mxu0 0.0
  %3279 = vmatprep.subr.mxu0 0.0
  %3280 = vmatpush1.msra.mxu0 0.0
  %3281 = vmatprep.subr.mxu0 0.0
  %3282 = vmatpush1.msra.mxu0 0.0
  %3283 = vmatprep.subr.mxu0 0.0
  %3284 = vmatpush1.msra.mxu0 0.0
  %3285 = vmatprep.subr.mxu0 0.0
  %3286 = vmatpush1.msra.mxu0 0.0
  %3287 = vmatprep.subr.mxu0 0.0
  %3288 = vmatpush1.msra.mxu0 0.0
  %3289 = vmatprep.subr.mxu0 0.0
  %3290 = vmatpush1.msra.mxu0 0.0
  %3291 = vmatprep.subr.mxu0 0.0
  %3292 = vmatpush1.msra.mxu0 0.0
  %3293 = vmatprep.subr.mxu0 0.0
  %3294 = vmatpush1.msra.mxu0 0.0
  %3295 = vmatprep.subr.mxu0 0.0
  %3296 = vmatpush1.msra.mxu0 0.0
  %3297 = vmatprep.subr.mxu0 0.0
  %3298 = vmatpush1.msra.mxu0 0.0
  %3299 = vmatprep.mubr.f32.mxu0 0.0
  %3300 = vmatmul.mubr.f32.gmra.mrb[0].mxu0 %v3233
  %v3301 = vpop.f32.mrb[0].mxu0
  %v3302 = vadd.f32 %v3230, %v3301
  %v3303 = vpop.f32.mrb[0].mxu0
  %3304 = vdwg.mxu0
  %vm3305 = vcmask 261120
  %3306 = vst.msk [vmem:[%s14] sm:$0xff] %vm3305, %v3302
  // Predicated region
  $region58: #{transformer_forward.1} parent=0 // pred_check
    _
  $region59: #{transformer_forward.1} parent=0 // pred_check_branch
    %3308 = sbr.rel (0) target = $region61
  $region60: #{transformer_forward.1} parent=0 // pred_region
    _
  $region61: #{transformer_forward.1} parent=0 // pred_fallthru
    _
  // Predicated region
  $region62: #{transformer_forward.1} parent=0 // pred_check
    _
  $region63: #{transformer_forward.1} parent=0 // pred_check_branch
    %3310 = sbr.rel (0) target = $region65
  $region64: #{transformer_forward.1} parent=0 // pred_region
    _
  $region65: #{transformer_forward.1} parent=0 // pred_fallthru
    _

</llo_original>
